<compile_context>
chip_gen: v6e
topology: v6e:2x2x1
jax: 0.10.0
libtpu: 0.0.40
codegen_flags: <defaults>
</compile_context>

<pallas_src>
import jax
import jax.numpy as jnp
from jax.experimental import pallas as pl
from jax.experimental.pallas import tpu as pltpu

GARMENT_DIM = 1024
HIDDEN_DIM = 3072


# ----------------------------------------------------------------------------
# Helpers
# ----------------------------------------------------------------------------
def quantize_per_output_channel(w_f32):
    """Symmetric per-output-channel int8 quantization of a [K, N] weight."""
    amax = jnp.max(jnp.abs(w_f32), axis=0, keepdims=True)
    scale = jnp.where(amax > 0.0, amax / 127.0, 1.0).astype(jnp.float32)
    w_q = jnp.clip(jnp.round(w_f32 / scale), -127, 127).astype(jnp.int8)
    return w_q, scale


def _choose_row_tile(m, d, itemsize, target=512, vmem_budget=12 << 20):
    """Largest row tile (multiple of 8, <= target) whose double-buffered footprint
    (2 bufs x (2 in + 1 out) x tm x d x itemsize) stays under the scoped-VMEM budget."""
    per_row = 6 * d * max(itemsize, 1)
    tm = max(8, min(target, vmem_budget // per_row))
    tm = (tm // 8) * 8
    if m < 8:
        return m                      # block row dim == full array dim (bypasses the 8-constraint)
    return max(8, min(tm, (m // 8) * 8))


# ----------------------------------------------------------------------------
# Kernel 1: fused garment K|V projection  out[j] = (x @ Wq[:, j]) * scale[j] + b[j]
#   x: [M, K] f32 (resident), Wq: [K, 2N] int8 (streamed), scale/bias: [1, 2N] f32
#   out: [2, M, N] f32  (slab 0 = K projection, slab 1 = V projection)
# ----------------------------------------------------------------------------
def _garment_kv_kernel(x_ref, w_ref, s_ref, b_ref, kv_ref):
    x = x_ref[...].astype(jnp.bfloat16)          # tiny activation, cast in-kernel
    w = w_ref[...].astype(jnp.bfloat16)          # int8 -> bf16 is exact; kernel is weight-DMA bound
    acc = jnp.dot(x, w, preferred_element_type=jnp.float32)
    kv_ref[...] = (acc * s_ref[...] + b_ref[...]).astype(kv_ref.dtype)


def garment_kv_projection(x2d, w_q, scale, bias):
    """x2d: [M, K] f32; w_q: [K, 2N] int8; scale/bias: [1, 2N] f32 -> [2, M, N] f32."""
    M, K = x2d.shape
    N2 = w_q.shape[1]
    assert N2 % 2 == 0
    N = N2 // 2

    return pl.pallas_call(
        _garment_kv_kernel,
        out_shape=jax.ShapeDtypeStruct((2, M, N), jnp.float32),
        grid_spec=pltpu.PrefetchScalarGridSpec(
            num_scalar_prefetch=0,
            grid=(2,),                                           # step 0 -> K half, step 1 -> V half
            in_specs=[
                pl.BlockSpec((M, K), lambda j: (0, 0)),          # garment tokens (VMEM-resident)
                pl.BlockSpec((K, N), lambda j: (0, j)),          # int8 weight half (3 MiB stream)
                pl.BlockSpec((1, N), lambda j: (0, j)),          # per-channel scales
                pl.BlockSpec((1, N), lambda j: (0, j)),          # fused bias half
            ],
            out_specs=pl.BlockSpec((None, M, N), lambda j: (j, 0, 0)),
        ),
        compiler_params=pltpu.CompilerParams(dimension_semantics=("parallel",)),
    )(x2d, w_q, scale, bias)


# ----------------------------------------------------------------------------
# Kernel 2: read-mode injection  out = ctx + strength * garment_ctx  (VPU / DMA bound)
# ----------------------------------------------------------------------------
def _inject_kernel(strength_ref, ctx_ref, g_ref, out_ref):
    s = strength_ref[0]
    out_ref[...] = (ctx_ref[...].astype(jnp.float32)
                    + s * g_ref[...].astype(jnp.float32)).astype(out_ref.dtype)


def _inject_flat(ctx2, g2, strength):
    """ctx2, g2: [M, D] (same shape, possibly different dtypes) -> [M, D] of ctx2.dtype."""
    M, D = ctx2.shape
    itemsize = max(ctx2.dtype.itemsize, g2.dtype.itemsize)
    tm = _choose_row_tile(M, D, itemsize)
    s_arr = jnp.asarray([strength], dtype=jnp.float32)
    return pl.pallas_call(
        _inject_kernel,
        out_shape=jax.ShapeDtypeStruct((M, D), ctx2.dtype),
        grid=(pl.cdiv(M, tm),),
        in_specs=[
            pl.BlockSpec(memory_space=pltpu.SMEM),               # scalar strength
            pl.BlockSpec((tm, D), lambda i: (i, 0)),             # context tile (full-D block)
            pl.BlockSpec((tm, D), lambda i: (i, 0)),             # garment tile (cast in-kernel)
        ],
        out_specs=pl.BlockSpec((tm, D), lambda i: (i, 0)),
        compiler_params=pltpu.CompilerParams(dimension_semantics=("parallel",)),
    )(s_arr, ctx2, g2)


def _inject_broadcast_batch(ctx, g, strength):
    """ctx: [B, L, D]; g: [1, L, D] kept small and VMEM-resident (no HBM broadcast)."""
    B, L, D = ctx.shape
    itemsize = max(ctx.dtype.itemsize, g.dtype.itemsize)
    tl = _choose_row_tile(L, D, itemsize)
    s_arr = jnp.asarray([strength], dtype=jnp.float32)
    # Row-tile axis outermost so the garment tile is DMA'd once per row tile and
    # reused (resident) across the inner batch steps.
    return pl.pallas_call(
        _inject_kernel,
        out_shape=jax.ShapeDtypeStruct((B, L, D), ctx.dtype),
        grid=(pl.cdiv(L, tl), B),
        in_specs=[
            pl.BlockSpec(memory_space=pltpu.SMEM),
            pl.BlockSpec((1, tl, D), lambda i, b: (b, i, 0)),
            pl.BlockSpec((1, tl, D), lambda i, b: (0, i, 0)),    # batch pinned -> resident reuse
        ],
        out_specs=pl.BlockSpec((1, tl, D), lambda i, b: (b, i, 0)),
        compiler_params=pltpu.CompilerParams(dimension_semantics=("parallel", "parallel")),
    )(s_arr, ctx, g)


def inject_context(ctx, garment_ctx, strength):
    """out = ctx + strength * garment_ctx, with no pad / slice / broadcast HBM round-trips."""
    if tuple(garment_ctx.shape) == tuple(ctx.shape):
        D = ctx.shape[-1]
        out = _inject_flat(ctx.reshape(-1, D), garment_ctx.reshape(-1, D), strength)
        return out.reshape(ctx.shape)
    if (ctx.ndim == 3 and garment_ctx.ndim == 3 and garment_ctx.shape[0] == 1
            and tuple(garment_ctx.shape[1:]) == tuple(ctx.shape[1:])):
        return _inject_broadcast_batch(ctx, garment_ctx, strength)
    # TODO(synk): other broadcast patterns are rare; fall back to materializing the broadcast.
    D = ctx.shape[-1]
    g = jnp.broadcast_to(garment_ctx, ctx.shape)
    return _inject_flat(ctx.reshape(-1, D), g.reshape(-1, D), strength).reshape(ctx.shape)


# ----------------------------------------------------------------------------
# JAX-side wrapper mirroring DreamFitModelWrapper's state machine
# ----------------------------------------------------------------------------
class DreamFitModelWrapperJAX:
    def __init__(self, base_model_fn, garment_features):
        # base_model_fn(x, timestep, context) -> output
        self.base_model_fn = base_model_fn          # TODO(synk): external Flux base model; identity stand-in here.
        self.garment_features = garment_features
        self.garment_storage = {}
        self.features_written = False
        self.current_mode = 'normal'
        self.garment_dim = GARMENT_DIM
        self.hidden_dim = HIDDEN_DIM
        # nn.init.zeros_ on both Linear layers (weight and bias), exactly as the module does.
        # K and V projections are fused along the output axis: [Wk | Wv], [bk | bv].
        # Weights are stored int8 + per-output-channel f32 scales (exact for zero init; with real
        # checkpoints this is a standard weight-only quantization that halves the HBM stream).
        self.kv_proj_wq = jnp.zeros((self.garment_dim, 2 * self.hidden_dim), jnp.int8)
        self.kv_proj_scale = jnp.ones((1, 2 * self.hidden_dim), jnp.float32)
        self.kv_proj_b = jnp.zeros((1, 2 * self.hidden_dim), jnp.float32)

    def load_kv_projection(self, k_weight, k_bias, v_weight, v_bias):
        """k_weight/v_weight: [hidden, garment] (PyTorch layout). Fuse, transpose, int8-quantize."""
        w = jnp.concatenate([k_weight.T, v_weight.T], axis=1).astype(jnp.float32)
        b = jnp.concatenate([k_bias, v_bias])[None, :].astype(jnp.float32)
        self.kv_proj_wq, self.kv_proj_scale = quantize_per_output_channel(w)
        self.kv_proj_b = b

    def set_mode(self, mode):
        self.current_mode = mode

    def reset(self):
        self.features_written = False
        self.garment_storage.clear()
        self.current_mode = 'normal'

    def _prepare_garment_inputs(self):
        garment_token = self.garment_features.get('garment_token')
        if garment_token is None:
            return {}
        if garment_token.ndim == 2:
            garment_token = garment_token[None, ...]            # unsqueeze(0)
        B, S, D = garment_token.shape
        x2d = garment_token.reshape(B * S, D).astype(jnp.float32)
        kv = garment_kv_projection(x2d, self.kv_proj_wq, self.kv_proj_scale, self.kv_proj_b)
        garment_k = kv[0].reshape(B, S, self.hidden_dim)
        garment_v = kv[1].reshape(B, S, self.hidden_dim)
        return {
            'garment_token': garment_token,
            'garment_k': garment_k,
            'garment_v': garment_v,
            'patch_features': self.garment_features.get('patch_features'),
            'pooled_features': self.garment_features.get('pooled_features'),
        }

    def wrapped_forward(self, x, timestep, context):
        """Mirrors _wrapped_forward for the positional-args (x, timestep, context) path."""
        if self.current_mode == 'write':
            output = self.base_model_fn(x, timestep, context)
            if context is not None:
                # Stored as-is for parity with the PyTorch module (context.clone()).
                # NOTE: storing in bf16 here would halve kernel-2's garment HBM stream.
                self.garment_storage['garment_context'] = context
            self.features_written = True
            return output
        elif self.current_mode == 'neg_write':
            output = self.base_model_fn(x, timestep, context)
            if context is not None:
                self.garment_storage['neg_garment_context'] = context
            return output
        elif self.current_mode == 'read' and self.features_written:
            if 'garment_context' in self.garment_storage and context is not None:
                g = self.garment_storage['garment_context']
                if context.shape[-1] == g.shape[-1]:
                    strength = float(self.garment_features.get('injection_strength', 0.8))
                    context = inject_context(context, g, strength)
            return self.base_model_fn(x, timestep, context)
        elif self.current_mode == 'neg_read' and self.features_written:
            if 'neg_garment_context' in self.garment_storage and context is not None:
                g = self.garment_storage['neg_garment_context']
                if context.shape[-1] == g.shape[-1]:
                    strength = float(self.garment_features.get('injection_strength', 0.8))
                    context = inject_context(context, g, strength)
            return self.base_model_fn(x, timestep, context)
        else:
            return self.base_model_fn(x, timestep, context)

    def forward(self, x, timestep, context):
        return self.wrapped_forward(x, timestep, context)


# ----------------------------------------------------------------------------
# Demo / self-check
# ----------------------------------------------------------------------------
def _identity_base_model(x, timestep, context):
    # The real base model is an external Flux transformer; semantically the wrapper
    # just delegates to it, so a pass-through stand-in is used.
    return context


if __name__ == "__main__":
    key = jax.random.PRNGKey(0)
    ks = jax.random.split(key, 8)

    B, S_g, L = 2, 8, 8
    x = jax.random.normal(ks[0], (B, 4, 16, 16), jnp.float32)          # NCHW latent (pass-through)
    timestep = jnp.zeros((B,), jnp.float32)
    garment_context = jax.random.normal(ks[1], (B, L, GARMENT_DIM), jnp.float32)
    denoise_context = jax.random.normal(ks[2], (B, L, GARMENT_DIM), jnp.float32)
    garment_token = jax.random.normal(ks[3], (S_g, GARMENT_DIM), jnp.float32)

    garment_features = {'garment_token': garment_token, 'injection_strength': 0.8}
    wrapper = DreamFitModelWrapperJAX(_identity_base_model, garment_features)

    # 1) zero-initialized projection (as in the module) -> exactly zero K/V.
    prepared = wrapper._prepare_garment_inputs()
    gk = jax.block_until_ready(prepared['garment_k'])
    gv = jax.block_until_ready(prepared['garment_v'])
    assert gk.shape == (1, S_g, HIDDEN_DIM) and gv.shape == (1, S_g, HIDDEN_DIM)
    assert jnp.allclose(gk, 0.0) and jnp.allclose(gv, 0.0)

    # 1b) projection kernel numerical check with random int8-quantized weights.
    w_f32 = jax.random.normal(ks[4], (GARMENT_DIM, 2 * HIDDEN_DIM), jnp.float32)
    b_f32 = jax.random.normal(ks[5], (1, 2 * HIDDEN_DIM), jnp.float32)
    w_q, w_scale = quantize_per_output_channel(w_f32)
    kv = jax.block_until_ready(
        garment_kv_projection(garment_token.astype(jnp.float32), w_q, w_scale, b_f32))
    x_bf = garment_token.astype(jnp.bfloat16).astype(jnp.float32)
    ref_flat = (jnp.dot(x_bf, w_q.astype(jnp.float32),
                        precision=jax.lax.Precision.HIGHEST) * w_scale + b_f32)
    ref = jnp.stack([ref_flat[:, :HIDDEN_DIM], ref_flat[:, HIDDEN_DIM:]], axis=0)
    assert jnp.allclose(kv, ref, atol=5e-2, rtol=5e-2), float(jnp.max(jnp.abs(kv - ref)))

    # 2) write pass: store garment context; 3) read pass: inject (same-shape flat path).
    wrapper.set_mode('write')
    jax.block_until_ready(wrapper.wrapped_forward(x, timestep, garment_context))
    wrapper.set_mode('read')
    out_read = jax.block_until_ready(wrapper.wrapped_forward(x, timestep, denoise_context))
    ref_read = denoise_context + 0.8 * garment_context
    assert out_read.shape == ref_read.shape
    assert jnp.allclose(out_read, ref_read, atol=1e-5, rtol=1e-5)

    # 4) batch-broadcast path: garment [1, L, D] vs ctx [B, L, D], no HBM broadcast.
    g_b1 = jax.random.normal(ks[6], (1, L, GARMENT_DIM), jnp.float32)
    out_b = jax.block_until_ready(inject_context(denoise_context, g_b1, 0.8))
    assert jnp.allclose(out_b, denoise_context + 0.8 * g_b1, atol=1e-5, rtol=1e-5)

    # 5) ragged rows (M not a multiple of the tile): partial edge tiles, no padding passes.
    ctx_r = jax.random.normal(ks[7], (3, 7, 256), jnp.float32)
    g_r = jax.random.normal(ks[0], (3, 7, 256), jnp.float32)
    out_r = jax.block_until_ready(inject_context(ctx_r, g_r, 0.5))
    assert jnp.allclose(out_r, ctx_r + 0.5 * g_r, atol=1e-5, rtol=1e-5)

    print("KERNEL_OK")
</pallas_src>

<mosaic_0001>
module attributes {stable_mosaic.version = 11 : i64} {
  func.func @_garment_kv_kernel(%arg0: i32, %arg1: memref<8x1024xf32, #tpu.memory_space<vmem>>, %arg2: memref<1024x3072xi8, #tpu.memory_space<vmem>>, %arg3: memref<1x3072xf32, #tpu.memory_space<vmem>>, %arg4: memref<1x3072xf32, #tpu.memory_space<vmem>>, %arg5: memref<1x8x3072xf32, #tpu.memory_space<vmem>>) attributes {dimension_semantics = [#tpu.dimension_semantics<parallel>], iteration_bounds = array<i64: 2>, scalar_prefetch = 0 : i64, scratch_operands = 0 : i64, tpu.core_type = #tpu.core_type<tc>, window_params = [{pipeline_mode = #tpu.pipeline_mode<synchronous>, transform_indices = @transform_0, window_bounds = array<i64: 8, 1024>}, {transform_indices = @transform_1, window_bounds = array<i64: 1024, 3072>}, {transform_indices = @transform_2, window_bounds = array<i64: 1, 3072>}, {transform_indices = @transform_3, window_bounds = array<i64: 1, 3072>}, {transform_indices = @transform_4, window_bounds = array<i64: 1, 8, 3072>}]} {
    %c0 = arith.constant 0 : index
    %c0_0 = arith.constant 0 : index
    %0 = vector.load %arg1[%c0, %c0_0] : memref<8x1024xf32, #tpu.memory_space<vmem>>, vector<8x1024xf32>
    %1 = arith.truncf %0 : vector<8x1024xf32> to vector<8x1024xbf16>
    %c0_1 = arith.constant 0 : index
    %c0_2 = arith.constant 0 : index
    %2 = vector.load %arg2[%c0_1, %c0_2] : memref<1024x3072xi8, #tpu.memory_space<vmem>>, vector<1024x3072xi8>
    %3 = arith.sitofp %2 : vector<1024x3072xi8> to vector<1024x3072xbf16>
    %cst = arith.constant dense<0.000000e+00> : vector<8x3072xf32>
    %4 = tpu.matmul %1, %3, %cst {dimension_numbers = #tpu.dot_dimension_numbers<[1], [0], [0], [1], [0, 0, 1, 1], [], []>} : vector<8x1024xbf16>, vector<1024x3072xbf16>, vector<8x3072xf32> -> vector<8x3072xf32>
    %c0_3 = arith.constant 0 : index
    %c0_4 = arith.constant 0 : index
    %5 = vector.load %arg3[%c0_3, %c0_4] : memref<1x3072xf32, #tpu.memory_space<vmem>>, vector<1x3072xf32>
    %6 = vector.broadcast %5 : vector<1x3072xf32> to vector<8x3072xf32>
    %7 = arith.mulf %4, %6 : vector<8x3072xf32>
    %c0_5 = arith.constant 0 : index
    %c0_6 = arith.constant 0 : index
    %8 = vector.load %arg4[%c0_5, %c0_6] : memref<1x3072xf32, #tpu.memory_space<vmem>>, vector<1x3072xf32>
    %9 = vector.broadcast %8 : vector<1x3072xf32> to vector<8x3072xf32>
    %10 = arith.addf %7, %9 : vector<8x3072xf32>
    %c0_7 = arith.constant 0 : index
    %c0_8 = arith.constant 0 : index
    %c0_9 = arith.constant 0 : index
    %11 = vector.load %arg5[%c0_7, %c0_8, %c0_9] : memref<1x8x3072xf32, #tpu.memory_space<vmem>>, vector<1x8x3072xf32>
    %12 = vector.shape_cast %11 : vector<1x8x3072xf32> to vector<8x3072xf32>
    %13 = vector.shape_cast %10 : vector<8x3072xf32> to vector<1x8x3072xf32>
    tpu.vector_store %arg5[%c0_7, %c0_8, %c0_9], %13 {strides = array<i32>} : memref<1x8x3072xf32, #tpu.memory_space<vmem>>, vector<1x8x3072xf32>,
    return
  }
  func.func @transform_0(%arg0: i32) -> (i32, i32) {
    %c0_i32 = arith.constant 0 : i32
    %c0_i32_0 = arith.constant 0 : i32
    %c0_i32_1 = arith.constant 0 : i32
    return %c0_i32, %c0_i32_0 : i32, i32
  }
  func.func @transform_1(%arg0: i32) -> (i32, i32) {
    %c0_i32 = arith.constant 0 : i32
    %c0_i32_0 = arith.constant 0 : i32
    return %c0_i32, %arg0 : i32, i32
  }
  func.func @transform_2(%arg0: i32) -> (i32, i32) {
    %c0_i32 = arith.constant 0 : i32
    %c0_i32_0 = arith.constant 0 : i32
    return %c0_i32, %arg0 : i32, i32
  }
  func.func @transform_3(%arg0: i32) -> (i32, i32) {
    %c0_i32 = arith.constant 0 : i32
    %c0_i32_0 = arith.constant 0 : i32
    return %c0_i32, %arg0 : i32, i32
  }
  func.func @transform_4(%arg0: i32) -> (i32, i32, i32) {
    %c0_i32 = arith.constant 0 : i32
    %c0_i32_0 = arith.constant 0 : i32
    %c0_i32_1 = arith.constant 0 : i32
    return %arg0, %c0_i32, %c0_i32_0 : i32, i32, i32
  }
}

</mosaic_0001>

<llo_original>
// kernel: tpu_custom_call.1
$region0: #{tpu_custom_call.1}
  #allocation0 [shape = 'u32[]', space=smem, size = 0x4, offset = 0x4, fixed_abs, tag = 'smem constant byte address 0x4 - core index']
  #allocation1 [shape = 'u32[144,128]{1,0:T(1,128)}', space=vmem, size = 0x12000, scoped, tag = 'internal scratch']
  %s0 = inlined_call_operand.hbm [shape: f32[8,1024], index: 0, kind: input, shape index: {}]
  %s1 = inlined_call_operand.hbm [shape: s8[1024,6144], index: 1, kind: input, shape index: {}]
  %s2 = inlined_call_operand.hbm [shape: f32[1,6144], index: 2, kind: input, shape index: {}]
  %s3 = inlined_call_operand.hbm [shape: f32[1,6144], index: 3, kind: input, shape index: {}]
  %s4 = inlined_call_operand.hbm [shape: f32[2,8,3072], index: 4, kind: output, shape index: {}]
  %s5 = sld [smem:[#allocation0]]
  $region65: #{tpu_custom_call.1} parent=0
    _
  %s7 = ssub.s32 1, %s5
  %s8 = scalar_select 0, %s7, %s5
  $region1: #{tpu_custom_call.1} parent=0
    #allocation2 [shape = 'u8[32768]{0}', space=vmem, size = 0x8000, scoped, tag = 'input window, operand 0, single buffered']
    #allocation3 [shape = 's32[2]{0}', space=sflag, size = 0x8, scoped, tag = 'scoped memory for tpu_custom_call.1']
    #allocation4 [shape = 's32[2]{0}', space=sflag, size = 0x8, scoped, tag = 'scoped memory for tpu_custom_call.1']
    #allocation5 [shape = 'u8[6291456]{0}', space=vmem, size = 0x600000, scoped, tag = 'input window, operand 1']
    #allocation6 [shape = 's32[2]{0}', space=sflag, size = 0x8, scoped, tag = 'scoped memory for tpu_custom_call.1']
    #allocation7 [shape = 'u8[24576]{0}', space=vmem, size = 0x6000, scoped, tag = 'input window, operand 2']
    #allocation8 [shape = 'u8[24576]{0}', space=vmem, size = 0x6000, scoped, tag = 'input window, operand 3']
    #allocation9 [shape = 's32[2]{0}', space=sflag, size = 0x8, scoped, tag = 'scoped memory for tpu_custom_call.1']
    #allocation10 [shape = 'u8[196608]{0}', space=vmem, size = 0x30000, scoped, tag = 'output window, operand 0']
    %9 = vsyncpa [#allocation3], 0
    %10 = vsyncpa [#allocation6], 0
    %s11 = scalar_lea.sflag [#allocation6], 1
    %12 = vsyncpa %s11, 0
    %13 = vsyncpa [#allocation9], 0
    %s14 = scalar_lea.sflag [#allocation9], 1
    %15 = vsyncpa %s14, 0
    %16 = vsyncpa [#allocation4], 0
    %s17 = scalar_lea.sflag [#allocation4], 1
    %18 = vsyncpa %s17, 0
    loop: start=0, step=1, limit=4
    $region2: #{tpu_custom_call.1} parent=1 // loop_pre_header
      _
    $region3: #{tpu_custom_call.1} parent=1 // loop_header
      %s20 = sphi 0, %s24
      %p21 = scmp.ge.s32.totalorder %s20, 4
      %s28 = sphi 0, %s28
      %s30 = sphi 0, %s28
      %s31 = sphi 0, %s30
      %s45 = sphi 0, %s31
      %s51 = sphi 0, %s53
      %s54 = sphi 0, %s51
      %s55 = sphi 0, %s54
      %s71 = sphi 0, %s55
      %s77 = sphi 0, %s79
      %s80 = sphi 0, %s77
      %s81 = sphi 0, %s80
      %s97 = sphi 0, %s81
      %s103 = sphi 0, %s105
      %s106 = sphi 0, %s103
      %s107 = sphi 0, %s106
      %s123 = sphi 0, %s107
      %s129 = sphi 0, %s131
      %s132 = sphi 0, %s129
      %s133 = sphi 0, %s132
      %s149 = sphi 0, %s133
    $region4: #{tpu_custom_call.1} parent=1 // loop_header_branch
      %23 = sbr.rel (%p21) target = $region8
    $region5: #{tpu_custom_call.1} parent=1 // loop_body
      %s25 = ssub.s32 %s20, 1
      %s26 = ssub.s32 %s20, 2
      %s27 = sadd.s32 %s20, 1
      %s29 = sadd.s32 %s28, 1
      %p32 = scmp.eq.s32.totalorder %s20, 1
      %p33 = scmp.ne.s32.totalorder %s28, %s30
      %p34 = scmp.eq.s32.totalorder %s20, 0
      %p35 = por %p33, %p34
      %p36 = scmp.ne.s32.totalorder %s28, %s30
      %p37 = scmp.eq.s32.totalorder %s25, 1
      %p38 = por %p36, %p37
      %p39 = scmp.ne.s32.totalorder %s30, %s31
      %p40 = scmp.eq.s32.totalorder %s25, 0
      %p41 = por %p39, %p40
      %p42 = scmp.ne.s32.totalorder %s30, %s31
      %p43 = scmp.eq.s32.totalorder %s26, 1
      %p44 = por %p42, %p43
      %p46 = scmp.ne.s32.totalorder %s31, %s45
      %p47 = scmp.eq.s32.totalorder %s26, 0
      %p48 = por %p46, %p47
      %s49 = ssub.s32 %s20, %s27
      %p50 = scmp.eq.s32.totalorder %s49, 0
      %s52 = sadd.s32 %s51, 1
      %s53 = scalar_select %p50, %s51, %s52
      %p56 = pneg %p50
      %p57 = scmp.eq.s32.totalorder %s20, 1
      %p58 = por %p56, %p57
      %p59 = scmp.ne.s32.totalorder %s51, %s54
      %p60 = scmp.eq.s32.totalorder %s20, 0
      %p61 = por %p59, %p60
      %p62 = scmp.ne.s32.totalorder %s51, %s54
      %p63 = scmp.eq.s32.totalorder %s25, 1
      %p64 = por %p62, %p63
      %p65 = scmp.ne.s32.totalorder %s54, %s55
      %p66 = scmp.eq.s32.totalorder %s25, 0
      %p67 = por %p65, %p66
      %p68 = scmp.ne.s32.totalorder %s54, %s55
      %p69 = scmp.eq.s32.totalorder %s26, 1
      %p70 = por %p68, %p69
      %p72 = scmp.ne.s32.totalorder %s55, %s71
      %p73 = scmp.eq.s32.totalorder %s26, 0
      %p74 = por %p72, %p73
      %s75 = ssub.s32 %s20, %s27
      %p76 = scmp.eq.s32.totalorder %s75, 0
      %s78 = sadd.s32 %s77, 1
      %s79 = scalar_select %p76, %s77, %s78
      %p82 = pneg %p76
      %p83 = scmp.eq.s32.totalorder %s20, 1
      %p84 = por %p82, %p83
      %p85 = scmp.ne.s32.totalorder %s77, %s80
      %p86 = scmp.eq.s32.totalorder %s20, 0
      %p87 = por %p85, %p86
      %p88 = scmp.ne.s32.totalorder %s77, %s80
      %p89 = scmp.eq.s32.totalorder %s25, 1
      %p90 = por %p88, %p89
      %p91 = scmp.ne.s32.totalorder %s80, %s81
      %p92 = scmp.eq.s32.totalorder %s25, 0
      %p93 = por %p91, %p92
      %p94 = scmp.ne.s32.totalorder %s80, %s81
      %p95 = scmp.eq.s32.totalorder %s26, 1
      %p96 = por %p94, %p95
      %p98 = scmp.ne.s32.totalorder %s81, %s97
      %p99 = scmp.eq.s32.totalorder %s26, 0
      %p100 = por %p98, %p99
      %s101 = ssub.s32 %s20, %s27
      %p102 = scmp.eq.s32.totalorder %s101, 0
      %s104 = sadd.s32 %s103, 1
      %s105 = scalar_select %p102, %s103, %s104
      %p108 = pneg %p102
      %p109 = scmp.eq.s32.totalorder %s20, 1
      %p110 = por %p108, %p109
      %p111 = scmp.ne.s32.totalorder %s103, %s106
      %p112 = scmp.eq.s32.totalorder %s20, 0
      %p113 = por %p111, %p112
      %p114 = scmp.ne.s32.totalorder %s103, %s106
      %p115 = scmp.eq.s32.totalorder %s25, 1
      %p116 = por %p114, %p115
      %p117 = scmp.ne.s32.totalorder %s106, %s107
      %p118 = scmp.eq.s32.totalorder %s25, 0
      %p119 = por %p117, %p118
      %p120 = scmp.ne.s32.totalorder %s106, %s107
      %p121 = scmp.eq.s32.totalorder %s26, 1
      %p122 = por %p120, %p121
      %p124 = scmp.ne.s32.totalorder %s107, %s123
      %p125 = scmp.eq.s32.totalorder %s26, 0
      %p126 = por %p124, %p125
      %s127 = ssub.s32 %s20, %s27
      %p128 = scmp.eq.s32.totalorder %s127, 0
      %s130 = sadd.s32 %s129, 1
      %s131 = scalar_select %p128, %s129, %s130
      %p134 = pneg %p128
      %p135 = scmp.eq.s32.totalorder %s20, 1
      %p136 = por %p134, %p135
      %p137 = scmp.ne.s32.totalorder %s129, %s132
      %p138 = scmp.eq.s32.totalorder %s20, 0
      %p139 = por %p137, %p138
      %p140 = scmp.ne.s32.totalorder %s129, %s132
      %p141 = scmp.eq.s32.totalorder %s25, 1
      %p142 = por %p140, %p141
      %p143 = scmp.ne.s32.totalorder %s132, %s133
      %p144 = scmp.eq.s32.totalorder %s25, 0
      %p145 = por %p143, %p144
      %p146 = scmp.ne.s32.totalorder %s132, %s133
      %p147 = scmp.eq.s32.totalorder %s26, 1
      %p148 = por %p146, %p147
      %p150 = scmp.ne.s32.totalorder %s133, %s149
      %p151 = scmp.eq.s32.totalorder %s26, 0
      %p152 = por %p150, %p151
      %p153 = scmp.le.s32.totalorder 1, %s20
      %p154 = scmp.lt.s32.totalorder %s20, 3
      %p155 = pnand %p153, %p154
      %p156 = pneg %p155
      // Predicated region
      $region9: #{tpu_custom_call.1} parent=5 // pred_check
        _
      $region10: #{tpu_custom_call.1} parent=5 // pred_check_branch
        %158 = sbr.rel (%p155) target = $region12
      $region11: #{tpu_custom_call.1} parent=5 // pred_region
        %s159 = ssub.s32 %s20, 1
        // Predicated region
        $region13: #{tpu_custom_call.1} parent=11 // pred_check
          %p160 = pneg %p41
        $region14: #{tpu_custom_call.1} parent=11 // pred_check_branch
          %162 = sbr.rel (%p160) target = $region16
        $region15: #{tpu_custom_call.1} parent=11 // pred_region
          %s164 = ssub.s32 1024, 1024
          %165 = vsyncadd [#allocation3], %s164
          %s167 = sshll.u32 [#allocation2], 4
          %s168 = int_to_ptr.vmem [resolvable:$true] %s167
          %170 = dma.hbm_to_vmem [thread:$0]  %s0, 1024, %s168, [#allocation3]
        $region16: #{tpu_custom_call.1} parent=11 // pred_fallthru
          _
      $region12: #{tpu_custom_call.1} parent=5 // pred_fallthru
        _
      %p171 = scmp.lt.s32.totalorder %s20, 2
      // Predicated region
      $region17: #{tpu_custom_call.1} parent=5 // pred_check
        %p172 = pneg %p171
      $region18: #{tpu_custom_call.1} parent=5 // pred_check_branch
        %174 = sbr.rel (%p172) target = $region20
      $region19: #{tpu_custom_call.1} parent=5 // pred_region
        // Predicated region
        $region21: #{tpu_custom_call.1} parent=19 // pred_check
          %p175 = pneg %p61
        $region22: #{tpu_custom_call.1} parent=19 // pred_check_branch
          %177 = sbr.rel (%p175) target = $region24
        $region23: #{tpu_custom_call.1} parent=19 // pred_region
          %s178 = sand.u32 %s20, 1
          %s179 = scalar_lea.sflag [#allocation6], %s178
          %s180 = sand.u32 %s51, 1
          %s181 = smul.addr %s180, 6144
          %s182 = scalar_lea.vmem [#allocation5], %s181
          %s183 = smul.u32 24, %s20
          %s185 = ssub.s32 98304, 98304
          %186 = vsyncadd %s179, %s185
          %s187 = smul.addr %s183, 128
          %s188 = scalar_lea.hbm %s1, %s187
          %s189 = sshll.u32 %s182, 4
          %s190 = int_to_ptr.vmem [resolvable:$true] %s189
          %195 = dma.hbm_to_vmem [thread:$0]  %s188, 98304, %s190, %s179, 6144, 3072, 192
        $region24: #{tpu_custom_call.1} parent=19 // pred_fallthru
          _
        // Predicated region
        $region25: #{tpu_custom_call.1} parent=19 // pred_check
          %p196 = pneg %p87
        $region26: #{tpu_custom_call.1} parent=19 // pred_check_branch
          %198 = sbr.rel (%p196) target = $region28
        $region27: #{tpu_custom_call.1} parent=19 // pred_region
          %s199 = sand.u32 %s20, 1
          %s200 = scalar_lea.sflag [#allocation6], %s199
          %s201 = sand.u32 %s77, 1
          %s202 = smul.addr %s201, 24
          %s203 = scalar_lea.vmem [#allocation7], %s202
          %s204 = smul.u32 24, %s20
          %s206 = ssub.s32 384, 384
          %207 = vsyncadd %s200, %s206
          %s208 = smul.addr %s204, 16
          %s209 = scalar_lea.hbm %s2, %s208
          %s211 = sshll.u32 %s203, 4
          %s212 = int_to_ptr.vmem [resolvable:$true] %s211
          %214 = dma.hbm_to_vmem [thread:$0]  %s209, 384, %s212, %s200
        $region28: #{tpu_custom_call.1} parent=19 // pred_fallthru
          _
        // Predicated region
        $region29: #{tpu_custom_call.1} parent=19 // pred_check
          %p215 = pneg %p113
        $region30: #{tpu_custom_call.1} parent=19 // pred_check_branch
          %217 = sbr.rel (%p215) target = $region32
        $region31: #{tpu_custom_call.1} parent=19 // pred_region
          %s218 = sand.u32 %s103, 1
          %s219 = scalar_lea.sflag [#allocation9], %s218
          %s220 = sand.u32 %s103, 1
          %s221 = smul.addr %s220, 24
          %s222 = scalar_lea.vmem [#allocation8], %s221
          %s223 = smul.u32 24, %s20
          %s225 = ssub.s32 384, 384
          %226 = vsyncadd %s219, %s225
          %s227 = smul.addr %s223, 16
          %s228 = scalar_lea.hbm %s3, %s227
          %s230 = sshll.u32 %s222, 4
          %s231 = int_to_ptr.vmem [resolvable:$true] %s230
          %233 = dma.hbm_to_vmem [thread:$0]  %s228, 384, %s231, %s219
        $region32: #{tpu_custom_call.1} parent=19 // pred_fallthru
          _
      $region20: #{tpu_custom_call.1} parent=5 // pred_fallthru
        _
      %p234 = scmp.le.s32.totalorder 1, %s20
      %p235 = scmp.lt.s32.totalorder %s20, 3
      %p236 = pnand %p234, %p235
      %p237 = pneg %p236
      // Predicated region
      $region33: #{tpu_custom_call.1} parent=5 // pred_check
        _
      $region34: #{tpu_custom_call.1} parent=5 // pred_check_branch
        %239 = sbr.rel (%p236) target = $region36
      $region35: #{tpu_custom_call.1} parent=5 // pred_region
        %s240 = ssub.s32 %s20, 1
        // Predicated region
        $region37: #{tpu_custom_call.1} parent=35 // pred_check
          %p241 = pneg %p41
        $region38: #{tpu_custom_call.1} parent=35 // pred_check_branch
          %243 = sbr.rel (%p241) target = $region40
        $region39: #{tpu_custom_call.1} parent=35 // pred_region
          %244 = dma.done [#allocation3], 1024
        $region40: #{tpu_custom_call.1} parent=35 // pred_fallthru
          _
        %s245 = sand.u32 %s25, 1
        %s246 = scalar_lea.sflag [#allocation6], %s245
        %s247 = sand.u32 %s54, 1
        %s248 = smul.addr %s247, 6144
        %s249 = scalar_lea.vmem [#allocation5], %s248
        // Predicated region
        $region41: #{tpu_custom_call.1} parent=35 // pred_check
          %p250 = pneg %p67
        $region42: #{tpu_custom_call.1} parent=35 // pred_check_branch
          %252 = sbr.rel (%p250) target = $region44
        $region43: #{tpu_custom_call.1} parent=35 // pred_region
          %253 = dma.done %s246, 98304
        $region44: #{tpu_custom_call.1} parent=35 // pred_fallthru
          _
        %s254 = sand.u32 %s25, 1
        %s255 = scalar_lea.sflag [#allocation6], %s254
        %s256 = sand.u32 %s80, 1
        %s257 = smul.addr %s256, 24
        %s258 = scalar_lea.vmem [#allocation7], %s257
        // Predicated region
        $region45: #{tpu_custom_call.1} parent=35 // pred_check
          %p259 = pneg %p93
        $region46: #{tpu_custom_call.1} parent=35 // pred_check_branch
          %261 = sbr.rel (%p259) target = $region48
        $region47: #{tpu_custom_call.1} parent=35 // pred_region
          %262 = dma.done %s255, 384
        $region48: #{tpu_custom_call.1} parent=35 // pred_fallthru
          _
        %s263 = sand.u32 %s106, 1
        %s264 = scalar_lea.sflag [#allocation9], %s263
        %s265 = sand.u32 %s106, 1
        %s266 = smul.addr %s265, 24
        %s267 = scalar_lea.vmem [#allocation8], %s266
        // Predicated region
        $region49: #{tpu_custom_call.1} parent=35 // pred_check
          %p268 = pneg %p119
        $region50: #{tpu_custom_call.1} parent=35 // pred_check_branch
          %270 = sbr.rel (%p268) target = $region52
        $region51: #{tpu_custom_call.1} parent=35 // pred_region
          %271 = dma.done %s264, 384
        $region52: #{tpu_custom_call.1} parent=35 // pred_fallthru
          _
        %p272 = pneg %p41
        %p273 = pneg %p38
        %s274 = sand.u32 %s25, 1
        %s275 = scalar_lea.sflag [#allocation6], %s274
        %s276 = sand.u32 %s54, 1
        %s277 = smul.addr %s276, 6144
        %s278 = scalar_lea.vmem [#allocation5], %s277
        %p279 = pneg %p67
        %p280 = pneg %p64
        %s281 = sand.u32 %s25, 1
        %s282 = scalar_lea.sflag [#allocation6], %s281
        %s283 = sand.u32 %s80, 1
        %s284 = smul.addr %s283, 24
        %s285 = scalar_lea.vmem [#allocation7], %s284
        %p286 = pneg %p93
        %p287 = pneg %p90
        %s288 = sand.u32 %s106, 1
        %s289 = scalar_lea.sflag [#allocation9], %s288
        %s290 = sand.u32 %s106, 1
        %s291 = smul.addr %s290, 24
        %s292 = scalar_lea.vmem [#allocation8], %s291
        %p293 = pneg %p119
        %p294 = pneg %p116
        %p295 = pneg %p145
        %p296 = pneg %p142
        %s297 = sand.u32 %s132, 1
        %s298 = scalar_lea.sflag [#allocation4], %s297
        %s299 = sand.u32 %s132, 1
        %s300 = smul.addr %s299, 192
        %s301 = scalar_lea.vmem [#allocation10], %s300
        %s302 = smul.u32 24, %s25
        %s303 = smul.u32 24, %s25
        %s304 = smul.u32 24, %s25
        %v305 = vld [vmem:[#allocation2] sm:$0xff]
        %v306 = vld [vmem:[#allocation2 + $0x8] sm:$0xff]
        %v307 = vld [vmem:[#allocation2 + $0x10] sm:$0xff]
        %v308 = vld [vmem:[#allocation2 + $0x18] sm:$0xff]
        %v309 = vld [vmem:[#allocation2 + $0x20] sm:$0xff]
        %v310 = vld [vmem:[#allocation2 + $0x28] sm:$0xff]
        %v311 = vld [vmem:[#allocation2 + $0x30] sm:$0xff]
        %v312 = vld [vmem:[#allocation2 + $0x38] sm:$0xff]
        %v313 = vpack.c.bf16 %v305, %v305
        %v314 = vpack.c.bf16 %v306, %v306
        %v315 = vpack.c.bf16 %v307, %v307
        %v316 = vpack.c.bf16 %v308, %v308
        %v317 = vpack.c.bf16 %v309, %v309
        %v318 = vpack.c.bf16 %v310, %v310
        %v319 = vpack.c.bf16 %v311, %v311
        %v320 = vpack.c.bf16 %v312, %v312
        %v321 = vld [vmem:[%s249] sm:$0xff]
        %v322 = vld [vmem:[%s249 + $0x8] sm:$0xff]
        %v323 = vld [vmem:[%s249 + $0x10] sm:$0xff]
        %v324 = vld [vmem:[%s249 + $0x18] sm:$0xff]
        %v325 = vld [vmem:[%s249 + $0x20] sm:$0xff]
        %v326 = vld [vmem:[%s249 + $0x28] sm:$0xff]
        %v327 = vld [vmem:[%s249 + $0x30] sm:$0xff]
        %v328 = vld [vmem:[%s249 + $0x38] sm:$0xff]
        %v329 = vld [vmem:[%s249 + $0x40] sm:$0xff]
        %v330 = vld [vmem:[%s249 + $0x48] sm:$0xff]
        %v331 = vld [vmem:[%s249 + $0x50] sm:$0xff]
        %v332 = vld [vmem:[%s249 + $0x58] sm:$0xff]
        %v333 = vld [vmem:[%s249 + $0x60] sm:$0xff]
        %v334 = vld [vmem:[%s249 + $0x68] sm:$0xff]
        %v335 = vld [vmem:[%s249 + $0x70] sm:$0xff]
        %v336 = vld [vmem:[%s249 + $0x78] sm:$0xff]
        %v337 = vld [vmem:[%s249 + $0x80] sm:$0xff]
        %v338 = vld [vmem:[%s249 + $0x88] sm:$0xff]
        %v339 = vld [vmem:[%s249 + $0x90] sm:$0xff]
        %v340 = vld [vmem:[%s249 + $0x98] sm:$0xff]
        %v341 = vld [vmem:[%s249 + $0xa0] sm:$0xff]
        %v342 = vld [vmem:[%s249 + $0xa8] sm:$0xff]
        %v343 = vld [vmem:[%s249 + $0xb0] sm:$0xff]
        %v344 = vld [vmem:[%s249 + $0xb8] sm:$0xff]
        %v345 = vld [vmem:[%s249 + $0xc0] sm:$0xff]
        %v346 = vld [vmem:[%s249 + $0xc8] sm:$0xff]
        %v347 = vld [vmem:[%s249 + $0xd0] sm:$0xff]
        %v348 = vld [vmem:[%s249 + $0xd8] sm:$0xff]
        %v349 = vld [vmem:[%s249 + $0xe0] sm:$0xff]
        %v350 = vld [vmem:[%s249 + $0xe8] sm:$0xff]
        %v351 = vld [vmem:[%s249 + $0xf0] sm:$0xff]
        %v352 = vld [vmem:[%s249 + $0xf8] sm:$0xff]
        %v353 = vld [vmem:[%s249 + $0x100] sm:$0xff]
        %v354 = vld [vmem:[%s249 + $0x108] sm:$0xff]
        %v355 = vld [vmem:[%s249 + $0x110] sm:$0xff]
        %v356 = vld [vmem:[%s249 + $0x118] sm:$0xff]
        %v357 = vld [vmem:[%s249 + $0x120] sm:$0xff]
        %v358 = vld [vmem:[%s249 + $0x128] sm:$0xff]
        %v359 = vld [vmem:[%s249 + $0x130] sm:$0xff]
        %v360 = vld [vmem:[%s249 + $0x138] sm:$0xff]
        %v361 = vld [vmem:[%s249 + $0x140] sm:$0xff]
        %v362 = vld [vmem:[%s249 + $0x148] sm:$0xff]
        %v363 = vld [vmem:[%s249 + $0x150] sm:$0xff]
        %v364 = vld [vmem:[%s249 + $0x158] sm:$0xff]
        %v365 = vld [vmem:[%s249 + $0x160] sm:$0xff]
        %v366 = vld [vmem:[%s249 + $0x168] sm:$0xff]
        %v367 = vld [vmem:[%s249 + $0x170] sm:$0xff]
        %v368 = vld [vmem:[%s249 + $0x178] sm:$0xff]
        %v369 = vld [vmem:[%s249 + $0x180] sm:$0xff]
        %v370 = vld [vmem:[%s249 + $0x188] sm:$0xff]
        %v371 = vld [vmem:[%s249 + $0x190] sm:$0xff]
        %v372 = vld [vmem:[%s249 + $0x198] sm:$0xff]
        %v373 = vld [vmem:[%s249 + $0x1a0] sm:$0xff]
        %v374 = vld [vmem:[%s249 + $0x1a8] sm:$0xff]
        %v375 = vld [vmem:[%s249 + $0x1b0] sm:$0xff]
        %v376 = vld [vmem:[%s249 + $0x1b8] sm:$0xff]
        %v377 = vld [vmem:[%s249 + $0x1c0] sm:$0xff]
        %v378 = vld [vmem:[%s249 + $0x1c8] sm:$0xff]
        %v379 = vld [vmem:[%s249 + $0x1d0] sm:$0xff]
        %v380 = vld [vmem:[%s249 + $0x1d8] sm:$0xff]
        %v381 = vld [vmem:[%s249 + $0x1e0] sm:$0xff]
        %v382 = vld [vmem:[%s249 + $0x1e8] sm:$0xff]
        %v383 = vld [vmem:[%s249 + $0x1f0] sm:$0xff]
        %v384 = vld [vmem:[%s249 + $0x1f8] sm:$0xff]
        %v385 = vld [vmem:[%s249 + $0x200] sm:$0xff]
        %v386 = vld [vmem:[%s249 + $0x208] sm:$0xff]
        %v387 = vld [vmem:[%s249 + $0x210] sm:$0xff]
        %v388 = vld [vmem:[%s249 + $0x218] sm:$0xff]
        %v389 = vld [vmem:[%s249 + $0x220] sm:$0xff]
        %v390 = vld [vmem:[%s249 + $0x228] sm:$0xff]
        %v391 = vld [vmem:[%s249 + $0x230] sm:$0xff]
        %v392 = vld [vmem:[%s249 + $0x238] sm:$0xff]
        %v393 = vld [vmem:[%s249 + $0x240] sm:$0xff]
        %v394 = vld [vmem:[%s249 + $0x248] sm:$0xff]
        %v395 = vld [vmem:[%s249 + $0x250] sm:$0xff]
        %v396 = vld [vmem:[%s249 + $0x258] sm:$0xff]
        %v397 = vld [vmem:[%s249 + $0x260] sm:$0xff]
        %v398 = vld [vmem:[%s249 + $0x268] sm:$0xff]
        %v399 = vld [vmem:[%s249 + $0x270] sm:$0xff]
        %v400 = vld [vmem:[%s249 + $0x278] sm:$0xff]
        %v401 = vld [vmem:[%s249 + $0x280] sm:$0xff]
        %v402 = vld [vmem:[%s249 + $0x288] sm:$0xff]
        %v403 = vld [vmem:[%s249 + $0x290] sm:$0xff]
        %v404 = vld [vmem:[%s249 + $0x298] sm:$0xff]
        %v405 = vld [vmem:[%s249 + $0x2a0] sm:$0xff]
        %v406 = vld [vmem:[%s249 + $0x2a8] sm:$0xff]
        %v407 = vld [vmem:[%s249 + $0x2b0] sm:$0xff]
        %v408 = vld [vmem:[%s249 + $0x2b8] sm:$0xff]
        %v409 = vld [vmem:[%s249 + $0x2c0] sm:$0xff]
        %v410 = vld [vmem:[%s249 + $0x2c8] sm:$0xff]
        %v411 = vld [vmem:[%s249 + $0x2d0] sm:$0xff]
        %v412 = vld [vmem:[%s249 + $0x2d8] sm:$0xff]
        %v413 = vld [vmem:[%s249 + $0x2e0] sm:$0xff]
        %v414 = vld [vmem:[%s249 + $0x2e8] sm:$0xff]
        %v415 = vld [vmem:[%s249 + $0x2f0] sm:$0xff]
        %v416 = vld [vmem:[%s249 + $0x2f8] sm:$0xff]
        %v417 = vld [vmem:[%s249 + $0x300] sm:$0xff]
        %v418 = vld [vmem:[%s249 + $0x308] sm:$0xff]
        %v419 = vld [vmem:[%s249 + $0x310] sm:$0xff]
        %v420 = vld [vmem:[%s249 + $0x318] sm:$0xff]
        %v421 = vld [vmem:[%s249 + $0x320] sm:$0xff]
        %v422 = vld [vmem:[%s249 + $0x328] sm:$0xff]
        %v423 = vld [vmem:[%s249 + $0x330] sm:$0xff]
        %v424 = vld [vmem:[%s249 + $0x338] sm:$0xff]
        %v425 = vld [vmem:[%s249 + $0x340] sm:$0xff]
        %v426 = vld [vmem:[%s249 + $0x348] sm:$0xff]
        %v427 = vld [vmem:[%s249 + $0x350] sm:$0xff]
        %v428 = vld [vmem:[%s249 + $0x358] sm:$0xff]
        %v429 = vld [vmem:[%s249 + $0x360] sm:$0xff]
        %v430 = vld [vmem:[%s249 + $0x368] sm:$0xff]
        %v431 = vld [vmem:[%s249 + $0x370] sm:$0xff]
        %v432 = vld [vmem:[%s249 + $0x378] sm:$0xff]
        %v433 = vld [vmem:[%s249 + $0x380] sm:$0xff]
        %v434 = vld [vmem:[%s249 + $0x388] sm:$0xff]
        %v435 = vld [vmem:[%s249 + $0x390] sm:$0xff]
        %v436 = vld [vmem:[%s249 + $0x398] sm:$0xff]
        %v437 = vld [vmem:[%s249 + $0x3a0] sm:$0xff]
        %v438 = vld [vmem:[%s249 + $0x3a8] sm:$0xff]
        %v439 = vld [vmem:[%s249 + $0x3b0] sm:$0xff]
        %v440 = vld [vmem:[%s249 + $0x3b8] sm:$0xff]
        %v441 = vld [vmem:[%s249 + $0x3c0] sm:$0xff]
        %v442 = vld [vmem:[%s249 + $0x3c8] sm:$0xff]
        %v443 = vld [vmem:[%s249 + $0x3d0] sm:$0xff]
        %v444 = vld [vmem:[%s249 + $0x3d8] sm:$0xff]
        %v445 = vld [vmem:[%s249 + $0x3e0] sm:$0xff]
        %v446 = vld [vmem:[%s249 + $0x3e8] sm:$0xff]
        %v447 = vld [vmem:[%s249 + $0x3f0] sm:$0xff]
        %v448 = vld [vmem:[%s249 + $0x3f8] sm:$0xff]
        %v449 = vld [vmem:[%s249 + $0x400] sm:$0xff]
        %v450 = vld [vmem:[%s249 + $0x408] sm:$0xff]
        %v451 = vld [vmem:[%s249 + $0x410] sm:$0xff]
        %v452 = vld [vmem:[%s249 + $0x418] sm:$0xff]
        %v453 = vld [vmem:[%s249 + $0x420] sm:$0xff]
        %v454 = vld [vmem:[%s249 + $0x428] sm:$0xff]
        %v455 = vld [vmem:[%s249 + $0x430] sm:$0xff]
        %v456 = vld [vmem:[%s249 + $0x438] sm:$0xff]
        %v457 = vld [vmem:[%s249 + $0x440] sm:$0xff]
        %v458 = vld [vmem:[%s249 + $0x448] sm:$0xff]
        %v459 = vld [vmem:[%s249 + $0x450] sm:$0xff]
        %v460 = vld [vmem:[%s249 + $0x458] sm:$0xff]
        %v461 = vld [vmem:[%s249 + $0x460] sm:$0xff]
        %v462 = vld [vmem:[%s249 + $0x468] sm:$0xff]
        %v463 = vld [vmem:[%s249 + $0x470] sm:$0xff]
        %v464 = vld [vmem:[%s249 + $0x478] sm:$0xff]
        %v465 = vld [vmem:[%s249 + $0x480] sm:$0xff]
        %v466 = vld [vmem:[%s249 + $0x488] sm:$0xff]
        %v467 = vld [vmem:[%s249 + $0x490] sm:$0xff]
        %v468 = vld [vmem:[%s249 + $0x498] sm:$0xff]
        %v469 = vld [vmem:[%s249 + $0x4a0] sm:$0xff]
        %v470 = vld [vmem:[%s249 + $0x4a8] sm:$0xff]
        %v471 = vld [vmem:[%s249 + $0x4b0] sm:$0xff]
        %v472 = vld [vmem:[%s249 + $0x4b8] sm:$0xff]
        %v473 = vld [vmem:[%s249 + $0x4c0] sm:$0xff]
        %v474 = vld [vmem:[%s249 + $0x4c8] sm:$0xff]
        %v475 = vld [vmem:[%s249 + $0x4d0] sm:$0xff]
        %v476 = vld [vmem:[%s249 + $0x4d8] sm:$0xff]
        %v477 = vld [vmem:[%s249 + $0x4e0] sm:$0xff]
        %v478 = vld [vmem:[%s249 + $0x4e8] sm:$0xff]
        %v479 = vld [vmem:[%s249 + $0x4f0] sm:$0xff]
        %v480 = vld [vmem:[%s249 + $0x4f8] sm:$0xff]
        %v481 = vld [vmem:[%s249 + $0x500] sm:$0xff]
        %v482 = vld [vmem:[%s249 + $0x508] sm:$0xff]
        %v483 = vld [vmem:[%s249 + $0x510] sm:$0xff]
        %v484 = vld [vmem:[%s249 + $0x518] sm:$0xff]
        %v485 = vld [vmem:[%s249 + $0x520] sm:$0xff]
        %v486 = vld [vmem:[%s249 + $0x528] sm:$0xff]
        %v487 = vld [vmem:[%s249 + $0x530] sm:$0xff]
        %v488 = vld [vmem:[%s249 + $0x538] sm:$0xff]
        %v489 = vld [vmem:[%s249 + $0x540] sm:$0xff]
        %v490 = vld [vmem:[%s249 + $0x548] sm:$0xff]
        %v491 = vld [vmem:[%s249 + $0x550] sm:$0xff]
        %v492 = vld [vmem:[%s249 + $0x558] sm:$0xff]
        %v493 = vld [vmem:[%s249 + $0x560] sm:$0xff]
        %v494 = vld [vmem:[%s249 + $0x568] sm:$0xff]
        %v495 = vld [vmem:[%s249 + $0x570] sm:$0xff]
        %v496 = vld [vmem:[%s249 + $0x578] sm:$0xff]
        %v497 = vld [vmem:[%s249 + $0x580] sm:$0xff]
        %v498 = vld [vmem:[%s249 + $0x588] sm:$0xff]
        %v499 = vld [vmem:[%s249 + $0x590] sm:$0xff]
        %v500 = vld [vmem:[%s249 + $0x598] sm:$0xff]
        %v501 = vld [vmem:[%s249 + $0x5a0] sm:$0xff]
        %v502 = vld [vmem:[%s249 + $0x5a8] sm:$0xff]
        %v503 = vld [vmem:[%s249 + $0x5b0] sm:$0xff]
        %v504 = vld [vmem:[%s249 + $0x5b8] sm:$0xff]
        %v505 = vld [vmem:[%s249 + $0x5c0] sm:$0xff]
        %v506 = vld [vmem:[%s249 + $0x5c8] sm:$0xff]
        %v507 = vld [vmem:[%s249 + $0x5d0] sm:$0xff]
        %v508 = vld [vmem:[%s249 + $0x5d8] sm:$0xff]
        %v509 = vld [vmem:[%s249 + $0x5e0] sm:$0xff]
        %v510 = vld [vmem:[%s249 + $0x5e8] sm:$0xff]
        %v511 = vld [vmem:[%s249 + $0x5f0] sm:$0xff]
        %v512 = vld [vmem:[%s249 + $0x5f8] sm:$0xff]
        %v513 = vld [vmem:[%s249 + $0x600] sm:$0xff]
        %v514 = vld [vmem:[%s249 + $0x608] sm:$0xff]
        %v515 = vld [vmem:[%s249 + $0x610] sm:$0xff]
        %v516 = vld [vmem:[%s249 + $0x618] sm:$0xff]
        %v517 = vld [vmem:[%s249 + $0x620] sm:$0xff]
        %v518 = vld [vmem:[%s249 + $0x628] sm:$0xff]
        %v519 = vld [vmem:[%s249 + $0x630] sm:$0xff]
        %v520 = vld [vmem:[%s249 + $0x638] sm:$0xff]
        %v521 = vld [vmem:[%s249 + $0x640] sm:$0xff]
        %v522 = vld [vmem:[%s249 + $0x648] sm:$0xff]
        %v523 = vld [vmem:[%s249 + $0x650] sm:$0xff]
        %v524 = vld [vmem:[%s249 + $0x658] sm:$0xff]
        %v525 = vld [vmem:[%s249 + $0x660] sm:$0xff]
        %v526 = vld [vmem:[%s249 + $0x668] sm:$0xff]
        %v527 = vld [vmem:[%s249 + $0x670] sm:$0xff]
        %v528 = vld [vmem:[%s249 + $0x678] sm:$0xff]
        %v529 = vld [vmem:[%s249 + $0x680] sm:$0xff]
        %v530 = vld [vmem:[%s249 + $0x688] sm:$0xff]
        %v531 = vld [vmem:[%s249 + $0x690] sm:$0xff]
        %v532 = vld [vmem:[%s249 + $0x698] sm:$0xff]
        %v533 = vld [vmem:[%s249 + $0x6a0] sm:$0xff]
        %v534 = vld [vmem:[%s249 + $0x6a8] sm:$0xff]
        %v535 = vld [vmem:[%s249 + $0x6b0] sm:$0xff]
        %v536 = vld [vmem:[%s249 + $0x6b8] sm:$0xff]
        %v537 = vld [vmem:[%s249 + $0x6c0] sm:$0xff]
        %v538 = vld [vmem:[%s249 + $0x6c8] sm:$0xff]
        %v539 = vld [vmem:[%s249 + $0x6d0] sm:$0xff]
        %v540 = vld [vmem:[%s249 + $0x6d8] sm:$0xff]
        %v541 = vld [vmem:[%s249 + $0x6e0] sm:$0xff]
        %v542 = vld [vmem:[%s249 + $0x6e8] sm:$0xff]
        %v543 = vld [vmem:[%s249 + $0x6f0] sm:$0xff]
        %v544 = vld [vmem:[%s249 + $0x6f8] sm:$0xff]
        %v545 = vld [vmem:[%s249 + $0x700] sm:$0xff]
        %v546 = vld [vmem:[%s249 + $0x708] sm:$0xff]
        %v547 = vld [vmem:[%s249 + $0x710] sm:$0xff]
        %v548 = vld [vmem:[%s249 + $0x718] sm:$0xff]
        %v549 = vld [vmem:[%s249 + $0x720] sm:$0xff]
        %v550 = vld [vmem:[%s249 + $0x728] sm:$0xff]
        %v551 = vld [vmem:[%s249 + $0x730] sm:$0xff]
        %v552 = vld [vmem:[%s249 + $0x738] sm:$0xff]
        %v553 = vld [vmem:[%s249 + $0x740] sm:$0xff]
        %v554 = vld [vmem:[%s249 + $0x748] sm:$0xff]
        %v555 = vld [vmem:[%s249 + $0x750] sm:$0xff]
        %v556 = vld [vmem:[%s249 + $0x758] sm:$0xff]
        %v557 = vld [vmem:[%s249 + $0x760] sm:$0xff]
        %v558 = vld [vmem:[%s249 + $0x768] sm:$0xff]
        %v559 = vld [vmem:[%s249 + $0x770] sm:$0xff]
        %v560 = vld [vmem:[%s249 + $0x778] sm:$0xff]
        %v561 = vld [vmem:[%s249 + $0x780] sm:$0xff]
        %v562 = vld [vmem:[%s249 + $0x788] sm:$0xff]
        %v563 = vld [vmem:[%s249 + $0x790] sm:$0xff]
        %v564 = vld [vmem:[%s249 + $0x798] sm:$0xff]
        %v565 = vld [vmem:[%s249 + $0x7a0] sm:$0xff]
        %v566 = vld [vmem:[%s249 + $0x7a8] sm:$0xff]
        %v567 = vld [vmem:[%s249 + $0x7b0] sm:$0xff]
        %v568 = vld [vmem:[%s249 + $0x7b8] sm:$0xff]
        %v569 = vld [vmem:[%s249 + $0x7c0] sm:$0xff]
        %v570 = vld [vmem:[%s249 + $0x7c8] sm:$0xff]
        %v571 = vld [vmem:[%s249 + $0x7d0] sm:$0xff]
        %v572 = vld [vmem:[%s249 + $0x7d8] sm:$0xff]
        %v573 = vld [vmem:[%s249 + $0x7e0] sm:$0xff]
        %v574 = vld [vmem:[%s249 + $0x7e8] sm:$0xff]
        %v575 = vld [vmem:[%s249 + $0x7f0] sm:$0xff]
        %v576 = vld [vmem:[%s249 + $0x7f8] sm:$0xff]
        %v577 = vld [vmem:[%s249 + $0x800] sm:$0xff]
        %v578 = vld [vmem:[%s249 + $0x808] sm:$0xff]
        %v579 = vld [vmem:[%s249 + $0x810] sm:$0xff]
        %v580 = vld [vmem:[%s249 + $0x818] sm:$0xff]
        %v581 = vld [vmem:[%s249 + $0x820] sm:$0xff]
        %v582 = vld [vmem:[%s249 + $0x828] sm:$0xff]
        %v583 = vld [vmem:[%s249 + $0x830] sm:$0xff]
        %v584 = vld [vmem:[%s249 + $0x838] sm:$0xff]
        %v585 = vld [vmem:[%s249 + $0x840] sm:$0xff]
        %v586 = vld [vmem:[%s249 + $0x848] sm:$0xff]
        %v587 = vld [vmem:[%s249 + $0x850] sm:$0xff]
        %v588 = vld [vmem:[%s249 + $0x858] sm:$0xff]
        %v589 = vld [vmem:[%s249 + $0x860] sm:$0xff]
        %v590 = vld [vmem:[%s249 + $0x868] sm:$0xff]
        %v591 = vld [vmem:[%s249 + $0x870] sm:$0xff]
        %v592 = vld [vmem:[%s249 + $0x878] sm:$0xff]
        %v593 = vld [vmem:[%s249 + $0x880] sm:$0xff]
        %v594 = vld [vmem:[%s249 + $0x888] sm:$0xff]
        %v595 = vld [vmem:[%s249 + $0x890] sm:$0xff]
        %v596 = vld [vmem:[%s249 + $0x898] sm:$0xff]
        %v597 = vld [vmem:[%s249 + $0x8a0] sm:$0xff]
        %v598 = vld [vmem:[%s249 + $0x8a8] sm:$0xff]
        %v599 = vld [vmem:[%s249 + $0x8b0] sm:$0xff]
        %v600 = vld [vmem:[%s249 + $0x8b8] sm:$0xff]
        %v601 = vld [vmem:[%s249 + $0x8c0] sm:$0xff]
        %v602 = vld [vmem:[%s249 + $0x8c8] sm:$0xff]
        %v603 = vld [vmem:[%s249 + $0x8d0] sm:$0xff]
        %v604 = vld [vmem:[%s249 + $0x8d8] sm:$0xff]
        %v605 = vld [vmem:[%s249 + $0x8e0] sm:$0xff]
        %v606 = vld [vmem:[%s249 + $0x8e8] sm:$0xff]
        %v607 = vld [vmem:[%s249 + $0x8f0] sm:$0xff]
        %v608 = vld [vmem:[%s249 + $0x8f8] sm:$0xff]
        %v609 = vld [vmem:[%s249 + $0x900] sm:$0xff]
        %v610 = vld [vmem:[%s249 + $0x908] sm:$0xff]
        %v611 = vld [vmem:[%s249 + $0x910] sm:$0xff]
        %v612 = vld [vmem:[%s249 + $0x918] sm:$0xff]
        %v613 = vld [vmem:[%s249 + $0x920] sm:$0xff]
        %v614 = vld [vmem:[%s249 + $0x928] sm:$0xff]
        %v615 = vld [vmem:[%s249 + $0x930] sm:$0xff]
        %v616 = vld [vmem:[%s249 + $0x938] sm:$0xff]
        %v617 = vld [vmem:[%s249 + $0x940] sm:$0xff]
        %v618 = vld [vmem:[%s249 + $0x948] sm:$0xff]
        %v619 = vld [vmem:[%s249 + $0x950] sm:$0xff]
        %v620 = vld [vmem:[%s249 + $0x958] sm:$0xff]
        %v621 = vld [vmem:[%s249 + $0x960] sm:$0xff]
        %v622 = vld [vmem:[%s249 + $0x968] sm:$0xff]
        %v623 = vld [vmem:[%s249 + $0x970] sm:$0xff]
        %v624 = vld [vmem:[%s249 + $0x978] sm:$0xff]
        %v625 = vld [vmem:[%s249 + $0x980] sm:$0xff]
        %v626 = vld [vmem:[%s249 + $0x988] sm:$0xff]
        %v627 = vld [vmem:[%s249 + $0x990] sm:$0xff]
        %v628 = vld [vmem:[%s249 + $0x998] sm:$0xff]
        %v629 = vld [vmem:[%s249 + $0x9a0] sm:$0xff]
        %v630 = vld [vmem:[%s249 + $0x9a8] sm:$0xff]
        %v631 = vld [vmem:[%s249 + $0x9b0] sm:$0xff]
        %v632 = vld [vmem:[%s249 + $0x9b8] sm:$0xff]
        %v633 = vld [vmem:[%s249 + $0x9c0] sm:$0xff]
        %v634 = vld [vmem:[%s249 + $0x9c8] sm:$0xff]
        %v635 = vld [vmem:[%s249 + $0x9d0] sm:$0xff]
        %v636 = vld [vmem:[%s249 + $0x9d8] sm:$0xff]
        %v637 = vld [vmem:[%s249 + $0x9e0] sm:$0xff]
        %v638 = vld [vmem:[%s249 + $0x9e8] sm:$0xff]
        %v639 = vld [vmem:[%s249 + $0x9f0] sm:$0xff]
        %v640 = vld [vmem:[%s249 + $0x9f8] sm:$0xff]
        %v641 = vld [vmem:[%s249 + $0xa00] sm:$0xff]
        %v642 = vld [vmem:[%s249 + $0xa08] sm:$0xff]
        %v643 = vld [vmem:[%s249 + $0xa10] sm:$0xff]
        %v644 = vld [vmem:[%s249 + $0xa18] sm:$0xff]
        %v645 = vld [vmem:[%s249 + $0xa20] sm:$0xff]
        %v646 = vld [vmem:[%s249 + $0xa28] sm:$0xff]
        %v647 = vld [vmem:[%s249 + $0xa30] sm:$0xff]
        %v648 = vld [vmem:[%s249 + $0xa38] sm:$0xff]
        %v649 = vld [vmem:[%s249 + $0xa40] sm:$0xff]
        %v650 = vld [vmem:[%s249 + $0xa48] sm:$0xff]
        %v651 = vld [vmem:[%s249 + $0xa50] sm:$0xff]
        %v652 = vld [vmem:[%s249 + $0xa58] sm:$0xff]
        %v653 = vld [vmem:[%s249 + $0xa60] sm:$0xff]
        %v654 = vld [vmem:[%s249 + $0xa68] sm:$0xff]
        %v655 = vld [vmem:[%s249 + $0xa70] sm:$0xff]
        %v656 = vld [vmem:[%s249 + $0xa78] sm:$0xff]
        %v657 = vld [vmem:[%s249 + $0xa80] sm:$0xff]
        %v658 = vld [vmem:[%s249 + $0xa88] sm:$0xff]
        %v659 = vld [vmem:[%s249 + $0xa90] sm:$0xff]
        %v660 = vld [vmem:[%s249 + $0xa98] sm:$0xff]
        %v661 = vld [vmem:[%s249 + $0xaa0] sm:$0xff]
        %v662 = vld [vmem:[%s249 + $0xaa8] sm:$0xff]
        %v663 = vld [vmem:[%s249 + $0xab0] sm:$0xff]
        %v664 = vld [vmem:[%s249 + $0xab8] sm:$0xff]
        %v665 = vld [vmem:[%s249 + $0xac0] sm:$0xff]
        %v666 = vld [vmem:[%s249 + $0xac8] sm:$0xff]
        %v667 = vld [vmem:[%s249 + $0xad0] sm:$0xff]
        %v668 = vld [vmem:[%s249 + $0xad8] sm:$0xff]
        %v669 = vld [vmem:[%s249 + $0xae0] sm:$0xff]
        %v670 = vld [vmem:[%s249 + $0xae8] sm:$0xff]
        %v671 = vld [vmem:[%s249 + $0xaf0] sm:$0xff]
        %v672 = vld [vmem:[%s249 + $0xaf8] sm:$0xff]
        %v673 = vld [vmem:[%s249 + $0xb00] sm:$0xff]
        %v674 = vld [vmem:[%s249 + $0xb08] sm:$0xff]
        %v675 = vld [vmem:[%s249 + $0xb10] sm:$0xff]
        %v676 = vld [vmem:[%s249 + $0xb18] sm:$0xff]
        %v677 = vld [vmem:[%s249 + $0xb20] sm:$0xff]
        %v678 = vld [vmem:[%s249 + $0xb28] sm:$0xff]
        %v679 = vld [vmem:[%s249 + $0xb30] sm:$0xff]
        %v680 = vld [vmem:[%s249 + $0xb38] sm:$0xff]
        %v681 = vld [vmem:[%s249 + $0xb40] sm:$0xff]
        %v682 = vld [vmem:[%s249 + $0xb48] sm:$0xff]
        %v683 = vld [vmem:[%s249 + $0xb50] sm:$0xff]
        %v684 = vld [vmem:[%s249 + $0xb58] sm:$0xff]
        %v685 = vld [vmem:[%s249 + $0xb60] sm:$0xff]
        %v686 = vld [vmem:[%s249 + $0xb68] sm:$0xff]
        %v687 = vld [vmem:[%s249 + $0xb70] sm:$0xff]
        %v688 = vld [vmem:[%s249 + $0xb78] sm:$0xff]
        %v689 = vld [vmem:[%s249 + $0xb80] sm:$0xff]
        %v690 = vld [vmem:[%s249 + $0xb88] sm:$0xff]
        %v691 = vld [vmem:[%s249 + $0xb90] sm:$0xff]
        %v692 = vld [vmem:[%s249 + $0xb98] sm:$0xff]
        %v693 = vld [vmem:[%s249 + $0xba0] sm:$0xff]
        %v694 = vld [vmem:[%s249 + $0xba8] sm:$0xff]
        %v695 = vld [vmem:[%s249 + $0xbb0] sm:$0xff]
        %v696 = vld [vmem:[%s249 + $0xbb8] sm:$0xff]
        %v697 = vld [vmem:[%s249 + $0xbc0] sm:$0xff]
        %v698 = vld [vmem:[%s249 + $0xbc8] sm:$0xff]
        %v699 = vld [vmem:[%s249 + $0xbd0] sm:$0xff]
        %v700 = vld [vmem:[%s249 + $0xbd8] sm:$0xff]
        %v701 = vld [vmem:[%s249 + $0xbe0] sm:$0xff]
        %v702 = vld [vmem:[%s249 + $0xbe8] sm:$0xff]
        %v703 = vld [vmem:[%s249 + $0xbf0] sm:$0xff]
        %v704 = vld [vmem:[%s249 + $0xbf8] sm:$0xff]
        %v705 = vld [vmem:[%s249 + $0xc00] sm:$0xff]
        %v706 = vld [vmem:[%s249 + $0xc08] sm:$0xff]
        %v707 = vld [vmem:[%s249 + $0xc10] sm:$0xff]
        %v708 = vld [vmem:[%s249 + $0xc18] sm:$0xff]
        %v709 = vld [vmem:[%s249 + $0xc20] sm:$0xff]
        %v710 = vld [vmem:[%s249 + $0xc28] sm:$0xff]
        %v711 = vld [vmem:[%s249 + $0xc30] sm:$0xff]
        %v712 = vld [vmem:[%s249 + $0xc38] sm:$0xff]
        %v713 = vld [vmem:[%s249 + $0xc40] sm:$0xff]
        %v714 = vld [vmem:[%s249 + $0xc48] sm:$0xff]
        %v715 = vld [vmem:[%s249 + $0xc50] sm:$0xff]
        %v716 = vld [vmem:[%s249 + $0xc58] sm:$0xff]
        %v717 = vld [vmem:[%s249 + $0xc60] sm:$0xff]
        %v718 = vld [vmem:[%s249 + $0xc68] sm:$0xff]
        %v719 = vld [vmem:[%s249 + $0xc70] sm:$0xff]
        %v720 = vld [vmem:[%s249 + $0xc78] sm:$0xff]
        %v721 = vld [vmem:[%s249 + $0xc80] sm:$0xff]
        %v722 = vld [vmem:[%s249 + $0xc88] sm:$0xff]
        %v723 = vld [vmem:[%s249 + $0xc90] sm:$0xff]
        %v724 = vld [vmem:[%s249 + $0xc98] sm:$0xff]
        %v725 = vld [vmem:[%s249 + $0xca0] sm:$0xff]
        %v726 = vld [vmem:[%s249 + $0xca8] sm:$0xff]
        %v727 = vld [vmem:[%s249 + $0xcb0] sm:$0xff]
        %v728 = vld [vmem:[%s249 + $0xcb8] sm:$0xff]
        %v729 = vld [vmem:[%s249 + $0xcc0] sm:$0xff]
        %v730 = vld [vmem:[%s249 + $0xcc8] sm:$0xff]
        %v731 = vld [vmem:[%s249 + $0xcd0] sm:$0xff]
        %v732 = vld [vmem:[%s249 + $0xcd8] sm:$0xff]
        %v733 = vld [vmem:[%s249 + $0xce0] sm:$0xff]
        %v734 = vld [vmem:[%s249 + $0xce8] sm:$0xff]
        %v735 = vld [vmem:[%s249 + $0xcf0] sm:$0xff]
        %v736 = vld [vmem:[%s249 + $0xcf8] sm:$0xff]
        %v737 = vld [vmem:[%s249 + $0xd00] sm:$0xff]
        %v738 = vld [vmem:[%s249 + $0xd08] sm:$0xff]
        %v739 = vld [vmem:[%s249 + $0xd10] sm:$0xff]
        %v740 = vld [vmem:[%s249 + $0xd18] sm:$0xff]
        %v741 = vld [vmem:[%s249 + $0xd20] sm:$0xff]
        %v742 = vld [vmem:[%s249 + $0xd28] sm:$0xff]
        %v743 = vld [vmem:[%s249 + $0xd30] sm:$0xff]
        %v744 = vld [vmem:[%s249 + $0xd38] sm:$0xff]
        %v745 = vld [vmem:[%s249 + $0xd40] sm:$0xff]
        %v746 = vld [vmem:[%s249 + $0xd48] sm:$0xff]
        %v747 = vld [vmem:[%s249 + $0xd50] sm:$0xff]
        %v748 = vld [vmem:[%s249 + $0xd58] sm:$0xff]
        %v749 = vld [vmem:[%s249 + $0xd60] sm:$0xff]
        %v750 = vld [vmem:[%s249 + $0xd68] sm:$0xff]
        %v751 = vld [vmem:[%s249 + $0xd70] sm:$0xff]
        %v752 = vld [vmem:[%s249 + $0xd78] sm:$0xff]
        %v753 = vld [vmem:[%s249 + $0xd80] sm:$0xff]
        %v754 = vld [vmem:[%s249 + $0xd88] sm:$0xff]
        %v755 = vld [vmem:[%s249 + $0xd90] sm:$0xff]
        %v756 = vld [vmem:[%s249 + $0xd98] sm:$0xff]
        %v757 = vld [vmem:[%s249 + $0xda0] sm:$0xff]
        %v758 = vld [vmem:[%s249 + $0xda8] sm:$0xff]
        %v759 = vld [vmem:[%s249 + $0xdb0] sm:$0xff]
        %v760 = vld [vmem:[%s249 + $0xdb8] sm:$0xff]
        %v761 = vld [vmem:[%s249 + $0xdc0] sm:$0xff]
        %v762 = vld [vmem:[%s249 + $0xdc8] sm:$0xff]
        %v763 = vld [vmem:[%s249 + $0xdd0] sm:$0xff]
        %v764 = vld [vmem:[%s249 + $0xdd8] sm:$0xff]
        %v765 = vld [vmem:[%s249 + $0xde0] sm:$0xff]
        %v766 = vld [vmem:[%s249 + $0xde8] sm:$0xff]
        %v767 = vld [vmem:[%s249 + $0xdf0] sm:$0xff]
        %v768 = vld [vmem:[%s249 + $0xdf8] sm:$0xff]
        %v769 = vld [vmem:[%s249 + $0xe00] sm:$0xff]
        %v770 = vld [vmem:[%s249 + $0xe08] sm:$0xff]
        %v771 = vld [vmem:[%s249 + $0xe10] sm:$0xff]
        %v772 = vld [vmem:[%s249 + $0xe18] sm:$0xff]
        %v773 = vld [vmem:[%s249 + $0xe20] sm:$0xff]
        %v774 = vld [vmem:[%s249 + $0xe28] sm:$0xff]
        %v775 = vld [vmem:[%s249 + $0xe30] sm:$0xff]
        %v776 = vld [vmem:[%s249 + $0xe38] sm:$0xff]
        %v777 = vld [vmem:[%s249 + $0xe40] sm:$0xff]
        %v778 = vld [vmem:[%s249 + $0xe48] sm:$0xff]
        %v779 = vld [vmem:[%s249 + $0xe50] sm:$0xff]
        %v780 = vld [vmem:[%s249 + $0xe58] sm:$0xff]
        %v781 = vld [vmem:[%s249 + $0xe60] sm:$0xff]
        %v782 = vld [vmem:[%s249 + $0xe68] sm:$0xff]
        %v783 = vld [vmem:[%s249 + $0xe70] sm:$0xff]
        %v784 = vld [vmem:[%s249 + $0xe78] sm:$0xff]
        %v785 = vld [vmem:[%s249 + $0xe80] sm:$0xff]
        %v786 = vld [vmem:[%s249 + $0xe88] sm:$0xff]
        %v787 = vld [vmem:[%s249 + $0xe90] sm:$0xff]
        %v788 = vld [vmem:[%s249 + $0xe98] sm:$0xff]
        %v789 = vld [vmem:[%s249 + $0xea0] sm:$0xff]
        %v790 = vld [vmem:[%s249 + $0xea8] sm:$0xff]
        %v791 = vld [vmem:[%s249 + $0xeb0] sm:$0xff]
        %v792 = vld [vmem:[%s249 + $0xeb8] sm:$0xff]
        %v793 = vld [vmem:[%s249 + $0xec0] sm:$0xff]
        %v794 = vld [vmem:[%s249 + $0xec8] sm:$0xff]
        %v795 = vld [vmem:[%s249 + $0xed0] sm:$0xff]
        %v796 = vld [vmem:[%s249 + $0xed8] sm:$0xff]
        %v797 = vld [vmem:[%s249 + $0xee0] sm:$0xff]
        %v798 = vld [vmem:[%s249 + $0xee8] sm:$0xff]
        %v799 = vld [vmem:[%s249 + $0xef0] sm:$0xff]
        %v800 = vld [vmem:[%s249 + $0xef8] sm:$0xff]
        %v801 = vld [vmem:[%s249 + $0xf00] sm:$0xff]
        %v802 = vld [vmem:[%s249 + $0xf08] sm:$0xff]
        %v803 = vld [vmem:[%s249 + $0xf10] sm:$0xff]
        %v804 = vld [vmem:[%s249 + $0xf18] sm:$0xff]
        %v805 = vld [vmem:[%s249 + $0xf20] sm:$0xff]
        %v806 = vld [vmem:[%s249 + $0xf28] sm:$0xff]
        %v807 = vld [vmem:[%s249 + $0xf30] sm:$0xff]
        %v808 = vld [vmem:[%s249 + $0xf38] sm:$0xff]
        %v809 = vld [vmem:[%s249 + $0xf40] sm:$0xff]
        %v810 = vld [vmem:[%s249 + $0xf48] sm:$0xff]
        %v811 = vld [vmem:[%s249 + $0xf50] sm:$0xff]
        %v812 = vld [vmem:[%s249 + $0xf58] sm:$0xff]
        %v813 = vld [vmem:[%s249 + $0xf60] sm:$0xff]
        %v814 = vld [vmem:[%s249 + $0xf68] sm:$0xff]
        %v815 = vld [vmem:[%s249 + $0xf70] sm:$0xff]
        %v816 = vld [vmem:[%s249 + $0xf78] sm:$0xff]
        %v817 = vld [vmem:[%s249 + $0xf80] sm:$0xff]
        %v818 = vld [vmem:[%s249 + $0xf88] sm:$0xff]
        %v819 = vld [vmem:[%s249 + $0xf90] sm:$0xff]
        %v820 = vld [vmem:[%s249 + $0xf98] sm:$0xff]
        %v821 = vld [vmem:[%s249 + $0xfa0] sm:$0xff]
        %v822 = vld [vmem:[%s249 + $0xfa8] sm:$0xff]
        %v823 = vld [vmem:[%s249 + $0xfb0] sm:$0xff]
        %v824 = vld [vmem:[%s249 + $0xfb8] sm:$0xff]
        %v825 = vld [vmem:[%s249 + $0xfc0] sm:$0xff]
        %v826 = vld [vmem:[%s249 + $0xfc8] sm:$0xff]
        %v827 = vld [vmem:[%s249 + $0xfd0] sm:$0xff]
        %v828 = vld [vmem:[%s249 + $0xfd8] sm:$0xff]
        %v829 = vld [vmem:[%s249 + $0xfe0] sm:$0xff]
        %v830 = vld [vmem:[%s249 + $0xfe8] sm:$0xff]
        %v831 = vld [vmem:[%s249 + $0xff0] sm:$0xff]
        %v832 = vld [vmem:[%s249 + $0xff8] sm:$0xff]
        %v833 = vld [vmem:[%s249 + $0x1000] sm:$0xff]
        %v834 = vld [vmem:[%s249 + $0x1008] sm:$0xff]
        %v835 = vld [vmem:[%s249 + $0x1010] sm:$0xff]
        %v836 = vld [vmem:[%s249 + $0x1018] sm:$0xff]
        %v837 = vld [vmem:[%s249 + $0x1020] sm:$0xff]
        %v838 = vld [vmem:[%s249 + $0x1028] sm:$0xff]
        %v839 = vld [vmem:[%s249 + $0x1030] sm:$0xff]
        %v840 = vld [vmem:[%s249 + $0x1038] sm:$0xff]
        %v841 = vld [vmem:[%s249 + $0x1040] sm:$0xff]
        %v842 = vld [vmem:[%s249 + $0x1048] sm:$0xff]
        %v843 = vld [vmem:[%s249 + $0x1050] sm:$0xff]
        %v844 = vld [vmem:[%s249 + $0x1058] sm:$0xff]
        %v845 = vld [vmem:[%s249 + $0x1060] sm:$0xff]
        %v846 = vld [vmem:[%s249 + $0x1068] sm:$0xff]
        %v847 = vld [vmem:[%s249 + $0x1070] sm:$0xff]
        %v848 = vld [vmem:[%s249 + $0x1078] sm:$0xff]
        %v849 = vld [vmem:[%s249 + $0x1080] sm:$0xff]
        %v850 = vld [vmem:[%s249 + $0x1088] sm:$0xff]
        %v851 = vld [vmem:[%s249 + $0x1090] sm:$0xff]
        %v852 = vld [vmem:[%s249 + $0x1098] sm:$0xff]
        %v853 = vld [vmem:[%s249 + $0x10a0] sm:$0xff]
        %v854 = vld [vmem:[%s249 + $0x10a8] sm:$0xff]
        %v855 = vld [vmem:[%s249 + $0x10b0] sm:$0xff]
        %v856 = vld [vmem:[%s249 + $0x10b8] sm:$0xff]
        %v857 = vld [vmem:[%s249 + $0x10c0] sm:$0xff]
        %v858 = vld [vmem:[%s249 + $0x10c8] sm:$0xff]
        %v859 = vld [vmem:[%s249 + $0x10d0] sm:$0xff]
        %v860 = vld [vmem:[%s249 + $0x10d8] sm:$0xff]
        %v861 = vld [vmem:[%s249 + $0x10e0] sm:$0xff]
        %v862 = vld [vmem:[%s249 + $0x10e8] sm:$0xff]
        %v863 = vld [vmem:[%s249 + $0x10f0] sm:$0xff]
        %v864 = vld [vmem:[%s249 + $0x10f8] sm:$0xff]
        %v865 = vld [vmem:[%s249 + $0x1100] sm:$0xff]
        %v866 = vld [vmem:[%s249 + $0x1108] sm:$0xff]
        %v867 = vld [vmem:[%s249 + $0x1110] sm:$0xff]
        %v868 = vld [vmem:[%s249 + $0x1118] sm:$0xff]
        %v869 = vld [vmem:[%s249 + $0x1120] sm:$0xff]
        %v870 = vld [vmem:[%s249 + $0x1128] sm:$0xff]
        %v871 = vld [vmem:[%s249 + $0x1130] sm:$0xff]
        %v872 = vld [vmem:[%s249 + $0x1138] sm:$0xff]
        %v873 = vld [vmem:[%s249 + $0x1140] sm:$0xff]
        %v874 = vld [vmem:[%s249 + $0x1148] sm:$0xff]
        %v875 = vld [vmem:[%s249 + $0x1150] sm:$0xff]
        %v876 = vld [vmem:[%s249 + $0x1158] sm:$0xff]
        %v877 = vld [vmem:[%s249 + $0x1160] sm:$0xff]
        %v878 = vld [vmem:[%s249 + $0x1168] sm:$0xff]
        %v879 = vld [vmem:[%s249 + $0x1170] sm:$0xff]
        %v880 = vld [vmem:[%s249 + $0x1178] sm:$0xff]
        %v881 = vld [vmem:[%s249 + $0x1180] sm:$0xff]
        %v882 = vld [vmem:[%s249 + $0x1188] sm:$0xff]
        %v883 = vld [vmem:[%s249 + $0x1190] sm:$0xff]
        %v884 = vld [vmem:[%s249 + $0x1198] sm:$0xff]
        %v885 = vld [vmem:[%s249 + $0x11a0] sm:$0xff]
        %v886 = vld [vmem:[%s249 + $0x11a8] sm:$0xff]
        %v887 = vld [vmem:[%s249 + $0x11b0] sm:$0xff]
        %v888 = vld [vmem:[%s249 + $0x11b8] sm:$0xff]
        %v889 = vld [vmem:[%s249 + $0x11c0] sm:$0xff]
        %v890 = vld [vmem:[%s249 + $0x11c8] sm:$0xff]
        %v891 = vld [vmem:[%s249 + $0x11d0] sm:$0xff]
        %v892 = vld [vmem:[%s249 + $0x11d8] sm:$0xff]
        %v893 = vld [vmem:[%s249 + $0x11e0] sm:$0xff]
        %v894 = vld [vmem:[%s249 + $0x11e8] sm:$0xff]
        %v895 = vld [vmem:[%s249 + $0x11f0] sm:$0xff]
        %v896 = vld [vmem:[%s249 + $0x11f8] sm:$0xff]
        %v897 = vld [vmem:[%s249 + $0x1200] sm:$0xff]
        %v898 = vld [vmem:[%s249 + $0x1208] sm:$0xff]
        %v899 = vld [vmem:[%s249 + $0x1210] sm:$0xff]
        %v900 = vld [vmem:[%s249 + $0x1218] sm:$0xff]
        %v901 = vld [vmem:[%s249 + $0x1220] sm:$0xff]
        %v902 = vld [vmem:[%s249 + $0x1228] sm:$0xff]
        %v903 = vld [vmem:[%s249 + $0x1230] sm:$0xff]
        %v904 = vld [vmem:[%s249 + $0x1238] sm:$0xff]
        %v905 = vld [vmem:[%s249 + $0x1240] sm:$0xff]
        %v906 = vld [vmem:[%s249 + $0x1248] sm:$0xff]
        %v907 = vld [vmem:[%s249 + $0x1250] sm:$0xff]
        %v908 = vld [vmem:[%s249 + $0x1258] sm:$0xff]
        %v909 = vld [vmem:[%s249 + $0x1260] sm:$0xff]
        %v910 = vld [vmem:[%s249 + $0x1268] sm:$0xff]
        %v911 = vld [vmem:[%s249 + $0x1270] sm:$0xff]
        %v912 = vld [vmem:[%s249 + $0x1278] sm:$0xff]
        %v913 = vld [vmem:[%s249 + $0x1280] sm:$0xff]
        %v914 = vld [vmem:[%s249 + $0x1288] sm:$0xff]
        %v915 = vld [vmem:[%s249 + $0x1290] sm:$0xff]
        %v916 = vld [vmem:[%s249 + $0x1298] sm:$0xff]
        %v917 = vld [vmem:[%s249 + $0x12a0] sm:$0xff]
        %v918 = vld [vmem:[%s249 + $0x12a8] sm:$0xff]
        %v919 = vld [vmem:[%s249 + $0x12b0] sm:$0xff]
        %v920 = vld [vmem:[%s249 + $0x12b8] sm:$0xff]
        %v921 = vld [vmem:[%s249 + $0x12c0] sm:$0xff]
        %v922 = vld [vmem:[%s249 + $0x12c8] sm:$0xff]
        %v923 = vld [vmem:[%s249 + $0x12d0] sm:$0xff]
        %v924 = vld [vmem:[%s249 + $0x12d8] sm:$0xff]
        %v925 = vld [vmem:[%s249 + $0x12e0] sm:$0xff]
        %v926 = vld [vmem:[%s249 + $0x12e8] sm:$0xff]
        %v927 = vld [vmem:[%s249 + $0x12f0] sm:$0xff]
        %v928 = vld [vmem:[%s249 + $0x12f8] sm:$0xff]
        %v929 = vld [vmem:[%s249 + $0x1300] sm:$0xff]
        %v930 = vld [vmem:[%s249 + $0x1308] sm:$0xff]
        %v931 = vld [vmem:[%s249 + $0x1310] sm:$0xff]
        %v932 = vld [vmem:[%s249 + $0x1318] sm:$0xff]
        %v933 = vld [vmem:[%s249 + $0x1320] sm:$0xff]
        %v934 = vld [vmem:[%s249 + $0x1328] sm:$0xff]
        %v935 = vld [vmem:[%s249 + $0x1330] sm:$0xff]
        %v936 = vld [vmem:[%s249 + $0x1338] sm:$0xff]
        %v937 = vld [vmem:[%s249 + $0x1340] sm:$0xff]
        %v938 = vld [vmem:[%s249 + $0x1348] sm:$0xff]
        %v939 = vld [vmem:[%s249 + $0x1350] sm:$0xff]
        %v940 = vld [vmem:[%s249 + $0x1358] sm:$0xff]
        %v941 = vld [vmem:[%s249 + $0x1360] sm:$0xff]
        %v942 = vld [vmem:[%s249 + $0x1368] sm:$0xff]
        %v943 = vld [vmem:[%s249 + $0x1370] sm:$0xff]
        %v944 = vld [vmem:[%s249 + $0x1378] sm:$0xff]
        %v945 = vld [vmem:[%s249 + $0x1380] sm:$0xff]
        %v946 = vld [vmem:[%s249 + $0x1388] sm:$0xff]
        %v947 = vld [vmem:[%s249 + $0x1390] sm:$0xff]
        %v948 = vld [vmem:[%s249 + $0x1398] sm:$0xff]
        %v949 = vld [vmem:[%s249 + $0x13a0] sm:$0xff]
        %v950 = vld [vmem:[%s249 + $0x13a8] sm:$0xff]
        %v951 = vld [vmem:[%s249 + $0x13b0] sm:$0xff]
        %v952 = vld [vmem:[%s249 + $0x13b8] sm:$0xff]
        %v953 = vld [vmem:[%s249 + $0x13c0] sm:$0xff]
        %v954 = vld [vmem:[%s249 + $0x13c8] sm:$0xff]
        %v955 = vld [vmem:[%s249 + $0x13d0] sm:$0xff]
        %v956 = vld [vmem:[%s249 + $0x13d8] sm:$0xff]
        %v957 = vld [vmem:[%s249 + $0x13e0] sm:$0xff]
        %v958 = vld [vmem:[%s249 + $0x13e8] sm:$0xff]
        %v959 = vld [vmem:[%s249 + $0x13f0] sm:$0xff]
        %v960 = vld [vmem:[%s249 + $0x13f8] sm:$0xff]
        %v961 = vld [vmem:[%s249 + $0x1400] sm:$0xff]
        %v962 = vld [vmem:[%s249 + $0x1408] sm:$0xff]
        %v963 = vld [vmem:[%s249 + $0x1410] sm:$0xff]
        %v964 = vld [vmem:[%s249 + $0x1418] sm:$0xff]
        %v965 = vld [vmem:[%s249 + $0x1420] sm:$0xff]
        %v966 = vld [vmem:[%s249 + $0x1428] sm:$0xff]
        %v967 = vld [vmem:[%s249 + $0x1430] sm:$0xff]
        %v968 = vld [vmem:[%s249 + $0x1438] sm:$0xff]
        %v969 = vld [vmem:[%s249 + $0x1440] sm:$0xff]
        %v970 = vld [vmem:[%s249 + $0x1448] sm:$0xff]
        %v971 = vld [vmem:[%s249 + $0x1450] sm:$0xff]
        %v972 = vld [vmem:[%s249 + $0x1458] sm:$0xff]
        %v973 = vld [vmem:[%s249 + $0x1460] sm:$0xff]
        %v974 = vld [vmem:[%s249 + $0x1468] sm:$0xff]
        %v975 = vld [vmem:[%s249 + $0x1470] sm:$0xff]
        %v976 = vld [vmem:[%s249 + $0x1478] sm:$0xff]
        %v977 = vld [vmem:[%s249 + $0x1480] sm:$0xff]
        %v978 = vld [vmem:[%s249 + $0x1488] sm:$0xff]
        %v979 = vld [vmem:[%s249 + $0x1490] sm:$0xff]
        %v980 = vld [vmem:[%s249 + $0x1498] sm:$0xff]
        %v981 = vld [vmem:[%s249 + $0x14a0] sm:$0xff]
        %v982 = vld [vmem:[%s249 + $0x14a8] sm:$0xff]
        %v983 = vld [vmem:[%s249 + $0x14b0] sm:$0xff]
        %v984 = vld [vmem:[%s249 + $0x14b8] sm:$0xff]
        %v985 = vld [vmem:[%s249 + $0x14c0] sm:$0xff]
        %v986 = vld [vmem:[%s249 + $0x14c8] sm:$0xff]
        %v987 = vld [vmem:[%s249 + $0x14d0] sm:$0xff]
        %v988 = vld [vmem:[%s249 + $0x14d8] sm:$0xff]
        %v989 = vld [vmem:[%s249 + $0x14e0] sm:$0xff]
        %v990 = vld [vmem:[%s249 + $0x14e8] sm:$0xff]
        %v991 = vld [vmem:[%s249 + $0x14f0] sm:$0xff]
        %v992 = vld [vmem:[%s249 + $0x14f8] sm:$0xff]
        %v993 = vld [vmem:[%s249 + $0x1500] sm:$0xff]
        %v994 = vld [vmem:[%s249 + $0x1508] sm:$0xff]
        %v995 = vld [vmem:[%s249 + $0x1510] sm:$0xff]
        %v996 = vld [vmem:[%s249 + $0x1518] sm:$0xff]
        %v997 = vld [vmem:[%s249 + $0x1520] sm:$0xff]
        %v998 = vld [vmem:[%s249 + $0x1528] sm:$0xff]
        %v999 = vld [vmem:[%s249 + $0x1530] sm:$0xff]
        %v1000 = vld [vmem:[%s249 + $0x1538] sm:$0xff]
        %v1001 = vld [vmem:[%s249 + $0x1540] sm:$0xff]
        %v1002 = vld [vmem:[%s249 + $0x1548] sm:$0xff]
        %v1003 = vld [vmem:[%s249 + $0x1550] sm:$0xff]
        %v1004 = vld [vmem:[%s249 + $0x1558] sm:$0xff]
        %v1005 = vld [vmem:[%s249 + $0x1560] sm:$0xff]
        %v1006 = vld [vmem:[%s249 + $0x1568] sm:$0xff]
        %v1007 = vld [vmem:[%s249 + $0x1570] sm:$0xff]
        %v1008 = vld [vmem:[%s249 + $0x1578] sm:$0xff]
        %v1009 = vld [vmem:[%s249 + $0x1580] sm:$0xff]
        %v1010 = vld [vmem:[%s249 + $0x1588] sm:$0xff]
        %v1011 = vld [vmem:[%s249 + $0x1590] sm:$0xff]
        %v1012 = vld [vmem:[%s249 + $0x1598] sm:$0xff]
        %v1013 = vld [vmem:[%s249 + $0x15a0] sm:$0xff]
        %v1014 = vld [vmem:[%s249 + $0x15a8] sm:$0xff]
        %v1015 = vld [vmem:[%s249 + $0x15b0] sm:$0xff]
        %v1016 = vld [vmem:[%s249 + $0x15b8] sm:$0xff]
        %v1017 = vld [vmem:[%s249 + $0x15c0] sm:$0xff]
        %v1018 = vld [vmem:[%s249 + $0x15c8] sm:$0xff]
        %v1019 = vld [vmem:[%s249 + $0x15d0] sm:$0xff]
        %v1020 = vld [vmem:[%s249 + $0x15d8] sm:$0xff]
        %v1021 = vld [vmem:[%s249 + $0x15e0] sm:$0xff]
        %v1022 = vld [vmem:[%s249 + $0x15e8] sm:$0xff]
        %v1023 = vld [vmem:[%s249 + $0x15f0] sm:$0xff]
        %v1024 = vld [vmem:[%s249 + $0x15f8] sm:$0xff]
        %v1025 = vld [vmem:[%s249 + $0x1600] sm:$0xff]
        %v1026 = vld [vmem:[%s249 + $0x1608] sm:$0xff]
        %v1027 = vld [vmem:[%s249 + $0x1610] sm:$0xff]
        %v1028 = vld [vmem:[%s249 + $0x1618] sm:$0xff]
        %v1029 = vld [vmem:[%s249 + $0x1620] sm:$0xff]
        %v1030 = vld [vmem:[%s249 + $0x1628] sm:$0xff]
        %v1031 = vld [vmem:[%s249 + $0x1630] sm:$0xff]
        %v1032 = vld [vmem:[%s249 + $0x1638] sm:$0xff]
        %v1033 = vld [vmem:[%s249 + $0x1640] sm:$0xff]
        %v1034 = vld [vmem:[%s249 + $0x1648] sm:$0xff]
        %v1035 = vld [vmem:[%s249 + $0x1650] sm:$0xff]
        %v1036 = vld [vmem:[%s249 + $0x1658] sm:$0xff]
        %v1037 = vld [vmem:[%s249 + $0x1660] sm:$0xff]
        %v1038 = vld [vmem:[%s249 + $0x1668] sm:$0xff]
        %v1039 = vld [vmem:[%s249 + $0x1670] sm:$0xff]
        %v1040 = vld [vmem:[%s249 + $0x1678] sm:$0xff]
        %v1041 = vld [vmem:[%s249 + $0x1680] sm:$0xff]
        %v1042 = vld [vmem:[%s249 + $0x1688] sm:$0xff]
        %v1043 = vld [vmem:[%s249 + $0x1690] sm:$0xff]
        %v1044 = vld [vmem:[%s249 + $0x1698] sm:$0xff]
        %v1045 = vld [vmem:[%s249 + $0x16a0] sm:$0xff]
        %v1046 = vld [vmem:[%s249 + $0x16a8] sm:$0xff]
        %v1047 = vld [vmem:[%s249 + $0x16b0] sm:$0xff]
        %v1048 = vld [vmem:[%s249 + $0x16b8] sm:$0xff]
        %v1049 = vld [vmem:[%s249 + $0x16c0] sm:$0xff]
        %v1050 = vld [vmem:[%s249 + $0x16c8] sm:$0xff]
        %v1051 = vld [vmem:[%s249 + $0x16d0] sm:$0xff]
        %v1052 = vld [vmem:[%s249 + $0x16d8] sm:$0xff]
        %v1053 = vld [vmem:[%s249 + $0x16e0] sm:$0xff]
        %v1054 = vld [vmem:[%s249 + $0x16e8] sm:$0xff]
        %v1055 = vld [vmem:[%s249 + $0x16f0] sm:$0xff]
        %v1056 = vld [vmem:[%s249 + $0x16f8] sm:$0xff]
        %v1057 = vld [vmem:[%s249 + $0x1700] sm:$0xff]
        %v1058 = vld [vmem:[%s249 + $0x1708] sm:$0xff]
        %v1059 = vld [vmem:[%s249 + $0x1710] sm:$0xff]
        %v1060 = vld [vmem:[%s249 + $0x1718] sm:$0xff]
        %v1061 = vld [vmem:[%s249 + $0x1720] sm:$0xff]
        %v1062 = vld [vmem:[%s249 + $0x1728] sm:$0xff]
        %v1063 = vld [vmem:[%s249 + $0x1730] sm:$0xff]
        %v1064 = vld [vmem:[%s249 + $0x1738] sm:$0xff]
        %v1065 = vld [vmem:[%s249 + $0x1740] sm:$0xff]
        %v1066 = vld [vmem:[%s249 + $0x1748] sm:$0xff]
        %v1067 = vld [vmem:[%s249 + $0x1750] sm:$0xff]
        %v1068 = vld [vmem:[%s249 + $0x1758] sm:$0xff]
        %v1069 = vld [vmem:[%s249 + $0x1760] sm:$0xff]
        %v1070 = vld [vmem:[%s249 + $0x1768] sm:$0xff]
        %v1071 = vld [vmem:[%s249 + $0x1770] sm:$0xff]
        %v1072 = vld [vmem:[%s249 + $0x1778] sm:$0xff]
        %v1073 = vld [vmem:[%s249 + $0x1780] sm:$0xff]
        %v1074 = vld [vmem:[%s249 + $0x1788] sm:$0xff]
        %v1075 = vld [vmem:[%s249 + $0x1790] sm:$0xff]
        %v1076 = vld [vmem:[%s249 + $0x1798] sm:$0xff]
        %v1077 = vld [vmem:[%s249 + $0x17a0] sm:$0xff]
        %v1078 = vld [vmem:[%s249 + $0x17a8] sm:$0xff]
        %v1079 = vld [vmem:[%s249 + $0x17b0] sm:$0xff]
        %v1080 = vld [vmem:[%s249 + $0x17b8] sm:$0xff]
        %v1081 = vld [vmem:[%s249 + $0x17c0] sm:$0xff]
        %v1082 = vld [vmem:[%s249 + $0x17c8] sm:$0xff]
        %v1083 = vld [vmem:[%s249 + $0x17d0] sm:$0xff]
        %v1084 = vld [vmem:[%s249 + $0x17d8] sm:$0xff]
        %v1085 = vld [vmem:[%s249 + $0x17e0] sm:$0xff]
        %v1086 = vld [vmem:[%s249 + $0x17e8] sm:$0xff]
        %v1087 = vld [vmem:[%s249 + $0x17f0] sm:$0xff]
        %v1088 = vld [vmem:[%s249 + $0x17f8] sm:$0xff]
        %v1089 = vunpack.c.l.s8.bf16 %v321
        %v1090 = vunpack.c.l.s8.bf16 %v322
        %v1091 = vunpack.c.l.s8.bf16 %v323
        %v1092 = vunpack.c.l.s8.bf16 %v324
        %v1093 = vunpack.c.l.s8.bf16 %v325
        %v1094 = vunpack.c.l.s8.bf16 %v326
        %v1095 = vunpack.c.l.s8.bf16 %v327
        %v1096 = vunpack.c.l.s8.bf16 %v328
        %v1097 = vunpack.c.l.s8.bf16 %v329
        %v1098 = vunpack.c.l.s8.bf16 %v330
        %v1099 = vunpack.c.l.s8.bf16 %v331
        %v1100 = vunpack.c.l.s8.bf16 %v332
        %v1101 = vunpack.c.l.s8.bf16 %v333
        %v1102 = vunpack.c.l.s8.bf16 %v334
        %v1103 = vunpack.c.l.s8.bf16 %v335
        %v1104 = vunpack.c.l.s8.bf16 %v336
        %v1105 = vunpack.c.l.s8.bf16 %v337
        %v1106 = vunpack.c.l.s8.bf16 %v338
        %v1107 = vunpack.c.l.s8.bf16 %v339
        %v1108 = vunpack.c.l.s8.bf16 %v340
        %v1109 = vunpack.c.l.s8.bf16 %v341
        %v1110 = vunpack.c.l.s8.bf16 %v342
        %v1111 = vunpack.c.l.s8.bf16 %v343
        %v1112 = vunpack.c.l.s8.bf16 %v344
        %v1113 = vunpack.c.h.s8.bf16 %v321
        %v1114 = vunpack.c.h.s8.bf16 %v322
        %v1115 = vunpack.c.h.s8.bf16 %v323
        %v1116 = vunpack.c.h.s8.bf16 %v324
        %v1117 = vunpack.c.h.s8.bf16 %v325
        %v1118 = vunpack.c.h.s8.bf16 %v326
        %v1119 = vunpack.c.h.s8.bf16 %v327
        %v1120 = vunpack.c.h.s8.bf16 %v328
        %v1121 = vunpack.c.h.s8.bf16 %v329
        %v1122 = vunpack.c.h.s8.bf16 %v330
        %v1123 = vunpack.c.h.s8.bf16 %v331
        %v1124 = vunpack.c.h.s8.bf16 %v332
        %v1125 = vunpack.c.h.s8.bf16 %v333
        %v1126 = vunpack.c.h.s8.bf16 %v334
        %v1127 = vunpack.c.h.s8.bf16 %v335
        %v1128 = vunpack.c.h.s8.bf16 %v336
        %v1129 = vunpack.c.h.s8.bf16 %v337
        %v1130 = vunpack.c.h.s8.bf16 %v338
        %v1131 = vunpack.c.h.s8.bf16 %v339
        %v1132 = vunpack.c.h.s8.bf16 %v340
        %v1133 = vunpack.c.h.s8.bf16 %v341
        %v1134 = vunpack.c.h.s8.bf16 %v342
        %v1135 = vunpack.c.h.s8.bf16 %v343
        %v1136 = vunpack.c.h.s8.bf16 %v344
        %v1137 = vunpack.c.l.s8.bf16 %v345
        %v1138 = vunpack.c.l.s8.bf16 %v346
        %v1139 = vunpack.c.l.s8.bf16 %v347
        %v1140 = vunpack.c.l.s8.bf16 %v348
        %v1141 = vunpack.c.l.s8.bf16 %v349
        %v1142 = vunpack.c.l.s8.bf16 %v350
        %v1143 = vunpack.c.l.s8.bf16 %v351
        %v1144 = vunpack.c.l.s8.bf16 %v352
        %v1145 = vunpack.c.l.s8.bf16 %v353
        %v1146 = vunpack.c.l.s8.bf16 %v354
        %v1147 = vunpack.c.l.s8.bf16 %v355
        %v1148 = vunpack.c.l.s8.bf16 %v356
        %v1149 = vunpack.c.l.s8.bf16 %v357
        %v1150 = vunpack.c.l.s8.bf16 %v358
        %v1151 = vunpack.c.l.s8.bf16 %v359
        %v1152 = vunpack.c.l.s8.bf16 %v360
        %v1153 = vunpack.c.l.s8.bf16 %v361
        %v1154 = vunpack.c.l.s8.bf16 %v362
        %v1155 = vunpack.c.l.s8.bf16 %v363
        %v1156 = vunpack.c.l.s8.bf16 %v364
        %v1157 = vunpack.c.l.s8.bf16 %v365
        %v1158 = vunpack.c.l.s8.bf16 %v366
        %v1159 = vunpack.c.l.s8.bf16 %v367
        %v1160 = vunpack.c.l.s8.bf16 %v368
        %v1161 = vunpack.c.h.s8.bf16 %v345
        %v1162 = vunpack.c.h.s8.bf16 %v346
        %v1163 = vunpack.c.h.s8.bf16 %v347
        %v1164 = vunpack.c.h.s8.bf16 %v348
        %v1165 = vunpack.c.h.s8.bf16 %v349
        %v1166 = vunpack.c.h.s8.bf16 %v350
        %v1167 = vunpack.c.h.s8.bf16 %v351
        %v1168 = vunpack.c.h.s8.bf16 %v352
        %v1169 = vunpack.c.h.s8.bf16 %v353
        %v1170 = vunpack.c.h.s8.bf16 %v354
        %v1171 = vunpack.c.h.s8.bf16 %v355
        %v1172 = vunpack.c.h.s8.bf16 %v356
        %v1173 = vunpack.c.h.s8.bf16 %v357
        %v1174 = vunpack.c.h.s8.bf16 %v358
        %v1175 = vunpack.c.h.s8.bf16 %v359
        %v1176 = vunpack.c.h.s8.bf16 %v360
        %v1177 = vunpack.c.h.s8.bf16 %v361
        %v1178 = vunpack.c.h.s8.bf16 %v362
        %v1179 = vunpack.c.h.s8.bf16 %v363
        %v1180 = vunpack.c.h.s8.bf16 %v364
        %v1181 = vunpack.c.h.s8.bf16 %v365
        %v1182 = vunpack.c.h.s8.bf16 %v366
        %v1183 = vunpack.c.h.s8.bf16 %v367
        %v1184 = vunpack.c.h.s8.bf16 %v368
        %v1185 = vunpack.c.l.s8.bf16 %v369
        %v1186 = vunpack.c.l.s8.bf16 %v370
        %v1187 = vunpack.c.l.s8.bf16 %v371
        %v1188 = vunpack.c.l.s8.bf16 %v372
        %v1189 = vunpack.c.l.s8.bf16 %v373
        %v1190 = vunpack.c.l.s8.bf16 %v374
        %v1191 = vunpack.c.l.s8.bf16 %v375
        %v1192 = vunpack.c.l.s8.bf16 %v376
        %v1193 = vunpack.c.l.s8.bf16 %v377
        %v1194 = vunpack.c.l.s8.bf16 %v378
        %v1195 = vunpack.c.l.s8.bf16 %v379
        %v1196 = vunpack.c.l.s8.bf16 %v380
        %v1197 = vunpack.c.l.s8.bf16 %v381
        %v1198 = vunpack.c.l.s8.bf16 %v382
        %v1199 = vunpack.c.l.s8.bf16 %v383
        %v1200 = vunpack.c.l.s8.bf16 %v384
        %v1201 = vunpack.c.l.s8.bf16 %v385
        %v1202 = vunpack.c.l.s8.bf16 %v386
        %v1203 = vunpack.c.l.s8.bf16 %v387
        %v1204 = vunpack.c.l.s8.bf16 %v388
        %v1205 = vunpack.c.l.s8.bf16 %v389
        %v1206 = vunpack.c.l.s8.bf16 %v390
        %v1207 = vunpack.c.l.s8.bf16 %v391
        %v1208 = vunpack.c.l.s8.bf16 %v392
        %v1209 = vunpack.c.h.s8.bf16 %v369
        %v1210 = vunpack.c.h.s8.bf16 %v370
        %v1211 = vunpack.c.h.s8.bf16 %v371
        %v1212 = vunpack.c.h.s8.bf16 %v372
        %v1213 = vunpack.c.h.s8.bf16 %v373
        %v1214 = vunpack.c.h.s8.bf16 %v374
        %v1215 = vunpack.c.h.s8.bf16 %v375
        %v1216 = vunpack.c.h.s8.bf16 %v376
        %v1217 = vunpack.c.h.s8.bf16 %v377
        %v1218 = vunpack.c.h.s8.bf16 %v378
        %v1219 = vunpack.c.h.s8.bf16 %v379
        %v1220 = vunpack.c.h.s8.bf16 %v380
        %v1221 = vunpack.c.h.s8.bf16 %v381
        %v1222 = vunpack.c.h.s8.bf16 %v382
        %v1223 = vunpack.c.h.s8.bf16 %v383
        %v1224 = vunpack.c.h.s8.bf16 %v384
        %v1225 = vunpack.c.h.s8.bf16 %v385
        %v1226 = vunpack.c.h.s8.bf16 %v386
        %v1227 = vunpack.c.h.s8.bf16 %v387
        %v1228 = vunpack.c.h.s8.bf16 %v388
        %v1229 = vunpack.c.h.s8.bf16 %v389
        %v1230 = vunpack.c.h.s8.bf16 %v390
        %v1231 = vunpack.c.h.s8.bf16 %v391
        %v1232 = vunpack.c.h.s8.bf16 %v392
        %v1233 = vunpack.c.l.s8.bf16 %v393
        %v1234 = vunpack.c.l.s8.bf16 %v394
        %v1235 = vunpack.c.l.s8.bf16 %v395
        %v1236 = vunpack.c.l.s8.bf16 %v396
        %v1237 = vunpack.c.l.s8.bf16 %v397
        %v1238 = vunpack.c.l.s8.bf16 %v398
        %v1239 = vunpack.c.l.s8.bf16 %v399
        %v1240 = vunpack.c.l.s8.bf16 %v400
        %v1241 = vunpack.c.l.s8.bf16 %v401
        %v1242 = vunpack.c.l.s8.bf16 %v402
        %v1243 = vunpack.c.l.s8.bf16 %v403
        %v1244 = vunpack.c.l.s8.bf16 %v404
        %v1245 = vunpack.c.l.s8.bf16 %v405
        %v1246 = vunpack.c.l.s8.bf16 %v406
        %v1247 = vunpack.c.l.s8.bf16 %v407
        %v1248 = vunpack.c.l.s8.bf16 %v408
        %v1249 = vunpack.c.l.s8.bf16 %v409
        %v1250 = vunpack.c.l.s8.bf16 %v410
        %v1251 = vunpack.c.l.s8.bf16 %v411
        %v1252 = vunpack.c.l.s8.bf16 %v412
        %v1253 = vunpack.c.l.s8.bf16 %v413
        %v1254 = vunpack.c.l.s8.bf16 %v414
        %v1255 = vunpack.c.l.s8.bf16 %v415
        %v1256 = vunpack.c.l.s8.bf16 %v416
        %v1257 = vunpack.c.h.s8.bf16 %v393
        %v1258 = vunpack.c.h.s8.bf16 %v394
        %v1259 = vunpack.c.h.s8.bf16 %v395
        %v1260 = vunpack.c.h.s8.bf16 %v396
        %v1261 = vunpack.c.h.s8.bf16 %v397
        %v1262 = vunpack.c.h.s8.bf16 %v398
        %v1263 = vunpack.c.h.s8.bf16 %v399
        %v1264 = vunpack.c.h.s8.bf16 %v400
        %v1265 = vunpack.c.h.s8.bf16 %v401
        %v1266 = vunpack.c.h.s8.bf16 %v402
        %v1267 = vunpack.c.h.s8.bf16 %v403
        %v1268 = vunpack.c.h.s8.bf16 %v404
        %v1269 = vunpack.c.h.s8.bf16 %v405
        %v1270 = vunpack.c.h.s8.bf16 %v406
        %v1271 = vunpack.c.h.s8.bf16 %v407
        %v1272 = vunpack.c.h.s8.bf16 %v408
        %v1273 = vunpack.c.h.s8.bf16 %v409
        %v1274 = vunpack.c.h.s8.bf16 %v410
        %v1275 = vunpack.c.h.s8.bf16 %v411
        %v1276 = vunpack.c.h.s8.bf16 %v412
        %v1277 = vunpack.c.h.s8.bf16 %v413
        %v1278 = vunpack.c.h.s8.bf16 %v414
        %v1279 = vunpack.c.h.s8.bf16 %v415
        %v1280 = vunpack.c.h.s8.bf16 %v416
        %v1281 = vunpack.c.l.s8.bf16 %v417
        %v1282 = vunpack.c.l.s8.bf16 %v418
        %v1283 = vunpack.c.l.s8.bf16 %v419
        %v1284 = vunpack.c.l.s8.bf16 %v420
        %v1285 = vunpack.c.l.s8.bf16 %v421
        %v1286 = vunpack.c.l.s8.bf16 %v422
        %v1287 = vunpack.c.l.s8.bf16 %v423
        %v1288 = vunpack.c.l.s8.bf16 %v424
        %v1289 = vunpack.c.l.s8.bf16 %v425
        %v1290 = vunpack.c.l.s8.bf16 %v426
        %v1291 = vunpack.c.l.s8.bf16 %v427
        %v1292 = vunpack.c.l.s8.bf16 %v428
        %v1293 = vunpack.c.l.s8.bf16 %v429
        %v1294 = vunpack.c.l.s8.bf16 %v430
        %v1295 = vunpack.c.l.s8.bf16 %v431
        %v1296 = vunpack.c.l.s8.bf16 %v432
        %v1297 = vunpack.c.l.s8.bf16 %v433
        %v1298 = vunpack.c.l.s8.bf16 %v434
        %v1299 = vunpack.c.l.s8.bf16 %v435
        %v1300 = vunpack.c.l.s8.bf16 %v436
        %v1301 = vunpack.c.l.s8.bf16 %v437
        %v1302 = vunpack.c.l.s8.bf16 %v438
        %v1303 = vunpack.c.l.s8.bf16 %v439
        %v1304 = vunpack.c.l.s8.bf16 %v440
        %v1305 = vunpack.c.h.s8.bf16 %v417
        %v1306 = vunpack.c.h.s8.bf16 %v418
        %v1307 = vunpack.c.h.s8.bf16 %v419
        %v1308 = vunpack.c.h.s8.bf16 %v420
        %v1309 = vunpack.c.h.s8.bf16 %v421
        %v1310 = vunpack.c.h.s8.bf16 %v422
        %v1311 = vunpack.c.h.s8.bf16 %v423
        %v1312 = vunpack.c.h.s8.bf16 %v424
        %v1313 = vunpack.c.h.s8.bf16 %v425
        %v1314 = vunpack.c.h.s8.bf16 %v426
        %v1315 = vunpack.c.h.s8.bf16 %v427
        %v1316 = vunpack.c.h.s8.bf16 %v428
        %v1317 = vunpack.c.h.s8.bf16 %v429
        %v1318 = vunpack.c.h.s8.bf16 %v430
        %v1319 = vunpack.c.h.s8.bf16 %v431
        %v1320 = vunpack.c.h.s8.bf16 %v432
        %v1321 = vunpack.c.h.s8.bf16 %v433
        %v1322 = vunpack.c.h.s8.bf16 %v434
        %v1323 = vunpack.c.h.s8.bf16 %v435
        %v1324 = vunpack.c.h.s8.bf16 %v436
        %v1325 = vunpack.c.h.s8.bf16 %v437
        %v1326 = vunpack.c.h.s8.bf16 %v438
        %v1327 = vunpack.c.h.s8.bf16 %v439
        %v1328 = vunpack.c.h.s8.bf16 %v440
        %v1329 = vunpack.c.l.s8.bf16 %v441
        %v1330 = vunpack.c.l.s8.bf16 %v442
        %v1331 = vunpack.c.l.s8.bf16 %v443
        %v1332 = vunpack.c.l.s8.bf16 %v444
        %v1333 = vunpack.c.l.s8.bf16 %v445
        %v1334 = vunpack.c.l.s8.bf16 %v446
        %v1335 = vunpack.c.l.s8.bf16 %v447
        %v1336 = vunpack.c.l.s8.bf16 %v448
        %v1337 = vunpack.c.l.s8.bf16 %v449
        %v1338 = vunpack.c.l.s8.bf16 %v450
        %v1339 = vunpack.c.l.s8.bf16 %v451
        %v1340 = vunpack.c.l.s8.bf16 %v452
        %v1341 = vunpack.c.l.s8.bf16 %v453
        %v1342 = vunpack.c.l.s8.bf16 %v454
        %v1343 = vunpack.c.l.s8.bf16 %v455
        %v1344 = vunpack.c.l.s8.bf16 %v456
        %v1345 = vunpack.c.l.s8.bf16 %v457
        %v1346 = vunpack.c.l.s8.bf16 %v458
        %v1347 = vunpack.c.l.s8.bf16 %v459
        %v1348 = vunpack.c.l.s8.bf16 %v460
        %v1349 = vunpack.c.l.s8.bf16 %v461
        %v1350 = vunpack.c.l.s8.bf16 %v462
        %v1351 = vunpack.c.l.s8.bf16 %v463
        %v1352 = vunpack.c.l.s8.bf16 %v464
        %v1353 = vunpack.c.h.s8.bf16 %v441
        %v1354 = vunpack.c.h.s8.bf16 %v442
        %v1355 = vunpack.c.h.s8.bf16 %v443
        %v1356 = vunpack.c.h.s8.bf16 %v444
        %v1357 = vunpack.c.h.s8.bf16 %v445
        %v1358 = vunpack.c.h.s8.bf16 %v446
        %v1359 = vunpack.c.h.s8.bf16 %v447
        %v1360 = vunpack.c.h.s8.bf16 %v448
        %v1361 = vunpack.c.h.s8.bf16 %v449
        %v1362 = vunpack.c.h.s8.bf16 %v450
        %v1363 = vunpack.c.h.s8.bf16 %v451
        %v1364 = vunpack.c.h.s8.bf16 %v452
        %v1365 = vunpack.c.h.s8.bf16 %v453
        %v1366 = vunpack.c.h.s8.bf16 %v454
        %v1367 = vunpack.c.h.s8.bf16 %v455
        %v1368 = vunpack.c.h.s8.bf16 %v456
        %v1369 = vunpack.c.h.s8.bf16 %v457
        %v1370 = vunpack.c.h.s8.bf16 %v458
        %v1371 = vunpack.c.h.s8.bf16 %v459
        %v1372 = vunpack.c.h.s8.bf16 %v460
        %v1373 = vunpack.c.h.s8.bf16 %v461
        %v1374 = vunpack.c.h.s8.bf16 %v462
        %v1375 = vunpack.c.h.s8.bf16 %v463
        %v1376 = vunpack.c.h.s8.bf16 %v464
        %v1377 = vunpack.c.l.s8.bf16 %v465
        %v1378 = vunpack.c.l.s8.bf16 %v466
        %v1379 = vunpack.c.l.s8.bf16 %v467
        %v1380 = vunpack.c.l.s8.bf16 %v468
        %v1381 = vunpack.c.l.s8.bf16 %v469
        %v1382 = vunpack.c.l.s8.bf16 %v470
        %v1383 = vunpack.c.l.s8.bf16 %v471
        %v1384 = vunpack.c.l.s8.bf16 %v472
        %v1385 = vunpack.c.l.s8.bf16 %v473
        %v1386 = vunpack.c.l.s8.bf16 %v474
        %v1387 = vunpack.c.l.s8.bf16 %v475
        %v1388 = vunpack.c.l.s8.bf16 %v476
        %v1389 = vunpack.c.l.s8.bf16 %v477
        %v1390 = vunpack.c.l.s8.bf16 %v478
        %v1391 = vunpack.c.l.s8.bf16 %v479
        %v1392 = vunpack.c.l.s8.bf16 %v480
        %v1393 = vunpack.c.l.s8.bf16 %v481
        %v1394 = vunpack.c.l.s8.bf16 %v482
        %v1395 = vunpack.c.l.s8.bf16 %v483
        %v1396 = vunpack.c.l.s8.bf16 %v484
        %v1397 = vunpack.c.l.s8.bf16 %v485
        %v1398 = vunpack.c.l.s8.bf16 %v486
        %v1399 = vunpack.c.l.s8.bf16 %v487
        %v1400 = vunpack.c.l.s8.bf16 %v488
        %v1401 = vunpack.c.h.s8.bf16 %v465
        %v1402 = vunpack.c.h.s8.bf16 %v466
        %v1403 = vunpack.c.h.s8.bf16 %v467
        %v1404 = vunpack.c.h.s8.bf16 %v468
        %v1405 = vunpack.c.h.s8.bf16 %v469
        %v1406 = vunpack.c.h.s8.bf16 %v470
        %v1407 = vunpack.c.h.s8.bf16 %v471
        %v1408 = vunpack.c.h.s8.bf16 %v472
        %v1409 = vunpack.c.h.s8.bf16 %v473
        %v1410 = vunpack.c.h.s8.bf16 %v474
        %v1411 = vunpack.c.h.s8.bf16 %v475
        %v1412 = vunpack.c.h.s8.bf16 %v476
        %v1413 = vunpack.c.h.s8.bf16 %v477
        %v1414 = vunpack.c.h.s8.bf16 %v478
        %v1415 = vunpack.c.h.s8.bf16 %v479
        %v1416 = vunpack.c.h.s8.bf16 %v480
        %v1417 = vunpack.c.h.s8.bf16 %v481
        %v1418 = vunpack.c.h.s8.bf16 %v482
        %v1419 = vunpack.c.h.s8.bf16 %v483
        %v1420 = vunpack.c.h.s8.bf16 %v484
        %v1421 = vunpack.c.h.s8.bf16 %v485
        %v1422 = vunpack.c.h.s8.bf16 %v486
        %v1423 = vunpack.c.h.s8.bf16 %v487
        %v1424 = vunpack.c.h.s8.bf16 %v488
        %v1425 = vunpack.c.l.s8.bf16 %v489
        %v1426 = vunpack.c.l.s8.bf16 %v490
        %v1427 = vunpack.c.l.s8.bf16 %v491
        %v1428 = vunpack.c.l.s8.bf16 %v492
        %v1429 = vunpack.c.l.s8.bf16 %v493
        %v1430 = vunpack.c.l.s8.bf16 %v494
        %v1431 = vunpack.c.l.s8.bf16 %v495
        %v1432 = vunpack.c.l.s8.bf16 %v496
        %v1433 = vunpack.c.l.s8.bf16 %v497
        %v1434 = vunpack.c.l.s8.bf16 %v498
        %v1435 = vunpack.c.l.s8.bf16 %v499
        %v1436 = vunpack.c.l.s8.bf16 %v500
        %v1437 = vunpack.c.l.s8.bf16 %v501
        %v1438 = vunpack.c.l.s8.bf16 %v502
        %v1439 = vunpack.c.l.s8.bf16 %v503
        %v1440 = vunpack.c.l.s8.bf16 %v504
        %v1441 = vunpack.c.l.s8.bf16 %v505
        %v1442 = vunpack.c.l.s8.bf16 %v506
        %v1443 = vunpack.c.l.s8.bf16 %v507
        %v1444 = vunpack.c.l.s8.bf16 %v508
        %v1445 = vunpack.c.l.s8.bf16 %v509
        %v1446 = vunpack.c.l.s8.bf16 %v510
        %v1447 = vunpack.c.l.s8.bf16 %v511
        %v1448 = vunpack.c.l.s8.bf16 %v512
        %v1449 = vunpack.c.h.s8.bf16 %v489
        %v1450 = vunpack.c.h.s8.bf16 %v490
        %v1451 = vunpack.c.h.s8.bf16 %v491
        %v1452 = vunpack.c.h.s8.bf16 %v492
        %v1453 = vunpack.c.h.s8.bf16 %v493
        %v1454 = vunpack.c.h.s8.bf16 %v494
        %v1455 = vunpack.c.h.s8.bf16 %v495
        %v1456 = vunpack.c.h.s8.bf16 %v496
        %v1457 = vunpack.c.h.s8.bf16 %v497
        %v1458 = vunpack.c.h.s8.bf16 %v498
        %v1459 = vunpack.c.h.s8.bf16 %v499
        %v1460 = vunpack.c.h.s8.bf16 %v500
        %v1461 = vunpack.c.h.s8.bf16 %v501
        %v1462 = vunpack.c.h.s8.bf16 %v502
        %v1463 = vunpack.c.h.s8.bf16 %v503
        %v1464 = vunpack.c.h.s8.bf16 %v504
        %v1465 = vunpack.c.h.s8.bf16 %v505
        %v1466 = vunpack.c.h.s8.bf16 %v506
        %v1467 = vunpack.c.h.s8.bf16 %v507
        %v1468 = vunpack.c.h.s8.bf16 %v508
        %v1469 = vunpack.c.h.s8.bf16 %v509
        %v1470 = vunpack.c.h.s8.bf16 %v510
        %v1471 = vunpack.c.h.s8.bf16 %v511
        %v1472 = vunpack.c.h.s8.bf16 %v512
        %v1473 = vunpack.c.l.s8.bf16 %v513
        %v1474 = vunpack.c.l.s8.bf16 %v514
        %v1475 = vunpack.c.l.s8.bf16 %v515
        %v1476 = vunpack.c.l.s8.bf16 %v516
        %v1477 = vunpack.c.l.s8.bf16 %v517
        %v1478 = vunpack.c.l.s8.bf16 %v518
        %v1479 = vunpack.c.l.s8.bf16 %v519
        %v1480 = vunpack.c.l.s8.bf16 %v520
        %v1481 = vunpack.c.l.s8.bf16 %v521
        %v1482 = vunpack.c.l.s8.bf16 %v522
        %v1483 = vunpack.c.l.s8.bf16 %v523
        %v1484 = vunpack.c.l.s8.bf16 %v524
        %v1485 = vunpack.c.l.s8.bf16 %v525
        %v1486 = vunpack.c.l.s8.bf16 %v526
        %v1487 = vunpack.c.l.s8.bf16 %v527
        %v1488 = vunpack.c.l.s8.bf16 %v528
        %v1489 = vunpack.c.l.s8.bf16 %v529
        %v1490 = vunpack.c.l.s8.bf16 %v530
        %v1491 = vunpack.c.l.s8.bf16 %v531
        %v1492 = vunpack.c.l.s8.bf16 %v532
        %v1493 = vunpack.c.l.s8.bf16 %v533
        %v1494 = vunpack.c.l.s8.bf16 %v534
        %v1495 = vunpack.c.l.s8.bf16 %v535
        %v1496 = vunpack.c.l.s8.bf16 %v536
        %v1497 = vunpack.c.h.s8.bf16 %v513
        %v1498 = vunpack.c.h.s8.bf16 %v514
        %v1499 = vunpack.c.h.s8.bf16 %v515
        %v1500 = vunpack.c.h.s8.bf16 %v516
        %v1501 = vunpack.c.h.s8.bf16 %v517
        %v1502 = vunpack.c.h.s8.bf16 %v518
        %v1503 = vunpack.c.h.s8.bf16 %v519
        %v1504 = vunpack.c.h.s8.bf16 %v520
        %v1505 = vunpack.c.h.s8.bf16 %v521
        %v1506 = vunpack.c.h.s8.bf16 %v522
        %v1507 = vunpack.c.h.s8.bf16 %v523
        %v1508 = vunpack.c.h.s8.bf16 %v524
        %v1509 = vunpack.c.h.s8.bf16 %v525
        %v1510 = vunpack.c.h.s8.bf16 %v526
        %v1511 = vunpack.c.h.s8.bf16 %v527
        %v1512 = vunpack.c.h.s8.bf16 %v528
        %v1513 = vunpack.c.h.s8.bf16 %v529
        %v1514 = vunpack.c.h.s8.bf16 %v530
        %v1515 = vunpack.c.h.s8.bf16 %v531
        %v1516 = vunpack.c.h.s8.bf16 %v532
        %v1517 = vunpack.c.h.s8.bf16 %v533
        %v1518 = vunpack.c.h.s8.bf16 %v534
        %v1519 = vunpack.c.h.s8.bf16 %v535
        %v1520 = vunpack.c.h.s8.bf16 %v536
        %v1521 = vunpack.c.l.s8.bf16 %v537
        %v1522 = vunpack.c.l.s8.bf16 %v538
        %v1523 = vunpack.c.l.s8.bf16 %v539
        %v1524 = vunpack.c.l.s8.bf16 %v540
        %v1525 = vunpack.c.l.s8.bf16 %v541
        %v1526 = vunpack.c.l.s8.bf16 %v542
        %v1527 = vunpack.c.l.s8.bf16 %v543
        %v1528 = vunpack.c.l.s8.bf16 %v544
        %v1529 = vunpack.c.l.s8.bf16 %v545
        %v1530 = vunpack.c.l.s8.bf16 %v546
        %v1531 = vunpack.c.l.s8.bf16 %v547
        %v1532 = vunpack.c.l.s8.bf16 %v548
        %v1533 = vunpack.c.l.s8.bf16 %v549
        %v1534 = vunpack.c.l.s8.bf16 %v550
        %v1535 = vunpack.c.l.s8.bf16 %v551
        %v1536 = vunpack.c.l.s8.bf16 %v552
        %v1537 = vunpack.c.l.s8.bf16 %v553
        %v1538 = vunpack.c.l.s8.bf16 %v554
        %v1539 = vunpack.c.l.s8.bf16 %v555
        %v1540 = vunpack.c.l.s8.bf16 %v556
        %v1541 = vunpack.c.l.s8.bf16 %v557
        %v1542 = vunpack.c.l.s8.bf16 %v558
        %v1543 = vunpack.c.l.s8.bf16 %v559
        %v1544 = vunpack.c.l.s8.bf16 %v560
        %v1545 = vunpack.c.h.s8.bf16 %v537
        %v1546 = vunpack.c.h.s8.bf16 %v538
        %v1547 = vunpack.c.h.s8.bf16 %v539
        %v1548 = vunpack.c.h.s8.bf16 %v540
        %v1549 = vunpack.c.h.s8.bf16 %v541
        %v1550 = vunpack.c.h.s8.bf16 %v542
        %v1551 = vunpack.c.h.s8.bf16 %v543
        %v1552 = vunpack.c.h.s8.bf16 %v544
        %v1553 = vunpack.c.h.s8.bf16 %v545
        %v1554 = vunpack.c.h.s8.bf16 %v546
        %v1555 = vunpack.c.h.s8.bf16 %v547
        %v1556 = vunpack.c.h.s8.bf16 %v548
        %v1557 = vunpack.c.h.s8.bf16 %v549
        %v1558 = vunpack.c.h.s8.bf16 %v550
        %v1559 = vunpack.c.h.s8.bf16 %v551
        %v1560 = vunpack.c.h.s8.bf16 %v552
        %v1561 = vunpack.c.h.s8.bf16 %v553
        %v1562 = vunpack.c.h.s8.bf16 %v554
        %v1563 = vunpack.c.h.s8.bf16 %v555
        %v1564 = vunpack.c.h.s8.bf16 %v556
        %v1565 = vunpack.c.h.s8.bf16 %v557
        %v1566 = vunpack.c.h.s8.bf16 %v558
        %v1567 = vunpack.c.h.s8.bf16 %v559
        %v1568 = vunpack.c.h.s8.bf16 %v560
        %v1569 = vunpack.c.l.s8.bf16 %v561
        %v1570 = vunpack.c.l.s8.bf16 %v562
        %v1571 = vunpack.c.l.s8.bf16 %v563
        %v1572 = vunpack.c.l.s8.bf16 %v564
        %v1573 = vunpack.c.l.s8.bf16 %v565
        %v1574 = vunpack.c.l.s8.bf16 %v566
        %v1575 = vunpack.c.l.s8.bf16 %v567
        %v1576 = vunpack.c.l.s8.bf16 %v568
        %v1577 = vunpack.c.l.s8.bf16 %v569
        %v1578 = vunpack.c.l.s8.bf16 %v570
        %v1579 = vunpack.c.l.s8.bf16 %v571
        %v1580 = vunpack.c.l.s8.bf16 %v572
        %v1581 = vunpack.c.l.s8.bf16 %v573
        %v1582 = vunpack.c.l.s8.bf16 %v574
        %v1583 = vunpack.c.l.s8.bf16 %v575
        %v1584 = vunpack.c.l.s8.bf16 %v576
        %v1585 = vunpack.c.l.s8.bf16 %v577
        %v1586 = vunpack.c.l.s8.bf16 %v578
        %v1587 = vunpack.c.l.s8.bf16 %v579
        %v1588 = vunpack.c.l.s8.bf16 %v580
        %v1589 = vunpack.c.l.s8.bf16 %v581
        %v1590 = vunpack.c.l.s8.bf16 %v582
        %v1591 = vunpack.c.l.s8.bf16 %v583
        %v1592 = vunpack.c.l.s8.bf16 %v584
        %v1593 = vunpack.c.h.s8.bf16 %v561
        %v1594 = vunpack.c.h.s8.bf16 %v562
        %v1595 = vunpack.c.h.s8.bf16 %v563
        %v1596 = vunpack.c.h.s8.bf16 %v564
        %v1597 = vunpack.c.h.s8.bf16 %v565
        %v1598 = vunpack.c.h.s8.bf16 %v566
        %v1599 = vunpack.c.h.s8.bf16 %v567
        %v1600 = vunpack.c.h.s8.bf16 %v568
        %v1601 = vunpack.c.h.s8.bf16 %v569
        %v1602 = vunpack.c.h.s8.bf16 %v570
        %v1603 = vunpack.c.h.s8.bf16 %v571
        %v1604 = vunpack.c.h.s8.bf16 %v572
        %v1605 = vunpack.c.h.s8.bf16 %v573
        %v1606 = vunpack.c.h.s8.bf16 %v574
        %v1607 = vunpack.c.h.s8.bf16 %v575
        %v1608 = vunpack.c.h.s8.bf16 %v576
        %v1609 = vunpack.c.h.s8.bf16 %v577
        %v1610 = vunpack.c.h.s8.bf16 %v578
        %v1611 = vunpack.c.h.s8.bf16 %v579
        %v1612 = vunpack.c.h.s8.bf16 %v580
        %v1613 = vunpack.c.h.s8.bf16 %v581
        %v1614 = vunpack.c.h.s8.bf16 %v582
        %v1615 = vunpack.c.h.s8.bf16 %v583
        %v1616 = vunpack.c.h.s8.bf16 %v584
        %v1617 = vunpack.c.l.s8.bf16 %v585
        %v1618 = vunpack.c.l.s8.bf16 %v586
        %v1619 = vunpack.c.l.s8.bf16 %v587
        %v1620 = vunpack.c.l.s8.bf16 %v588
        %v1621 = vunpack.c.l.s8.bf16 %v589
        %v1622 = vunpack.c.l.s8.bf16 %v590
        %v1623 = vunpack.c.l.s8.bf16 %v591
        %v1624 = vunpack.c.l.s8.bf16 %v592
        %v1625 = vunpack.c.l.s8.bf16 %v593
        %v1626 = vunpack.c.l.s8.bf16 %v594
        %v1627 = vunpack.c.l.s8.bf16 %v595
        %v1628 = vunpack.c.l.s8.bf16 %v596
        %v1629 = vunpack.c.l.s8.bf16 %v597
        %v1630 = vunpack.c.l.s8.bf16 %v598
        %v1631 = vunpack.c.l.s8.bf16 %v599
        %v1632 = vunpack.c.l.s8.bf16 %v600
        %v1633 = vunpack.c.l.s8.bf16 %v601
        %v1634 = vunpack.c.l.s8.bf16 %v602
        %v1635 = vunpack.c.l.s8.bf16 %v603
        %v1636 = vunpack.c.l.s8.bf16 %v604
        %v1637 = vunpack.c.l.s8.bf16 %v605
        %v1638 = vunpack.c.l.s8.bf16 %v606
        %v1639 = vunpack.c.l.s8.bf16 %v607
        %v1640 = vunpack.c.l.s8.bf16 %v608
        %v1641 = vunpack.c.h.s8.bf16 %v585
        %v1642 = vunpack.c.h.s8.bf16 %v586
        %v1643 = vunpack.c.h.s8.bf16 %v587
        %v1644 = vunpack.c.h.s8.bf16 %v588
        %v1645 = vunpack.c.h.s8.bf16 %v589
        %v1646 = vunpack.c.h.s8.bf16 %v590
        %v1647 = vunpack.c.h.s8.bf16 %v591
        %v1648 = vunpack.c.h.s8.bf16 %v592
        %v1649 = vunpack.c.h.s8.bf16 %v593
        %v1650 = vunpack.c.h.s8.bf16 %v594
        %v1651 = vunpack.c.h.s8.bf16 %v595
        %v1652 = vunpack.c.h.s8.bf16 %v596
        %v1653 = vunpack.c.h.s8.bf16 %v597
        %v1654 = vunpack.c.h.s8.bf16 %v598
        %v1655 = vunpack.c.h.s8.bf16 %v599
        %v1656 = vunpack.c.h.s8.bf16 %v600
        %v1657 = vunpack.c.h.s8.bf16 %v601
        %v1658 = vunpack.c.h.s8.bf16 %v602
        %v1659 = vunpack.c.h.s8.bf16 %v603
        %v1660 = vunpack.c.h.s8.bf16 %v604
        %v1661 = vunpack.c.h.s8.bf16 %v605
        %v1662 = vunpack.c.h.s8.bf16 %v606
        %v1663 = vunpack.c.h.s8.bf16 %v607
        %v1664 = vunpack.c.h.s8.bf16 %v608
        %v1665 = vunpack.c.l.s8.bf16 %v609
        %v1666 = vunpack.c.l.s8.bf16 %v610
        %v1667 = vunpack.c.l.s8.bf16 %v611
        %v1668 = vunpack.c.l.s8.bf16 %v612
        %v1669 = vunpack.c.l.s8.bf16 %v613
        %v1670 = vunpack.c.l.s8.bf16 %v614
        %v1671 = vunpack.c.l.s8.bf16 %v615
        %v1672 = vunpack.c.l.s8.bf16 %v616
        %v1673 = vunpack.c.l.s8.bf16 %v617
        %v1674 = vunpack.c.l.s8.bf16 %v618
        %v1675 = vunpack.c.l.s8.bf16 %v619
        %v1676 = vunpack.c.l.s8.bf16 %v620
        %v1677 = vunpack.c.l.s8.bf16 %v621
        %v1678 = vunpack.c.l.s8.bf16 %v622
        %v1679 = vunpack.c.l.s8.bf16 %v623
        %v1680 = vunpack.c.l.s8.bf16 %v624
        %v1681 = vunpack.c.l.s8.bf16 %v625
        %v1682 = vunpack.c.l.s8.bf16 %v626
        %v1683 = vunpack.c.l.s8.bf16 %v627
        %v1684 = vunpack.c.l.s8.bf16 %v628
        %v1685 = vunpack.c.l.s8.bf16 %v629
        %v1686 = vunpack.c.l.s8.bf16 %v630
        %v1687 = vunpack.c.l.s8.bf16 %v631
        %v1688 = vunpack.c.l.s8.bf16 %v632
        %v1689 = vunpack.c.h.s8.bf16 %v609
        %v1690 = vunpack.c.h.s8.bf16 %v610
        %v1691 = vunpack.c.h.s8.bf16 %v611
        %v1692 = vunpack.c.h.s8.bf16 %v612
        %v1693 = vunpack.c.h.s8.bf16 %v613
        %v1694 = vunpack.c.h.s8.bf16 %v614
        %v1695 = vunpack.c.h.s8.bf16 %v615
        %v1696 = vunpack.c.h.s8.bf16 %v616
        %v1697 = vunpack.c.h.s8.bf16 %v617
        %v1698 = vunpack.c.h.s8.bf16 %v618
        %v1699 = vunpack.c.h.s8.bf16 %v619
        %v1700 = vunpack.c.h.s8.bf16 %v620
        %v1701 = vunpack.c.h.s8.bf16 %v621
        %v1702 = vunpack.c.h.s8.bf16 %v622
        %v1703 = vunpack.c.h.s8.bf16 %v623
        %v1704 = vunpack.c.h.s8.bf16 %v624
        %v1705 = vunpack.c.h.s8.bf16 %v625
        %v1706 = vunpack.c.h.s8.bf16 %v626
        %v1707 = vunpack.c.h.s8.bf16 %v627
        %v1708 = vunpack.c.h.s8.bf16 %v628
        %v1709 = vunpack.c.h.s8.bf16 %v629
        %v1710 = vunpack.c.h.s8.bf16 %v630
        %v1711 = vunpack.c.h.s8.bf16 %v631
        %v1712 = vunpack.c.h.s8.bf16 %v632
        %v1713 = vunpack.c.l.s8.bf16 %v633
        %v1714 = vunpack.c.l.s8.bf16 %v634
        %v1715 = vunpack.c.l.s8.bf16 %v635
        %v1716 = vunpack.c.l.s8.bf16 %v636
        %v1717 = vunpack.c.l.s8.bf16 %v637
        %v1718 = vunpack.c.l.s8.bf16 %v638
        %v1719 = vunpack.c.l.s8.bf16 %v639
        %v1720 = vunpack.c.l.s8.bf16 %v640
        %v1721 = vunpack.c.l.s8.bf16 %v641
        %v1722 = vunpack.c.l.s8.bf16 %v642
        %v1723 = vunpack.c.l.s8.bf16 %v643
        %v1724 = vunpack.c.l.s8.bf16 %v644
        %v1725 = vunpack.c.l.s8.bf16 %v645
        %v1726 = vunpack.c.l.s8.bf16 %v646
        %v1727 = vunpack.c.l.s8.bf16 %v647
        %v1728 = vunpack.c.l.s8.bf16 %v648
        %v1729 = vunpack.c.l.s8.bf16 %v649
        %v1730 = vunpack.c.l.s8.bf16 %v650
        %v1731 = vunpack.c.l.s8.bf16 %v651
        %v1732 = vunpack.c.l.s8.bf16 %v652
        %v1733 = vunpack.c.l.s8.bf16 %v653
        %v1734 = vunpack.c.l.s8.bf16 %v654
        %v1735 = vunpack.c.l.s8.bf16 %v655
        %v1736 = vunpack.c.l.s8.bf16 %v656
        %v1737 = vunpack.c.h.s8.bf16 %v633
        %v1738 = vunpack.c.h.s8.bf16 %v634
        %v1739 = vunpack.c.h.s8.bf16 %v635
        %v1740 = vunpack.c.h.s8.bf16 %v636
        %v1741 = vunpack.c.h.s8.bf16 %v637
        %v1742 = vunpack.c.h.s8.bf16 %v638
        %v1743 = vunpack.c.h.s8.bf16 %v639
        %v1744 = vunpack.c.h.s8.bf16 %v640
        %v1745 = vunpack.c.h.s8.bf16 %v641
        %v1746 = vunpack.c.h.s8.bf16 %v642
        %v1747 = vunpack.c.h.s8.bf16 %v643
        %v1748 = vunpack.c.h.s8.bf16 %v644
        %v1749 = vunpack.c.h.s8.bf16 %v645
        %v1750 = vunpack.c.h.s8.bf16 %v646
        %v1751 = vunpack.c.h.s8.bf16 %v647
        %v1752 = vunpack.c.h.s8.bf16 %v648
        %v1753 = vunpack.c.h.s8.bf16 %v649
        %v1754 = vunpack.c.h.s8.bf16 %v650
        %v1755 = vunpack.c.h.s8.bf16 %v651
        %v1756 = vunpack.c.h.s8.bf16 %v652
        %v1757 = vunpack.c.h.s8.bf16 %v653
        %v1758 = vunpack.c.h.s8.bf16 %v654
        %v1759 = vunpack.c.h.s8.bf16 %v655
        %v1760 = vunpack.c.h.s8.bf16 %v656
        %v1761 = vunpack.c.l.s8.bf16 %v657
        %v1762 = vunpack.c.l.s8.bf16 %v658
        %v1763 = vunpack.c.l.s8.bf16 %v659
        %v1764 = vunpack.c.l.s8.bf16 %v660
        %v1765 = vunpack.c.l.s8.bf16 %v661
        %v1766 = vunpack.c.l.s8.bf16 %v662
        %v1767 = vunpack.c.l.s8.bf16 %v663
        %v1768 = vunpack.c.l.s8.bf16 %v664
        %v1769 = vunpack.c.l.s8.bf16 %v665
        %v1770 = vunpack.c.l.s8.bf16 %v666
        %v1771 = vunpack.c.l.s8.bf16 %v667
        %v1772 = vunpack.c.l.s8.bf16 %v668
        %v1773 = vunpack.c.l.s8.bf16 %v669
        %v1774 = vunpack.c.l.s8.bf16 %v670
        %v1775 = vunpack.c.l.s8.bf16 %v671
        %v1776 = vunpack.c.l.s8.bf16 %v672
        %v1777 = vunpack.c.l.s8.bf16 %v673
        %v1778 = vunpack.c.l.s8.bf16 %v674
        %v1779 = vunpack.c.l.s8.bf16 %v675
        %v1780 = vunpack.c.l.s8.bf16 %v676
        %v1781 = vunpack.c.l.s8.bf16 %v677
        %v1782 = vunpack.c.l.s8.bf16 %v678
        %v1783 = vunpack.c.l.s8.bf16 %v679
        %v1784 = vunpack.c.l.s8.bf16 %v680
        %v1785 = vunpack.c.h.s8.bf16 %v657
        %v1786 = vunpack.c.h.s8.bf16 %v658
        %v1787 = vunpack.c.h.s8.bf16 %v659
        %v1788 = vunpack.c.h.s8.bf16 %v660
        %v1789 = vunpack.c.h.s8.bf16 %v661
        %v1790 = vunpack.c.h.s8.bf16 %v662
        %v1791 = vunpack.c.h.s8.bf16 %v663
        %v1792 = vunpack.c.h.s8.bf16 %v664
        %v1793 = vunpack.c.h.s8.bf16 %v665
        %v1794 = vunpack.c.h.s8.bf16 %v666
        %v1795 = vunpack.c.h.s8.bf16 %v667
        %v1796 = vunpack.c.h.s8.bf16 %v668
        %v1797 = vunpack.c.h.s8.bf16 %v669
        %v1798 = vunpack.c.h.s8.bf16 %v670
        %v1799 = vunpack.c.h.s8.bf16 %v671
        %v1800 = vunpack.c.h.s8.bf16 %v672
        %v1801 = vunpack.c.h.s8.bf16 %v673
        %v1802 = vunpack.c.h.s8.bf16 %v674
        %v1803 = vunpack.c.h.s8.bf16 %v675
        %v1804 = vunpack.c.h.s8.bf16 %v676
        %v1805 = vunpack.c.h.s8.bf16 %v677
        %v1806 = vunpack.c.h.s8.bf16 %v678
        %v1807 = vunpack.c.h.s8.bf16 %v679
        %v1808 = vunpack.c.h.s8.bf16 %v680
        %v1809 = vunpack.c.l.s8.bf16 %v681
        %v1810 = vunpack.c.l.s8.bf16 %v682
        %v1811 = vunpack.c.l.s8.bf16 %v683
        %v1812 = vunpack.c.l.s8.bf16 %v684
        %v1813 = vunpack.c.l.s8.bf16 %v685
        %v1814 = vunpack.c.l.s8.bf16 %v686
        %v1815 = vunpack.c.l.s8.bf16 %v687
        %v1816 = vunpack.c.l.s8.bf16 %v688
        %v1817 = vunpack.c.l.s8.bf16 %v689
        %v1818 = vunpack.c.l.s8.bf16 %v690
        %v1819 = vunpack.c.l.s8.bf16 %v691
        %v1820 = vunpack.c.l.s8.bf16 %v692
        %v1821 = vunpack.c.l.s8.bf16 %v693
        %v1822 = vunpack.c.l.s8.bf16 %v694
        %v1823 = vunpack.c.l.s8.bf16 %v695
        %v1824 = vunpack.c.l.s8.bf16 %v696
        %v1825 = vunpack.c.l.s8.bf16 %v697
        %v1826 = vunpack.c.l.s8.bf16 %v698
        %v1827 = vunpack.c.l.s8.bf16 %v699
        %v1828 = vunpack.c.l.s8.bf16 %v700
        %v1829 = vunpack.c.l.s8.bf16 %v701
        %v1830 = vunpack.c.l.s8.bf16 %v702
        %v1831 = vunpack.c.l.s8.bf16 %v703
        %v1832 = vunpack.c.l.s8.bf16 %v704
        %v1833 = vunpack.c.h.s8.bf16 %v681
        %v1834 = vunpack.c.h.s8.bf16 %v682
        %v1835 = vunpack.c.h.s8.bf16 %v683
        %v1836 = vunpack.c.h.s8.bf16 %v684
        %v1837 = vunpack.c.h.s8.bf16 %v685
        %v1838 = vunpack.c.h.s8.bf16 %v686
        %v1839 = vunpack.c.h.s8.bf16 %v687
        %v1840 = vunpack.c.h.s8.bf16 %v688
        %v1841 = vunpack.c.h.s8.bf16 %v689
        %v1842 = vunpack.c.h.s8.bf16 %v690
        %v1843 = vunpack.c.h.s8.bf16 %v691
        %v1844 = vunpack.c.h.s8.bf16 %v692
        %v1845 = vunpack.c.h.s8.bf16 %v693
        %v1846 = vunpack.c.h.s8.bf16 %v694
        %v1847 = vunpack.c.h.s8.bf16 %v695
        %v1848 = vunpack.c.h.s8.bf16 %v696
        %v1849 = vunpack.c.h.s8.bf16 %v697
        %v1850 = vunpack.c.h.s8.bf16 %v698
        %v1851 = vunpack.c.h.s8.bf16 %v699
        %v1852 = vunpack.c.h.s8.bf16 %v700
        %v1853 = vunpack.c.h.s8.bf16 %v701
        %v1854 = vunpack.c.h.s8.bf16 %v702
        %v1855 = vunpack.c.h.s8.bf16 %v703
        %v1856 = vunpack.c.h.s8.bf16 %v704
        %v1857 = vunpack.c.l.s8.bf16 %v705
        %v1858 = vunpack.c.l.s8.bf16 %v706
        %v1859 = vunpack.c.l.s8.bf16 %v707
        %v1860 = vunpack.c.l.s8.bf16 %v708
        %v1861 = vunpack.c.l.s8.bf16 %v709
        %v1862 = vunpack.c.l.s8.bf16 %v710
        %v1863 = vunpack.c.l.s8.bf16 %v711
        %v1864 = vunpack.c.l.s8.bf16 %v712
        %v1865 = vunpack.c.l.s8.bf16 %v713
        %v1866 = vunpack.c.l.s8.bf16 %v714
        %v1867 = vunpack.c.l.s8.bf16 %v715
        %v1868 = vunpack.c.l.s8.bf16 %v716
        %v1869 = vunpack.c.l.s8.bf16 %v717
        %v1870 = vunpack.c.l.s8.bf16 %v718
        %v1871 = vunpack.c.l.s8.bf16 %v719
        %v1872 = vunpack.c.l.s8.bf16 %v720
        %v1873 = vunpack.c.l.s8.bf16 %v721
        %v1874 = vunpack.c.l.s8.bf16 %v722
        %v1875 = vunpack.c.l.s8.bf16 %v723
        %v1876 = vunpack.c.l.s8.bf16 %v724
        %v1877 = vunpack.c.l.s8.bf16 %v725
        %v1878 = vunpack.c.l.s8.bf16 %v726
        %v1879 = vunpack.c.l.s8.bf16 %v727
        %v1880 = vunpack.c.l.s8.bf16 %v728
        %v1881 = vunpack.c.h.s8.bf16 %v705
        %v1882 = vunpack.c.h.s8.bf16 %v706
        %v1883 = vunpack.c.h.s8.bf16 %v707
        %v1884 = vunpack.c.h.s8.bf16 %v708
        %v1885 = vunpack.c.h.s8.bf16 %v709
        %v1886 = vunpack.c.h.s8.bf16 %v710
        %v1887 = vunpack.c.h.s8.bf16 %v711
        %v1888 = vunpack.c.h.s8.bf16 %v712
        %v1889 = vunpack.c.h.s8.bf16 %v713
        %v1890 = vunpack.c.h.s8.bf16 %v714
        %v1891 = vunpack.c.h.s8.bf16 %v715
        %v1892 = vunpack.c.h.s8.bf16 %v716
        %v1893 = vunpack.c.h.s8.bf16 %v717
        %v1894 = vunpack.c.h.s8.bf16 %v718
        %v1895 = vunpack.c.h.s8.bf16 %v719
        %v1896 = vunpack.c.h.s8.bf16 %v720
        %v1897 = vunpack.c.h.s8.bf16 %v721
        %v1898 = vunpack.c.h.s8.bf16 %v722
        %v1899 = vunpack.c.h.s8.bf16 %v723
        %v1900 = vunpack.c.h.s8.bf16 %v724
        %v1901 = vunpack.c.h.s8.bf16 %v725
        %v1902 = vunpack.c.h.s8.bf16 %v726
        %v1903 = vunpack.c.h.s8.bf16 %v727
        %v1904 = vunpack.c.h.s8.bf16 %v728
        %v1905 = vunpack.c.l.s8.bf16 %v729
        %v1906 = vunpack.c.l.s8.bf16 %v730
        %v1907 = vunpack.c.l.s8.bf16 %v731
        %v1908 = vunpack.c.l.s8.bf16 %v732
        %v1909 = vunpack.c.l.s8.bf16 %v733
        %v1910 = vunpack.c.l.s8.bf16 %v734
        %v1911 = vunpack.c.l.s8.bf16 %v735
        %v1912 = vunpack.c.l.s8.bf16 %v736
        %v1913 = vunpack.c.l.s8.bf16 %v737
        %v1914 = vunpack.c.l.s8.bf16 %v738
        %v1915 = vunpack.c.l.s8.bf16 %v739
        %v1916 = vunpack.c.l.s8.bf16 %v740
        %v1917 = vunpack.c.l.s8.bf16 %v741
        %v1918 = vunpack.c.l.s8.bf16 %v742
        %v1919 = vunpack.c.l.s8.bf16 %v743
        %v1920 = vunpack.c.l.s8.bf16 %v744
        %v1921 = vunpack.c.l.s8.bf16 %v745
        %v1922 = vunpack.c.l.s8.bf16 %v746
        %v1923 = vunpack.c.l.s8.bf16 %v747
        %v1924 = vunpack.c.l.s8.bf16 %v748
        %v1925 = vunpack.c.l.s8.bf16 %v749
        %v1926 = vunpack.c.l.s8.bf16 %v750
        %v1927 = vunpack.c.l.s8.bf16 %v751
        %v1928 = vunpack.c.l.s8.bf16 %v752
        %v1929 = vunpack.c.h.s8.bf16 %v729
        %v1930 = vunpack.c.h.s8.bf16 %v730
        %v1931 = vunpack.c.h.s8.bf16 %v731
        %v1932 = vunpack.c.h.s8.bf16 %v732
        %v1933 = vunpack.c.h.s8.bf16 %v733
        %v1934 = vunpack.c.h.s8.bf16 %v734
        %v1935 = vunpack.c.h.s8.bf16 %v735
        %v1936 = vunpack.c.h.s8.bf16 %v736
        %v1937 = vunpack.c.h.s8.bf16 %v737
        %v1938 = vunpack.c.h.s8.bf16 %v738
        %v1939 = vunpack.c.h.s8.bf16 %v739
        %v1940 = vunpack.c.h.s8.bf16 %v740
        %v1941 = vunpack.c.h.s8.bf16 %v741
        %v1942 = vunpack.c.h.s8.bf16 %v742
        %v1943 = vunpack.c.h.s8.bf16 %v743
        %v1944 = vunpack.c.h.s8.bf16 %v744
        %v1945 = vunpack.c.h.s8.bf16 %v745
        %v1946 = vunpack.c.h.s8.bf16 %v746
        %v1947 = vunpack.c.h.s8.bf16 %v747
        %v1948 = vunpack.c.h.s8.bf16 %v748
        %v1949 = vunpack.c.h.s8.bf16 %v749
        %v1950 = vunpack.c.h.s8.bf16 %v750
        %v1951 = vunpack.c.h.s8.bf16 %v751
        %v1952 = vunpack.c.h.s8.bf16 %v752
        %v1953 = vunpack.c.l.s8.bf16 %v753
        %v1954 = vunpack.c.l.s8.bf16 %v754
        %v1955 = vunpack.c.l.s8.bf16 %v755
        %v1956 = vunpack.c.l.s8.bf16 %v756
        %v1957 = vunpack.c.l.s8.bf16 %v757
        %v1958 = vunpack.c.l.s8.bf16 %v758
        %v1959 = vunpack.c.l.s8.bf16 %v759
        %v1960 = vunpack.c.l.s8.bf16 %v760
        %v1961 = vunpack.c.l.s8.bf16 %v761
        %v1962 = vunpack.c.l.s8.bf16 %v762
        %v1963 = vunpack.c.l.s8.bf16 %v763
        %v1964 = vunpack.c.l.s8.bf16 %v764
        %v1965 = vunpack.c.l.s8.bf16 %v765
        %v1966 = vunpack.c.l.s8.bf16 %v766
        %v1967 = vunpack.c.l.s8.bf16 %v767
        %v1968 = vunpack.c.l.s8.bf16 %v768
        %v1969 = vunpack.c.l.s8.bf16 %v769
        %v1970 = vunpack.c.l.s8.bf16 %v770
        %v1971 = vunpack.c.l.s8.bf16 %v771
        %v1972 = vunpack.c.l.s8.bf16 %v772
        %v1973 = vunpack.c.l.s8.bf16 %v773
        %v1974 = vunpack.c.l.s8.bf16 %v774
        %v1975 = vunpack.c.l.s8.bf16 %v775
        %v1976 = vunpack.c.l.s8.bf16 %v776
        %v1977 = vunpack.c.h.s8.bf16 %v753
        %v1978 = vunpack.c.h.s8.bf16 %v754
        %v1979 = vunpack.c.h.s8.bf16 %v755
        %v1980 = vunpack.c.h.s8.bf16 %v756
        %v1981 = vunpack.c.h.s8.bf16 %v757
        %v1982 = vunpack.c.h.s8.bf16 %v758
        %v1983 = vunpack.c.h.s8.bf16 %v759
        %v1984 = vunpack.c.h.s8.bf16 %v760
        %v1985 = vunpack.c.h.s8.bf16 %v761
        %v1986 = vunpack.c.h.s8.bf16 %v762
        %v1987 = vunpack.c.h.s8.bf16 %v763
        %v1988 = vunpack.c.h.s8.bf16 %v764
        %v1989 = vunpack.c.h.s8.bf16 %v765
        %v1990 = vunpack.c.h.s8.bf16 %v766
        %v1991 = vunpack.c.h.s8.bf16 %v767
        %v1992 = vunpack.c.h.s8.bf16 %v768
        %v1993 = vunpack.c.h.s8.bf16 %v769
        %v1994 = vunpack.c.h.s8.bf16 %v770
        %v1995 = vunpack.c.h.s8.bf16 %v771
        %v1996 = vunpack.c.h.s8.bf16 %v772
        %v1997 = vunpack.c.h.s8.bf16 %v773
        %v1998 = vunpack.c.h.s8.bf16 %v774
        %v1999 = vunpack.c.h.s8.bf16 %v775
        %v2000 = vunpack.c.h.s8.bf16 %v776
        %v2001 = vunpack.c.l.s8.bf16 %v777
        %v2002 = vunpack.c.l.s8.bf16 %v778
        %v2003 = vunpack.c.l.s8.bf16 %v779
        %v2004 = vunpack.c.l.s8.bf16 %v780
        %v2005 = vunpack.c.l.s8.bf16 %v781
        %v2006 = vunpack.c.l.s8.bf16 %v782
        %v2007 = vunpack.c.l.s8.bf16 %v783
        %v2008 = vunpack.c.l.s8.bf16 %v784
        %v2009 = vunpack.c.l.s8.bf16 %v785
        %v2010 = vunpack.c.l.s8.bf16 %v786
        %v2011 = vunpack.c.l.s8.bf16 %v787
        %v2012 = vunpack.c.l.s8.bf16 %v788
        %v2013 = vunpack.c.l.s8.bf16 %v789
        %v2014 = vunpack.c.l.s8.bf16 %v790
        %v2015 = vunpack.c.l.s8.bf16 %v791
        %v2016 = vunpack.c.l.s8.bf16 %v792
        %v2017 = vunpack.c.l.s8.bf16 %v793
        %v2018 = vunpack.c.l.s8.bf16 %v794
        %v2019 = vunpack.c.l.s8.bf16 %v795
        %v2020 = vunpack.c.l.s8.bf16 %v796
        %v2021 = vunpack.c.l.s8.bf16 %v797
        %v2022 = vunpack.c.l.s8.bf16 %v798
        %v2023 = vunpack.c.l.s8.bf16 %v799
        %v2024 = vunpack.c.l.s8.bf16 %v800
        %v2025 = vunpack.c.h.s8.bf16 %v777
        %v2026 = vunpack.c.h.s8.bf16 %v778
        %v2027 = vunpack.c.h.s8.bf16 %v779
        %v2028 = vunpack.c.h.s8.bf16 %v780
        %v2029 = vunpack.c.h.s8.bf16 %v781
        %v2030 = vunpack.c.h.s8.bf16 %v782
        %v2031 = vunpack.c.h.s8.bf16 %v783
        %v2032 = vunpack.c.h.s8.bf16 %v784
        %v2033 = vunpack.c.h.s8.bf16 %v785
        %v2034 = vunpack.c.h.s8.bf16 %v786
        %v2035 = vunpack.c.h.s8.bf16 %v787
        %v2036 = vunpack.c.h.s8.bf16 %v788
        %v2037 = vunpack.c.h.s8.bf16 %v789
        %v2038 = vunpack.c.h.s8.bf16 %v790
        %v2039 = vunpack.c.h.s8.bf16 %v791
        %v2040 = vunpack.c.h.s8.bf16 %v792
        %v2041 = vunpack.c.h.s8.bf16 %v793
        %v2042 = vunpack.c.h.s8.bf16 %v794
        %v2043 = vunpack.c.h.s8.bf16 %v795
        %v2044 = vunpack.c.h.s8.bf16 %v796
        %v2045 = vunpack.c.h.s8.bf16 %v797
        %v2046 = vunpack.c.h.s8.bf16 %v798
        %v2047 = vunpack.c.h.s8.bf16 %v799
        %v2048 = vunpack.c.h.s8.bf16 %v800
        %v2049 = vunpack.c.l.s8.bf16 %v801
        %v2050 = vunpack.c.l.s8.bf16 %v802
        %v2051 = vunpack.c.l.s8.bf16 %v803
        %v2052 = vunpack.c.l.s8.bf16 %v804
        %v2053 = vunpack.c.l.s8.bf16 %v805
        %v2054 = vunpack.c.l.s8.bf16 %v806
        %v2055 = vunpack.c.l.s8.bf16 %v807
        %v2056 = vunpack.c.l.s8.bf16 %v808
        %v2057 = vunpack.c.l.s8.bf16 %v809
        %v2058 = vunpack.c.l.s8.bf16 %v810
        %v2059 = vunpack.c.l.s8.bf16 %v811
        %v2060 = vunpack.c.l.s8.bf16 %v812
        %v2061 = vunpack.c.l.s8.bf16 %v813
        %v2062 = vunpack.c.l.s8.bf16 %v814
        %v2063 = vunpack.c.l.s8.bf16 %v815
        %v2064 = vunpack.c.l.s8.bf16 %v816
        %v2065 = vunpack.c.l.s8.bf16 %v817
        %v2066 = vunpack.c.l.s8.bf16 %v818
        %v2067 = vunpack.c.l.s8.bf16 %v819
        %v2068 = vunpack.c.l.s8.bf16 %v820
        %v2069 = vunpack.c.l.s8.bf16 %v821
        %v2070 = vunpack.c.l.s8.bf16 %v822
        %v2071 = vunpack.c.l.s8.bf16 %v823
        %v2072 = vunpack.c.l.s8.bf16 %v824
        %v2073 = vunpack.c.h.s8.bf16 %v801
        %v2074 = vunpack.c.h.s8.bf16 %v802
        %v2075 = vunpack.c.h.s8.bf16 %v803
        %v2076 = vunpack.c.h.s8.bf16 %v804
        %v2077 = vunpack.c.h.s8.bf16 %v805
        %v2078 = vunpack.c.h.s8.bf16 %v806
        %v2079 = vunpack.c.h.s8.bf16 %v807
        %v2080 = vunpack.c.h.s8.bf16 %v808
        %v2081 = vunpack.c.h.s8.bf16 %v809
        %v2082 = vunpack.c.h.s8.bf16 %v810
        %v2083 = vunpack.c.h.s8.bf16 %v811
        %v2084 = vunpack.c.h.s8.bf16 %v812
        %v2085 = vunpack.c.h.s8.bf16 %v813
        %v2086 = vunpack.c.h.s8.bf16 %v814
        %v2087 = vunpack.c.h.s8.bf16 %v815
        %v2088 = vunpack.c.h.s8.bf16 %v816
        %v2089 = vunpack.c.h.s8.bf16 %v817
        %v2090 = vunpack.c.h.s8.bf16 %v818
        %v2091 = vunpack.c.h.s8.bf16 %v819
        %v2092 = vunpack.c.h.s8.bf16 %v820
        %v2093 = vunpack.c.h.s8.bf16 %v821
        %v2094 = vunpack.c.h.s8.bf16 %v822
        %v2095 = vunpack.c.h.s8.bf16 %v823
        %v2096 = vunpack.c.h.s8.bf16 %v824
        %v2097 = vunpack.c.l.s8.bf16 %v825
        %v2098 = vunpack.c.l.s8.bf16 %v826
        %v2099 = vunpack.c.l.s8.bf16 %v827
        %v2100 = vunpack.c.l.s8.bf16 %v828
        %v2101 = vunpack.c.l.s8.bf16 %v829
        %v2102 = vunpack.c.l.s8.bf16 %v830
        %v2103 = vunpack.c.l.s8.bf16 %v831
        %v2104 = vunpack.c.l.s8.bf16 %v832
        %v2105 = vunpack.c.l.s8.bf16 %v833
        %v2106 = vunpack.c.l.s8.bf16 %v834
        %v2107 = vunpack.c.l.s8.bf16 %v835
        %v2108 = vunpack.c.l.s8.bf16 %v836
        %v2109 = vunpack.c.l.s8.bf16 %v837
        %v2110 = vunpack.c.l.s8.bf16 %v838
        %v2111 = vunpack.c.l.s8.bf16 %v839
        %v2112 = vunpack.c.l.s8.bf16 %v840
        %v2113 = vunpack.c.l.s8.bf16 %v841
        %v2114 = vunpack.c.l.s8.bf16 %v842
        %v2115 = vunpack.c.l.s8.bf16 %v843
        %v2116 = vunpack.c.l.s8.bf16 %v844
        %v2117 = vunpack.c.l.s8.bf16 %v845
        %v2118 = vunpack.c.l.s8.bf16 %v846
        %v2119 = vunpack.c.l.s8.bf16 %v847
        %v2120 = vunpack.c.l.s8.bf16 %v848
        %v2121 = vunpack.c.h.s8.bf16 %v825
        %v2122 = vunpack.c.h.s8.bf16 %v826
        %v2123 = vunpack.c.h.s8.bf16 %v827
        %v2124 = vunpack.c.h.s8.bf16 %v828
        %v2125 = vunpack.c.h.s8.bf16 %v829
        %v2126 = vunpack.c.h.s8.bf16 %v830
        %v2127 = vunpack.c.h.s8.bf16 %v831
        %v2128 = vunpack.c.h.s8.bf16 %v832
        %v2129 = vunpack.c.h.s8.bf16 %v833
        %v2130 = vunpack.c.h.s8.bf16 %v834
        %v2131 = vunpack.c.h.s8.bf16 %v835
        %v2132 = vunpack.c.h.s8.bf16 %v836
        %v2133 = vunpack.c.h.s8.bf16 %v837
        %v2134 = vunpack.c.h.s8.bf16 %v838
        %v2135 = vunpack.c.h.s8.bf16 %v839
        %v2136 = vunpack.c.h.s8.bf16 %v840
        %v2137 = vunpack.c.h.s8.bf16 %v841
        %v2138 = vunpack.c.h.s8.bf16 %v842
        %v2139 = vunpack.c.h.s8.bf16 %v843
        %v2140 = vunpack.c.h.s8.bf16 %v844
        %v2141 = vunpack.c.h.s8.bf16 %v845
        %v2142 = vunpack.c.h.s8.bf16 %v846
        %v2143 = vunpack.c.h.s8.bf16 %v847
        %v2144 = vunpack.c.h.s8.bf16 %v848
        %v2145 = vunpack.c.l.s8.bf16 %v849
        %v2146 = vunpack.c.l.s8.bf16 %v850
        %v2147 = vunpack.c.l.s8.bf16 %v851
        %v2148 = vunpack.c.l.s8.bf16 %v852
        %v2149 = vunpack.c.l.s8.bf16 %v853
        %v2150 = vunpack.c.l.s8.bf16 %v854
        %v2151 = vunpack.c.l.s8.bf16 %v855
        %v2152 = vunpack.c.l.s8.bf16 %v856
        %v2153 = vunpack.c.l.s8.bf16 %v857
        %v2154 = vunpack.c.l.s8.bf16 %v858
        %v2155 = vunpack.c.l.s8.bf16 %v859
        %v2156 = vunpack.c.l.s8.bf16 %v860
        %v2157 = vunpack.c.l.s8.bf16 %v861
        %v2158 = vunpack.c.l.s8.bf16 %v862
        %v2159 = vunpack.c.l.s8.bf16 %v863
        %v2160 = vunpack.c.l.s8.bf16 %v864
        %v2161 = vunpack.c.l.s8.bf16 %v865
        %v2162 = vunpack.c.l.s8.bf16 %v866
        %v2163 = vunpack.c.l.s8.bf16 %v867
        %v2164 = vunpack.c.l.s8.bf16 %v868
        %v2165 = vunpack.c.l.s8.bf16 %v869
        %v2166 = vunpack.c.l.s8.bf16 %v870
        %v2167 = vunpack.c.l.s8.bf16 %v871
        %v2168 = vunpack.c.l.s8.bf16 %v872
        %v2169 = vunpack.c.h.s8.bf16 %v849
        %v2170 = vunpack.c.h.s8.bf16 %v850
        %v2171 = vunpack.c.h.s8.bf16 %v851
        %v2172 = vunpack.c.h.s8.bf16 %v852
        %v2173 = vunpack.c.h.s8.bf16 %v853
        %v2174 = vunpack.c.h.s8.bf16 %v854
        %v2175 = vunpack.c.h.s8.bf16 %v855
        %v2176 = vunpack.c.h.s8.bf16 %v856
        %v2177 = vunpack.c.h.s8.bf16 %v857
        %v2178 = vunpack.c.h.s8.bf16 %v858
        %v2179 = vunpack.c.h.s8.bf16 %v859
        %v2180 = vunpack.c.h.s8.bf16 %v860
        %v2181 = vunpack.c.h.s8.bf16 %v861
        %v2182 = vunpack.c.h.s8.bf16 %v862
        %v2183 = vunpack.c.h.s8.bf16 %v863
        %v2184 = vunpack.c.h.s8.bf16 %v864
        %v2185 = vunpack.c.h.s8.bf16 %v865
        %v2186 = vunpack.c.h.s8.bf16 %v866
        %v2187 = vunpack.c.h.s8.bf16 %v867
        %v2188 = vunpack.c.h.s8.bf16 %v868
        %v2189 = vunpack.c.h.s8.bf16 %v869
        %v2190 = vunpack.c.h.s8.bf16 %v870
        %v2191 = vunpack.c.h.s8.bf16 %v871
        %v2192 = vunpack.c.h.s8.bf16 %v872
        %v2193 = vunpack.c.l.s8.bf16 %v873
        %v2194 = vunpack.c.l.s8.bf16 %v874
        %v2195 = vunpack.c.l.s8.bf16 %v875
        %v2196 = vunpack.c.l.s8.bf16 %v876
        %v2197 = vunpack.c.l.s8.bf16 %v877
        %v2198 = vunpack.c.l.s8.bf16 %v878
        %v2199 = vunpack.c.l.s8.bf16 %v879
        %v2200 = vunpack.c.l.s8.bf16 %v880
        %v2201 = vunpack.c.l.s8.bf16 %v881
        %v2202 = vunpack.c.l.s8.bf16 %v882
        %v2203 = vunpack.c.l.s8.bf16 %v883
        %v2204 = vunpack.c.l.s8.bf16 %v884
        %v2205 = vunpack.c.l.s8.bf16 %v885
        %v2206 = vunpack.c.l.s8.bf16 %v886
        %v2207 = vunpack.c.l.s8.bf16 %v887
        %v2208 = vunpack.c.l.s8.bf16 %v888
        %v2209 = vunpack.c.l.s8.bf16 %v889
        %v2210 = vunpack.c.l.s8.bf16 %v890
        %v2211 = vunpack.c.l.s8.bf16 %v891
        %v2212 = vunpack.c.l.s8.bf16 %v892
        %v2213 = vunpack.c.l.s8.bf16 %v893
        %v2214 = vunpack.c.l.s8.bf16 %v894
        %v2215 = vunpack.c.l.s8.bf16 %v895
        %v2216 = vunpack.c.l.s8.bf16 %v896
        %v2217 = vunpack.c.h.s8.bf16 %v873
        %v2218 = vunpack.c.h.s8.bf16 %v874
        %v2219 = vunpack.c.h.s8.bf16 %v875
        %v2220 = vunpack.c.h.s8.bf16 %v876
        %v2221 = vunpack.c.h.s8.bf16 %v877
        %v2222 = vunpack.c.h.s8.bf16 %v878
        %v2223 = vunpack.c.h.s8.bf16 %v879
        %v2224 = vunpack.c.h.s8.bf16 %v880
        %v2225 = vunpack.c.h.s8.bf16 %v881
        %v2226 = vunpack.c.h.s8.bf16 %v882
        %v2227 = vunpack.c.h.s8.bf16 %v883
        %v2228 = vunpack.c.h.s8.bf16 %v884
        %v2229 = vunpack.c.h.s8.bf16 %v885
        %v2230 = vunpack.c.h.s8.bf16 %v886
        %v2231 = vunpack.c.h.s8.bf16 %v887
        %v2232 = vunpack.c.h.s8.bf16 %v888
        %v2233 = vunpack.c.h.s8.bf16 %v889
        %v2234 = vunpack.c.h.s8.bf16 %v890
        %v2235 = vunpack.c.h.s8.bf16 %v891
        %v2236 = vunpack.c.h.s8.bf16 %v892
        %v2237 = vunpack.c.h.s8.bf16 %v893
        %v2238 = vunpack.c.h.s8.bf16 %v894
        %v2239 = vunpack.c.h.s8.bf16 %v895
        %v2240 = vunpack.c.h.s8.bf16 %v896
        %v2241 = vunpack.c.l.s8.bf16 %v897
        %v2242 = vunpack.c.l.s8.bf16 %v898
        %v2243 = vunpack.c.l.s8.bf16 %v899
        %v2244 = vunpack.c.l.s8.bf16 %v900
        %v2245 = vunpack.c.l.s8.bf16 %v901
        %v2246 = vunpack.c.l.s8.bf16 %v902
        %v2247 = vunpack.c.l.s8.bf16 %v903
        %v2248 = vunpack.c.l.s8.bf16 %v904
        %v2249 = vunpack.c.l.s8.bf16 %v905
        %v2250 = vunpack.c.l.s8.bf16 %v906
        %v2251 = vunpack.c.l.s8.bf16 %v907
        %v2252 = vunpack.c.l.s8.bf16 %v908
        %v2253 = vunpack.c.l.s8.bf16 %v909
        %v2254 = vunpack.c.l.s8.bf16 %v910
        %v2255 = vunpack.c.l.s8.bf16 %v911
        %v2256 = vunpack.c.l.s8.bf16 %v912
        %v2257 = vunpack.c.l.s8.bf16 %v913
        %v2258 = vunpack.c.l.s8.bf16 %v914
        %v2259 = vunpack.c.l.s8.bf16 %v915
        %v2260 = vunpack.c.l.s8.bf16 %v916
        %v2261 = vunpack.c.l.s8.bf16 %v917
        %v2262 = vunpack.c.l.s8.bf16 %v918
        %v2263 = vunpack.c.l.s8.bf16 %v919
        %v2264 = vunpack.c.l.s8.bf16 %v920
        %v2265 = vunpack.c.h.s8.bf16 %v897
        %v2266 = vunpack.c.h.s8.bf16 %v898
        %v2267 = vunpack.c.h.s8.bf16 %v899
        %v2268 = vunpack.c.h.s8.bf16 %v900
        %v2269 = vunpack.c.h.s8.bf16 %v901
        %v2270 = vunpack.c.h.s8.bf16 %v902
        %v2271 = vunpack.c.h.s8.bf16 %v903
        %v2272 = vunpack.c.h.s8.bf16 %v904
        %v2273 = vunpack.c.h.s8.bf16 %v905
        %v2274 = vunpack.c.h.s8.bf16 %v906
        %v2275 = vunpack.c.h.s8.bf16 %v907
        %v2276 = vunpack.c.h.s8.bf16 %v908
        %v2277 = vunpack.c.h.s8.bf16 %v909
        %v2278 = vunpack.c.h.s8.bf16 %v910
        %v2279 = vunpack.c.h.s8.bf16 %v911
        %v2280 = vunpack.c.h.s8.bf16 %v912
        %v2281 = vunpack.c.h.s8.bf16 %v913
        %v2282 = vunpack.c.h.s8.bf16 %v914
        %v2283 = vunpack.c.h.s8.bf16 %v915
        %v2284 = vunpack.c.h.s8.bf16 %v916
        %v2285 = vunpack.c.h.s8.bf16 %v917
        %v2286 = vunpack.c.h.s8.bf16 %v918
        %v2287 = vunpack.c.h.s8.bf16 %v919
        %v2288 = vunpack.c.h.s8.bf16 %v920
        %v2289 = vunpack.c.l.s8.bf16 %v921
        %v2290 = vunpack.c.l.s8.bf16 %v922
        %v2291 = vunpack.c.l.s8.bf16 %v923
        %v2292 = vunpack.c.l.s8.bf16 %v924
        %v2293 = vunpack.c.l.s8.bf16 %v925
        %v2294 = vunpack.c.l.s8.bf16 %v926
        %v2295 = vunpack.c.l.s8.bf16 %v927
        %v2296 = vunpack.c.l.s8.bf16 %v928
        %v2297 = vunpack.c.l.s8.bf16 %v929
        %v2298 = vunpack.c.l.s8.bf16 %v930
        %v2299 = vunpack.c.l.s8.bf16 %v931
        %v2300 = vunpack.c.l.s8.bf16 %v932
        %v2301 = vunpack.c.l.s8.bf16 %v933
        %v2302 = vunpack.c.l.s8.bf16 %v934
        %v2303 = vunpack.c.l.s8.bf16 %v935
        %v2304 = vunpack.c.l.s8.bf16 %v936
        %v2305 = vunpack.c.l.s8.bf16 %v937
        %v2306 = vunpack.c.l.s8.bf16 %v938
        %v2307 = vunpack.c.l.s8.bf16 %v939
        %v2308 = vunpack.c.l.s8.bf16 %v940
        %v2309 = vunpack.c.l.s8.bf16 %v941
        %v2310 = vunpack.c.l.s8.bf16 %v942
        %v2311 = vunpack.c.l.s8.bf16 %v943
        %v2312 = vunpack.c.l.s8.bf16 %v944
        %v2313 = vunpack.c.h.s8.bf16 %v921
        %v2314 = vunpack.c.h.s8.bf16 %v922
        %v2315 = vunpack.c.h.s8.bf16 %v923
        %v2316 = vunpack.c.h.s8.bf16 %v924
        %v2317 = vunpack.c.h.s8.bf16 %v925
        %v2318 = vunpack.c.h.s8.bf16 %v926
        %v2319 = vunpack.c.h.s8.bf16 %v927
        %v2320 = vunpack.c.h.s8.bf16 %v928
        %v2321 = vunpack.c.h.s8.bf16 %v929
        %v2322 = vunpack.c.h.s8.bf16 %v930
        %v2323 = vunpack.c.h.s8.bf16 %v931
        %v2324 = vunpack.c.h.s8.bf16 %v932
        %v2325 = vunpack.c.h.s8.bf16 %v933
        %v2326 = vunpack.c.h.s8.bf16 %v934
        %v2327 = vunpack.c.h.s8.bf16 %v935
        %v2328 = vunpack.c.h.s8.bf16 %v936
        %v2329 = vunpack.c.h.s8.bf16 %v937
        %v2330 = vunpack.c.h.s8.bf16 %v938
        %v2331 = vunpack.c.h.s8.bf16 %v939
        %v2332 = vunpack.c.h.s8.bf16 %v940
        %v2333 = vunpack.c.h.s8.bf16 %v941
        %v2334 = vunpack.c.h.s8.bf16 %v942
        %v2335 = vunpack.c.h.s8.bf16 %v943
        %v2336 = vunpack.c.h.s8.bf16 %v944
        %v2337 = vunpack.c.l.s8.bf16 %v945
        %v2338 = vunpack.c.l.s8.bf16 %v946
        %v2339 = vunpack.c.l.s8.bf16 %v947
        %v2340 = vunpack.c.l.s8.bf16 %v948
        %v2341 = vunpack.c.l.s8.bf16 %v949
        %v2342 = vunpack.c.l.s8.bf16 %v950
        %v2343 = vunpack.c.l.s8.bf16 %v951
        %v2344 = vunpack.c.l.s8.bf16 %v952
        %v2345 = vunpack.c.l.s8.bf16 %v953
        %v2346 = vunpack.c.l.s8.bf16 %v954
        %v2347 = vunpack.c.l.s8.bf16 %v955
        %v2348 = vunpack.c.l.s8.bf16 %v956
        %v2349 = vunpack.c.l.s8.bf16 %v957
        %v2350 = vunpack.c.l.s8.bf16 %v958
        %v2351 = vunpack.c.l.s8.bf16 %v959
        %v2352 = vunpack.c.l.s8.bf16 %v960
        %v2353 = vunpack.c.l.s8.bf16 %v961
        %v2354 = vunpack.c.l.s8.bf16 %v962
        %v2355 = vunpack.c.l.s8.bf16 %v963
        %v2356 = vunpack.c.l.s8.bf16 %v964
        %v2357 = vunpack.c.l.s8.bf16 %v965
        %v2358 = vunpack.c.l.s8.bf16 %v966
        %v2359 = vunpack.c.l.s8.bf16 %v967
        %v2360 = vunpack.c.l.s8.bf16 %v968
        %v2361 = vunpack.c.h.s8.bf16 %v945
        %v2362 = vunpack.c.h.s8.bf16 %v946
        %v2363 = vunpack.c.h.s8.bf16 %v947
        %v2364 = vunpack.c.h.s8.bf16 %v948
        %v2365 = vunpack.c.h.s8.bf16 %v949
        %v2366 = vunpack.c.h.s8.bf16 %v950
        %v2367 = vunpack.c.h.s8.bf16 %v951
        %v2368 = vunpack.c.h.s8.bf16 %v952
        %v2369 = vunpack.c.h.s8.bf16 %v953
        %v2370 = vunpack.c.h.s8.bf16 %v954
        %v2371 = vunpack.c.h.s8.bf16 %v955
        %v2372 = vunpack.c.h.s8.bf16 %v956
        %v2373 = vunpack.c.h.s8.bf16 %v957
        %v2374 = vunpack.c.h.s8.bf16 %v958
        %v2375 = vunpack.c.h.s8.bf16 %v959
        %v2376 = vunpack.c.h.s8.bf16 %v960
        %v2377 = vunpack.c.h.s8.bf16 %v961
        %v2378 = vunpack.c.h.s8.bf16 %v962
        %v2379 = vunpack.c.h.s8.bf16 %v963
        %v2380 = vunpack.c.h.s8.bf16 %v964
        %v2381 = vunpack.c.h.s8.bf16 %v965
        %v2382 = vunpack.c.h.s8.bf16 %v966
        %v2383 = vunpack.c.h.s8.bf16 %v967
        %v2384 = vunpack.c.h.s8.bf16 %v968
        %v2385 = vunpack.c.l.s8.bf16 %v969
        %v2386 = vunpack.c.l.s8.bf16 %v970
        %v2387 = vunpack.c.l.s8.bf16 %v971
        %v2388 = vunpack.c.l.s8.bf16 %v972
        %v2389 = vunpack.c.l.s8.bf16 %v973
        %v2390 = vunpack.c.l.s8.bf16 %v974
        %v2391 = vunpack.c.l.s8.bf16 %v975
        %v2392 = vunpack.c.l.s8.bf16 %v976
        %v2393 = vunpack.c.l.s8.bf16 %v977
        %v2394 = vunpack.c.l.s8.bf16 %v978
        %v2395 = vunpack.c.l.s8.bf16 %v979
        %v2396 = vunpack.c.l.s8.bf16 %v980
        %v2397 = vunpack.c.l.s8.bf16 %v981
        %v2398 = vunpack.c.l.s8.bf16 %v982
        %v2399 = vunpack.c.l.s8.bf16 %v983
        %v2400 = vunpack.c.l.s8.bf16 %v984
        %v2401 = vunpack.c.l.s8.bf16 %v985
        %v2402 = vunpack.c.l.s8.bf16 %v986
        %v2403 = vunpack.c.l.s8.bf16 %v987
        %v2404 = vunpack.c.l.s8.bf16 %v988
        %v2405 = vunpack.c.l.s8.bf16 %v989
        %v2406 = vunpack.c.l.s8.bf16 %v990
        %v2407 = vunpack.c.l.s8.bf16 %v991
        %v2408 = vunpack.c.l.s8.bf16 %v992
        %v2409 = vunpack.c.h.s8.bf16 %v969
        %v2410 = vunpack.c.h.s8.bf16 %v970
        %v2411 = vunpack.c.h.s8.bf16 %v971
        %v2412 = vunpack.c.h.s8.bf16 %v972
        %v2413 = vunpack.c.h.s8.bf16 %v973
        %v2414 = vunpack.c.h.s8.bf16 %v974
        %v2415 = vunpack.c.h.s8.bf16 %v975
        %v2416 = vunpack.c.h.s8.bf16 %v976
        %v2417 = vunpack.c.h.s8.bf16 %v977
        %v2418 = vunpack.c.h.s8.bf16 %v978
        %v2419 = vunpack.c.h.s8.bf16 %v979
        %v2420 = vunpack.c.h.s8.bf16 %v980
        %v2421 = vunpack.c.h.s8.bf16 %v981
        %v2422 = vunpack.c.h.s8.bf16 %v982
        %v2423 = vunpack.c.h.s8.bf16 %v983
        %v2424 = vunpack.c.h.s8.bf16 %v984
        %v2425 = vunpack.c.h.s8.bf16 %v985
        %v2426 = vunpack.c.h.s8.bf16 %v986
        %v2427 = vunpack.c.h.s8.bf16 %v987
        %v2428 = vunpack.c.h.s8.bf16 %v988
        %v2429 = vunpack.c.h.s8.bf16 %v989
        %v2430 = vunpack.c.h.s8.bf16 %v990
        %v2431 = vunpack.c.h.s8.bf16 %v991
        %v2432 = vunpack.c.h.s8.bf16 %v992
        %v2433 = vunpack.c.l.s8.bf16 %v993
        %v2434 = vunpack.c.l.s8.bf16 %v994
        %v2435 = vunpack.c.l.s8.bf16 %v995
        %v2436 = vunpack.c.l.s8.bf16 %v996
        %v2437 = vunpack.c.l.s8.bf16 %v997
        %v2438 = vunpack.c.l.s8.bf16 %v998
        %v2439 = vunpack.c.l.s8.bf16 %v999
        %v2440 = vunpack.c.l.s8.bf16 %v1000
        %v2441 = vunpack.c.l.s8.bf16 %v1001
        %v2442 = vunpack.c.l.s8.bf16 %v1002
        %v2443 = vunpack.c.l.s8.bf16 %v1003
        %v2444 = vunpack.c.l.s8.bf16 %v1004
        %v2445 = vunpack.c.l.s8.bf16 %v1005
        %v2446 = vunpack.c.l.s8.bf16 %v1006
        %v2447 = vunpack.c.l.s8.bf16 %v1007
        %v2448 = vunpack.c.l.s8.bf16 %v1008
        %v2449 = vunpack.c.l.s8.bf16 %v1009
        %v2450 = vunpack.c.l.s8.bf16 %v1010
        %v2451 = vunpack.c.l.s8.bf16 %v1011
        %v2452 = vunpack.c.l.s8.bf16 %v1012
        %v2453 = vunpack.c.l.s8.bf16 %v1013
        %v2454 = vunpack.c.l.s8.bf16 %v1014
        %v2455 = vunpack.c.l.s8.bf16 %v1015
        %v2456 = vunpack.c.l.s8.bf16 %v1016
        %v2457 = vunpack.c.h.s8.bf16 %v993
        %v2458 = vunpack.c.h.s8.bf16 %v994
        %v2459 = vunpack.c.h.s8.bf16 %v995
        %v2460 = vunpack.c.h.s8.bf16 %v996
        %v2461 = vunpack.c.h.s8.bf16 %v997
        %v2462 = vunpack.c.h.s8.bf16 %v998
        %v2463 = vunpack.c.h.s8.bf16 %v999
        %v2464 = vunpack.c.h.s8.bf16 %v1000
        %v2465 = vunpack.c.h.s8.bf16 %v1001
        %v2466 = vunpack.c.h.s8.bf16 %v1002
        %v2467 = vunpack.c.h.s8.bf16 %v1003
        %v2468 = vunpack.c.h.s8.bf16 %v1004
        %v2469 = vunpack.c.h.s8.bf16 %v1005
        %v2470 = vunpack.c.h.s8.bf16 %v1006
        %v2471 = vunpack.c.h.s8.bf16 %v1007
        %v2472 = vunpack.c.h.s8.bf16 %v1008
        %v2473 = vunpack.c.h.s8.bf16 %v1009
        %v2474 = vunpack.c.h.s8.bf16 %v1010
        %v2475 = vunpack.c.h.s8.bf16 %v1011
        %v2476 = vunpack.c.h.s8.bf16 %v1012
        %v2477 = vunpack.c.h.s8.bf16 %v1013
        %v2478 = vunpack.c.h.s8.bf16 %v1014
        %v2479 = vunpack.c.h.s8.bf16 %v1015
        %v2480 = vunpack.c.h.s8.bf16 %v1016
        %v2481 = vunpack.c.l.s8.bf16 %v1017
        %v2482 = vunpack.c.l.s8.bf16 %v1018
        %v2483 = vunpack.c.l.s8.bf16 %v1019
        %v2484 = vunpack.c.l.s8.bf16 %v1020
        %v2485 = vunpack.c.l.s8.bf16 %v1021
        %v2486 = vunpack.c.l.s8.bf16 %v1022
        %v2487 = vunpack.c.l.s8.bf16 %v1023
        %v2488 = vunpack.c.l.s8.bf16 %v1024
        %v2489 = vunpack.c.l.s8.bf16 %v1025
        %v2490 = vunpack.c.l.s8.bf16 %v1026
        %v2491 = vunpack.c.l.s8.bf16 %v1027
        %v2492 = vunpack.c.l.s8.bf16 %v1028
        %v2493 = vunpack.c.l.s8.bf16 %v1029
        %v2494 = vunpack.c.l.s8.bf16 %v1030
        %v2495 = vunpack.c.l.s8.bf16 %v1031
        %v2496 = vunpack.c.l.s8.bf16 %v1032
        %v2497 = vunpack.c.l.s8.bf16 %v1033
        %v2498 = vunpack.c.l.s8.bf16 %v1034
        %v2499 = vunpack.c.l.s8.bf16 %v1035
        %v2500 = vunpack.c.l.s8.bf16 %v1036
        %v2501 = vunpack.c.l.s8.bf16 %v1037
        %v2502 = vunpack.c.l.s8.bf16 %v1038
        %v2503 = vunpack.c.l.s8.bf16 %v1039
        %v2504 = vunpack.c.l.s8.bf16 %v1040
        %v2505 = vunpack.c.h.s8.bf16 %v1017
        %v2506 = vunpack.c.h.s8.bf16 %v1018
        %v2507 = vunpack.c.h.s8.bf16 %v1019
        %v2508 = vunpack.c.h.s8.bf16 %v1020
        %v2509 = vunpack.c.h.s8.bf16 %v1021
        %v2510 = vunpack.c.h.s8.bf16 %v1022
        %v2511 = vunpack.c.h.s8.bf16 %v1023
        %v2512 = vunpack.c.h.s8.bf16 %v1024
        %v2513 = vunpack.c.h.s8.bf16 %v1025
        %v2514 = vunpack.c.h.s8.bf16 %v1026
        %v2515 = vunpack.c.h.s8.bf16 %v1027
        %v2516 = vunpack.c.h.s8.bf16 %v1028
        %v2517 = vunpack.c.h.s8.bf16 %v1029
        %v2518 = vunpack.c.h.s8.bf16 %v1030
        %v2519 = vunpack.c.h.s8.bf16 %v1031
        %v2520 = vunpack.c.h.s8.bf16 %v1032
        %v2521 = vunpack.c.h.s8.bf16 %v1033
        %v2522 = vunpack.c.h.s8.bf16 %v1034
        %v2523 = vunpack.c.h.s8.bf16 %v1035
        %v2524 = vunpack.c.h.s8.bf16 %v1036
        %v2525 = vunpack.c.h.s8.bf16 %v1037
        %v2526 = vunpack.c.h.s8.bf16 %v1038
        %v2527 = vunpack.c.h.s8.bf16 %v1039
        %v2528 = vunpack.c.h.s8.bf16 %v1040
        %v2529 = vunpack.c.l.s8.bf16 %v1041
        %v2530 = vunpack.c.l.s8.bf16 %v1042
        %v2531 = vunpack.c.l.s8.bf16 %v1043
        %v2532 = vunpack.c.l.s8.bf16 %v1044
        %v2533 = vunpack.c.l.s8.bf16 %v1045
        %v2534 = vunpack.c.l.s8.bf16 %v1046
        %v2535 = vunpack.c.l.s8.bf16 %v1047
        %v2536 = vunpack.c.l.s8.bf16 %v1048
        %v2537 = vunpack.c.l.s8.bf16 %v1049
        %v2538 = vunpack.c.l.s8.bf16 %v1050
        %v2539 = vunpack.c.l.s8.bf16 %v1051
        %v2540 = vunpack.c.l.s8.bf16 %v1052
        %v2541 = vunpack.c.l.s8.bf16 %v1053
        %v2542 = vunpack.c.l.s8.bf16 %v1054
        %v2543 = vunpack.c.l.s8.bf16 %v1055
        %v2544 = vunpack.c.l.s8.bf16 %v1056
        %v2545 = vunpack.c.l.s8.bf16 %v1057
        %v2546 = vunpack.c.l.s8.bf16 %v1058
        %v2547 = vunpack.c.l.s8.bf16 %v1059
        %v2548 = vunpack.c.l.s8.bf16 %v1060
        %v2549 = vunpack.c.l.s8.bf16 %v1061
        %v2550 = vunpack.c.l.s8.bf16 %v1062
        %v2551 = vunpack.c.l.s8.bf16 %v1063
        %v2552 = vunpack.c.l.s8.bf16 %v1064
        %v2553 = vunpack.c.h.s8.bf16 %v1041
        %v2554 = vunpack.c.h.s8.bf16 %v1042
        %v2555 = vunpack.c.h.s8.bf16 %v1043
        %v2556 = vunpack.c.h.s8.bf16 %v1044
        %v2557 = vunpack.c.h.s8.bf16 %v1045
        %v2558 = vunpack.c.h.s8.bf16 %v1046
        %v2559 = vunpack.c.h.s8.bf16 %v1047
        %v2560 = vunpack.c.h.s8.bf16 %v1048
        %v2561 = vunpack.c.h.s8.bf16 %v1049
        %v2562 = vunpack.c.h.s8.bf16 %v1050
        %v2563 = vunpack.c.h.s8.bf16 %v1051
        %v2564 = vunpack.c.h.s8.bf16 %v1052
        %v2565 = vunpack.c.h.s8.bf16 %v1053
        %v2566 = vunpack.c.h.s8.bf16 %v1054
        %v2567 = vunpack.c.h.s8.bf16 %v1055
        %v2568 = vunpack.c.h.s8.bf16 %v1056
        %v2569 = vunpack.c.h.s8.bf16 %v1057
        %v2570 = vunpack.c.h.s8.bf16 %v1058
        %v2571 = vunpack.c.h.s8.bf16 %v1059
        %v2572 = vunpack.c.h.s8.bf16 %v1060
        %v2573 = vunpack.c.h.s8.bf16 %v1061
        %v2574 = vunpack.c.h.s8.bf16 %v1062
        %v2575 = vunpack.c.h.s8.bf16 %v1063
        %v2576 = vunpack.c.h.s8.bf16 %v1064
        %v2577 = vunpack.c.l.s8.bf16 %v1065
        %v2578 = vunpack.c.l.s8.bf16 %v1066
        %v2579 = vunpack.c.l.s8.bf16 %v1067
        %v2580 = vunpack.c.l.s8.bf16 %v1068
        %v2581 = vunpack.c.l.s8.bf16 %v1069
        %v2582 = vunpack.c.l.s8.bf16 %v1070
        %v2583 = vunpack.c.l.s8.bf16 %v1071
        %v2584 = vunpack.c.l.s8.bf16 %v1072
        %v2585 = vunpack.c.l.s8.bf16 %v1073
        %v2586 = vunpack.c.l.s8.bf16 %v1074
        %v2587 = vunpack.c.l.s8.bf16 %v1075
        %v2588 = vunpack.c.l.s8.bf16 %v1076
        %v2589 = vunpack.c.l.s8.bf16 %v1077
        %v2590 = vunpack.c.l.s8.bf16 %v1078
        %v2591 = vunpack.c.l.s8.bf16 %v1079
        %v2592 = vunpack.c.l.s8.bf16 %v1080
        %v2593 = vunpack.c.l.s8.bf16 %v1081
        %v2594 = vunpack.c.l.s8.bf16 %v1082
        %v2595 = vunpack.c.l.s8.bf16 %v1083
        %v2596 = vunpack.c.l.s8.bf16 %v1084
        %v2597 = vunpack.c.l.s8.bf16 %v1085
        %v2598 = vunpack.c.l.s8.bf16 %v1086
        %v2599 = vunpack.c.l.s8.bf16 %v1087
        %v2600 = vunpack.c.l.s8.bf16 %v1088
        %v2601 = vunpack.c.h.s8.bf16 %v1065
        %v2602 = vunpack.c.h.s8.bf16 %v1066
        %v2603 = vunpack.c.h.s8.bf16 %v1067
        %v2604 = vunpack.c.h.s8.bf16 %v1068
        %v2605 = vunpack.c.h.s8.bf16 %v1069
        %v2606 = vunpack.c.h.s8.bf16 %v1070
        %v2607 = vunpack.c.h.s8.bf16 %v1071
        %v2608 = vunpack.c.h.s8.bf16 %v1072
        %v2609 = vunpack.c.h.s8.bf16 %v1073
        %v2610 = vunpack.c.h.s8.bf16 %v1074
        %v2611 = vunpack.c.h.s8.bf16 %v1075
        %v2612 = vunpack.c.h.s8.bf16 %v1076
        %v2613 = vunpack.c.h.s8.bf16 %v1077
        %v2614 = vunpack.c.h.s8.bf16 %v1078
        %v2615 = vunpack.c.h.s8.bf16 %v1079
        %v2616 = vunpack.c.h.s8.bf16 %v1080
        %v2617 = vunpack.c.h.s8.bf16 %v1081
        %v2618 = vunpack.c.h.s8.bf16 %v1082
        %v2619 = vunpack.c.h.s8.bf16 %v1083
        %v2620 = vunpack.c.h.s8.bf16 %v1084
        %v2621 = vunpack.c.h.s8.bf16 %v1085
        %v2622 = vunpack.c.h.s8.bf16 %v1086
        %v2623 = vunpack.c.h.s8.bf16 %v1087
        %v2624 = vunpack.c.h.s8.bf16 %v1088
        %2625 = vmatprep.subr.bf16.mxu0 %v1258
        %2626 = vmatpush1.bf16.msra.mxu0 %v1257
        %2627 = vmatprep.subr.bf16.mxu0 %v1234
        %2628 = vmatpush1.bf16.msra.mxu0 %v1233
        %2629 = vmatprep.subr.bf16.mxu0 %v1210
        %2630 = vmatpush1.bf16.msra.mxu0 %v1209
        %2631 = vmatprep.subr.bf16.mxu0 %v1186
        %2632 = vmatpush1.bf16.msra.mxu0 %v1185
        %2633 = vmatprep.subr.bf16.mxu0 %v1162
        %2634 = vmatpush1.bf16.msra.mxu0 %v1161
        %2635 = vmatprep.subr.bf16.mxu0 %v1138
        %2636 = vmatpush1.bf16.msra.mxu0 %v1137
        %2637 = vmatprep.subr.bf16.mxu0 %v1114
        %2638 = vmatpush1.bf16.msra.mxu0 %v1113
        %2639 = vmatprep.subr.bf16.mxu0 %v1090
        %2640 = vmatpush1.bf16.msra.mxu0 %v1089
        %2641 = vmatprep.subr.bf16.mxu0 %v1450
        %2642 = vmatpush2.bf16.msra.mxu0 %v1449
        %2643 = vmatprep.subr.bf16.mxu0 %v1426
        %2644 = vmatpush2.bf16.msra.mxu0 %v1425
        %2645 = vmatprep.subr.bf16.mxu0 %v1402
        %2646 = vmatpush2.bf16.msra.mxu0 %v1401
        %2647 = vmatprep.subr.bf16.mxu0 %v1378
        %2648 = vmatpush2.bf16.msra.mxu0 %v1377
        %2649 = vmatprep.subr.bf16.mxu0 %v1354
        %2650 = vmatpush2.bf16.msra.mxu0 %v1353
        %2651 = vmatprep.subr.bf16.mxu0 %v1330
        %2652 = vmatpush2.bf16.msra.mxu0 %v1329
        %2653 = vmatprep.subr.bf16.mxu0 %v1306
        %2654 = vmatpush2.bf16.msra.mxu0 %v1305
        %2655 = vmatprep.subr.bf16.mxu0 %v1282
        %2656 = vmatpush2.bf16.msra.mxu0 %v1281
        %2657 = vmatprep.mubr.bf16.mxu0 %v314
        %2658 = vmatmul.mubr.bf16.gmra.mxu0 %v313
        %v2659 = vpop.f32.mrf.mxu0
        %v2660 = vadd.f32 0.0, %v2659
        %v2661 = vpop.f32.mrf.mxu0
        %v2662 = vadd.f32 0.0, %v2661
        %v2663 = vpop.f32.mrf.mxu0
        %v2664 = vpop.f32.mrf.mxu0
        %2665 = vdwg.mxu0
        %2666 = vmatprep.subr.bf16.mxu0 %v1642
        %2667 = vmatpush1.bf16.msra.mxu0 %v1641
        %2668 = vmatprep.subr.bf16.mxu0 %v1618
        %2669 = vmatpush1.bf16.msra.mxu0 %v1617
        %2670 = vmatprep.subr.bf16.mxu0 %v1594
        %2671 = vmatpush1.bf16.msra.mxu0 %v1593
        %2672 = vmatprep.subr.bf16.mxu0 %v1570
        %2673 = vmatpush1.bf16.msra.mxu0 %v1569
        %2674 = vmatprep.subr.bf16.mxu0 %v1546
        %2675 = vmatpush1.bf16.msra.mxu0 %v1545
        %2676 = vmatprep.subr.bf16.mxu0 %v1522
        %2677 = vmatpush1.bf16.msra.mxu0 %v1521
        %2678 = vmatprep.subr.bf16.mxu0 %v1498
        %2679 = vmatpush1.bf16.msra.mxu0 %v1497
        %2680 = vmatprep.subr.bf16.mxu0 %v1474
        %2681 = vmatpush1.bf16.msra.mxu0 %v1473
        %2682 = vmatprep.subr.bf16.mxu0 %v1834
        %2683 = vmatpush2.bf16.msra.mxu0 %v1833
        %2684 = vmatprep.subr.bf16.mxu0 %v1810
        %2685 = vmatpush2.bf16.msra.mxu0 %v1809
        %2686 = vmatprep.subr.bf16.mxu0 %v1786
        %2687 = vmatpush2.bf16.msra.mxu0 %v1785
        %2688 = vmatprep.subr.bf16.mxu0 %v1762
        %2689 = vmatpush2.bf16.msra.mxu0 %v1761
        %2690 = vmatprep.subr.bf16.mxu0 %v1738
        %2691 = vmatpush2.bf16.msra.mxu0 %v1737
        %2692 = vmatprep.subr.bf16.mxu0 %v1714
        %2693 = vmatpush2.bf16.msra.mxu0 %v1713
        %2694 = vmatprep.subr.bf16.mxu0 %v1690
        %2695 = vmatpush2.bf16.msra.mxu0 %v1689
        %2696 = vmatprep.subr.bf16.mxu0 %v1666
        %2697 = vmatpush2.bf16.msra.mxu0 %v1665
        %2698 = vmatprep.mubr.bf16.mxu0 %v316
        %2699 = vmatmul.mubr.bf16.gmra.mxu0 %v315
        %v2700 = vpop.f32.mrf.mxu0
        %v2701 = vadd.f32 %v2660, %v2700
        %v2702 = vpop.f32.mrf.mxu0
        %v2703 = vadd.f32 %v2662, %v2702
        %v2704 = vpop.f32.mrf.mxu0
        %v2705 = vpop.f32.mrf.mxu0
        %2706 = vdwg.mxu0
        %2707 = vmatprep.subr.bf16.mxu0 %v2026
        %2708 = vmatpush1.bf16.msra.mxu0 %v2025
        %2709 = vmatprep.subr.bf16.mxu0 %v2002
        %2710 = vmatpush1.bf16.msra.mxu0 %v2001
        %2711 = vmatprep.subr.bf16.mxu0 %v1978
        %2712 = vmatpush1.bf16.msra.mxu0 %v1977
        %2713 = vmatprep.subr.bf16.mxu0 %v1954
        %2714 = vmatpush1.bf16.msra.mxu0 %v1953
        %2715 = vmatprep.subr.bf16.mxu0 %v1930
        %2716 = vmatpush1.bf16.msra.mxu0 %v1929
        %2717 = vmatprep.subr.bf16.mxu0 %v1906
        %2718 = vmatpush1.bf16.msra.mxu0 %v1905
        %2719 = vmatprep.subr.bf16.mxu0 %v1882
        %2720 = vmatpush1.bf16.msra.mxu0 %v1881
        %2721 = vmatprep.subr.bf16.mxu0 %v1858
        %2722 = vmatpush1.bf16.msra.mxu0 %v1857
        %2723 = vmatprep.subr.bf16.mxu0 %v2218
        %2724 = vmatpush2.bf16.msra.mxu0 %v2217
        %2725 = vmatprep.subr.bf16.mxu0 %v2194
        %2726 = vmatpush2.bf16.msra.mxu0 %v2193
        %2727 = vmatprep.subr.bf16.mxu0 %v2170
        %2728 = vmatpush2.bf16.msra.mxu0 %v2169
        %2729 = vmatprep.subr.bf16.mxu0 %v2146
        %2730 = vmatpush2.bf16.msra.mxu0 %v2145
        %2731 = vmatprep.subr.bf16.mxu0 %v2122
        %2732 = vmatpush2.bf16.msra.mxu0 %v2121
        %2733 = vmatprep.subr.bf16.mxu0 %v2098
        %2734 = vmatpush2.bf16.msra.mxu0 %v2097
        %2735 = vmatprep.subr.bf16.mxu0 %v2074
        %2736 = vmatpush2.bf16.msra.mxu0 %v2073
        %2737 = vmatprep.subr.bf16.mxu0 %v2050
        %2738 = vmatpush2.bf16.msra.mxu0 %v2049
        %2739 = vmatprep.mubr.bf16.mxu0 %v318
        %2740 = vmatmul.mubr.bf16.gmra.mxu0 %v317
        %v2741 = vpop.f32.mrf.mxu0
        %v2742 = vadd.f32 %v2701, %v2741
        %v2743 = vpop.f32.mrf.mxu0
        %v2744 = vadd.f32 %v2703, %v2743
        %v2745 = vpop.f32.mrf.mxu0
        %v2746 = vpop.f32.mrf.mxu0
        %2747 = vdwg.mxu0
        %2748 = vmatprep.subr.bf16.mxu0 %v2410
        %2749 = vmatpush1.bf16.msra.mxu0 %v2409
        %2750 = vmatprep.subr.bf16.mxu0 %v2386
        %2751 = vmatpush1.bf16.msra.mxu0 %v2385
        %2752 = vmatprep.subr.bf16.mxu0 %v2362
        %2753 = vmatpush1.bf16.msra.mxu0 %v2361
        %2754 = vmatprep.subr.bf16.mxu0 %v2338
        %2755 = vmatpush1.bf16.msra.mxu0 %v2337
        %2756 = vmatprep.subr.bf16.mxu0 %v2314
        %2757 = vmatpush1.bf16.msra.mxu0 %v2313
        %2758 = vmatprep.subr.bf16.mxu0 %v2290
        %2759 = vmatpush1.bf16.msra.mxu0 %v2289
        %2760 = vmatprep.subr.bf16.mxu0 %v2266
        %2761 = vmatpush1.bf16.msra.mxu0 %v2265
        %2762 = vmatprep.subr.bf16.mxu0 %v2242
        %2763 = vmatpush1.bf16.msra.mxu0 %v2241
        %2764 = vmatprep.subr.bf16.mxu0 %v2602
        %2765 = vmatpush2.bf16.msra.mxu0 %v2601
        %2766 = vmatprep.subr.bf16.mxu0 %v2578
        %2767 = vmatpush2.bf16.msra.mxu0 %v2577
        %2768 = vmatprep.subr.bf16.mxu0 %v2554
        %2769 = vmatpush2.bf16.msra.mxu0 %v2553
        %2770 = vmatprep.subr.bf16.mxu0 %v2530
        %2771 = vmatpush2.bf16.msra.mxu0 %v2529
        %2772 = vmatprep.subr.bf16.mxu0 %v2506
        %2773 = vmatpush2.bf16.msra.mxu0 %v2505
        %2774 = vmatprep.subr.bf16.mxu0 %v2482
        %2775 = vmatpush2.bf16.msra.mxu0 %v2481
        %2776 = vmatprep.subr.bf16.mxu0 %v2458
        %2777 = vmatpush2.bf16.msra.mxu0 %v2457
        %2778 = vmatprep.subr.bf16.mxu0 %v2434
        %2779 = vmatpush2.bf16.msra.mxu0 %v2433
        %2780 = vmatprep.mubr.bf16.mxu0 %v320
        %2781 = vmatmul.mubr.bf16.gmra.mxu0 %v319
        %v2782 = vpop.f32.mrf.mxu0
        %v2783 = vadd.f32 %v2742, %v2782
        %v2784 = vpop.f32.mrf.mxu0
        %v2785 = vadd.f32 %v2744, %v2784
        %v2786 = vpop.f32.mrf.mxu0
        %v2787 = vpop.f32.mrf.mxu0
        %2788 = vdwg.mxu0
        %2789 = vmatprep.subr.bf16.mxu0 %v1260
        %2790 = vmatpush1.bf16.msra.mxu0 %v1259
        %2791 = vmatprep.subr.bf16.mxu0 %v1236
        %2792 = vmatpush1.bf16.msra.mxu0 %v1235
        %2793 = vmatprep.subr.bf16.mxu0 %v1212
        %2794 = vmatpush1.bf16.msra.mxu0 %v1211
        %2795 = vmatprep.subr.bf16.mxu0 %v1188
        %2796 = vmatpush1.bf16.msra.mxu0 %v1187
        %2797 = vmatprep.subr.bf16.mxu0 %v1164
        %2798 = vmatpush1.bf16.msra.mxu0 %v1163
        %2799 = vmatprep.subr.bf16.mxu0 %v1140
        %2800 = vmatpush1.bf16.msra.mxu0 %v1139
        %2801 = vmatprep.subr.bf16.mxu0 %v1116
        %2802 = vmatpush1.bf16.msra.mxu0 %v1115
        %2803 = vmatprep.subr.bf16.mxu0 %v1092
        %2804 = vmatpush1.bf16.msra.mxu0 %v1091
        %2805 = vmatprep.subr.bf16.mxu0 %v1452
        %2806 = vmatpush2.bf16.msra.mxu0 %v1451
        %2807 = vmatprep.subr.bf16.mxu0 %v1428
        %2808 = vmatpush2.bf16.msra.mxu0 %v1427
        %2809 = vmatprep.subr.bf16.mxu0 %v1404
        %2810 = vmatpush2.bf16.msra.mxu0 %v1403
        %2811 = vmatprep.subr.bf16.mxu0 %v1380
        %2812 = vmatpush2.bf16.msra.mxu0 %v1379
        %2813 = vmatprep.subr.bf16.mxu0 %v1356
        %2814 = vmatpush2.bf16.msra.mxu0 %v1355
        %2815 = vmatprep.subr.bf16.mxu0 %v1332
        %2816 = vmatpush2.bf16.msra.mxu0 %v1331
        %2817 = vmatprep.subr.bf16.mxu0 %v1308
        %2818 = vmatpush2.bf16.msra.mxu0 %v1307
        %2819 = vmatprep.subr.bf16.mxu0 %v1284
        %2820 = vmatpush2.bf16.msra.mxu0 %v1283
        %2821 = vmatprep.mubr.bf16.mxu0 %v314
        %2822 = vmatmul.mubr.bf16.gmra.mxu0 %v313
        %v2823 = vpop.f32.mrf.mxu0
        %v2824 = vadd.f32 0.0, %v2823
        %v2825 = vpop.f32.mrf.mxu0
        %v2826 = vadd.f32 0.0, %v2825
        %v2827 = vpop.f32.mrf.mxu0
        %v2828 = vpop.f32.mrf.mxu0
        %2829 = vdwg.mxu0
        %2830 = vmatprep.subr.bf16.mxu0 %v1644
        %2831 = vmatpush1.bf16.msra.mxu0 %v1643
        %2832 = vmatprep.subr.bf16.mxu0 %v1620
        %2833 = vmatpush1.bf16.msra.mxu0 %v1619
        %2834 = vmatprep.subr.bf16.mxu0 %v1596
        %2835 = vmatpush1.bf16.msra.mxu0 %v1595
        %2836 = vmatprep.subr.bf16.mxu0 %v1572
        %2837 = vmatpush1.bf16.msra.mxu0 %v1571
        %2838 = vmatprep.subr.bf16.mxu0 %v1548
        %2839 = vmatpush1.bf16.msra.mxu0 %v1547
        %2840 = vmatprep.subr.bf16.mxu0 %v1524
        %2841 = vmatpush1.bf16.msra.mxu0 %v1523
        %2842 = vmatprep.subr.bf16.mxu0 %v1500
        %2843 = vmatpush1.bf16.msra.mxu0 %v1499
        %2844 = vmatprep.subr.bf16.mxu0 %v1476
        %2845 = vmatpush1.bf16.msra.mxu0 %v1475
        %2846 = vmatprep.subr.bf16.mxu0 %v1836
        %2847 = vmatpush2.bf16.msra.mxu0 %v1835
        %2848 = vmatprep.subr.bf16.mxu0 %v1812
        %2849 = vmatpush2.bf16.msra.mxu0 %v1811
        %2850 = vmatprep.subr.bf16.mxu0 %v1788
        %2851 = vmatpush2.bf16.msra.mxu0 %v1787
        %2852 = vmatprep.subr.bf16.mxu0 %v1764
        %2853 = vmatpush2.bf16.msra.mxu0 %v1763
        %2854 = vmatprep.subr.bf16.mxu0 %v1740
        %2855 = vmatpush2.bf16.msra.mxu0 %v1739
        %2856 = vmatprep.subr.bf16.mxu0 %v1716
        %2857 = vmatpush2.bf16.msra.mxu0 %v1715
        %2858 = vmatprep.subr.bf16.mxu0 %v1692
        %2859 = vmatpush2.bf16.msra.mxu0 %v1691
        %2860 = vmatprep.subr.bf16.mxu0 %v1668
        %2861 = vmatpush2.bf16.msra.mxu0 %v1667
        %2862 = vmatprep.mubr.bf16.mxu0 %v316
        %2863 = vmatmul.mubr.bf16.gmra.mxu0 %v315
        %v2864 = vpop.f32.mrf.mxu0
        %v2865 = vadd.f32 %v2824, %v2864
        %v2866 = vpop.f32.mrf.mxu0
        %v2867 = vadd.f32 %v2826, %v2866
        %v2868 = vpop.f32.mrf.mxu0
        %v2869 = vpop.f32.mrf.mxu0
        %2870 = vdwg.mxu0
        %2871 = vmatprep.subr.bf16.mxu0 %v2028
        %2872 = vmatpush1.bf16.msra.mxu0 %v2027
        %2873 = vmatprep.subr.bf16.mxu0 %v2004
        %2874 = vmatpush1.bf16.msra.mxu0 %v2003
        %2875 = vmatprep.subr.bf16.mxu0 %v1980
        %2876 = vmatpush1.bf16.msra.mxu0 %v1979
        %2877 = vmatprep.subr.bf16.mxu0 %v1956
        %2878 = vmatpush1.bf16.msra.mxu0 %v1955
        %2879 = vmatprep.subr.bf16.mxu0 %v1932
        %2880 = vmatpush1.bf16.msra.mxu0 %v1931
        %2881 = vmatprep.subr.bf16.mxu0 %v1908
        %2882 = vmatpush1.bf16.msra.mxu0 %v1907
        %2883 = vmatprep.subr.bf16.mxu0 %v1884
        %2884 = vmatpush1.bf16.msra.mxu0 %v1883
        %2885 = vmatprep.subr.bf16.mxu0 %v1860
        %2886 = vmatpush1.bf16.msra.mxu0 %v1859
        %2887 = vmatprep.subr.bf16.mxu0 %v2220
        %2888 = vmatpush2.bf16.msra.mxu0 %v2219
        %2889 = vmatprep.subr.bf16.mxu0 %v2196
        %2890 = vmatpush2.bf16.msra.mxu0 %v2195
        %2891 = vmatprep.subr.bf16.mxu0 %v2172
        %2892 = vmatpush2.bf16.msra.mxu0 %v2171
        %2893 = vmatprep.subr.bf16.mxu0 %v2148
        %2894 = vmatpush2.bf16.msra.mxu0 %v2147
        %2895 = vmatprep.subr.bf16.mxu0 %v2124
        %2896 = vmatpush2.bf16.msra.mxu0 %v2123
        %2897 = vmatprep.subr.bf16.mxu0 %v2100
        %2898 = vmatpush2.bf16.msra.mxu0 %v2099
        %2899 = vmatprep.subr.bf16.mxu0 %v2076
        %2900 = vmatpush2.bf16.msra.mxu0 %v2075
        %2901 = vmatprep.subr.bf16.mxu0 %v2052
        %2902 = vmatpush2.bf16.msra.mxu0 %v2051
        %2903 = vmatprep.mubr.bf16.mxu0 %v318
        %2904 = vmatmul.mubr.bf16.gmra.mxu0 %v317
        %v2905 = vpop.f32.mrf.mxu0
        %v2906 = vadd.f32 %v2865, %v2905
        %v2907 = vpop.f32.mrf.mxu0
        %v2908 = vadd.f32 %v2867, %v2907
        %v2909 = vpop.f32.mrf.mxu0
        %v2910 = vpop.f32.mrf.mxu0
        %2911 = vdwg.mxu0
        %2912 = vmatprep.subr.bf16.mxu0 %v2412
        %2913 = vmatpush1.bf16.msra.mxu0 %v2411
        %2914 = vmatprep.subr.bf16.mxu0 %v2388
        %2915 = vmatpush1.bf16.msra.mxu0 %v2387
        %2916 = vmatprep.subr.bf16.mxu0 %v2364
        %2917 = vmatpush1.bf16.msra.mxu0 %v2363
        %2918 = vmatprep.subr.bf16.mxu0 %v2340
        %2919 = vmatpush1.bf16.msra.mxu0 %v2339
        %2920 = vmatprep.subr.bf16.mxu0 %v2316
        %2921 = vmatpush1.bf16.msra.mxu0 %v2315
        %2922 = vmatprep.subr.bf16.mxu0 %v2292
        %2923 = vmatpush1.bf16.msra.mxu0 %v2291
        %2924 = vmatprep.subr.bf16.mxu0 %v2268
        %2925 = vmatpush1.bf16.msra.mxu0 %v2267
        %2926 = vmatprep.subr.bf16.mxu0 %v2244
        %2927 = vmatpush1.bf16.msra.mxu0 %v2243
        %2928 = vmatprep.subr.bf16.mxu0 %v2604
        %2929 = vmatpush2.bf16.msra.mxu0 %v2603
        %2930 = vmatprep.subr.bf16.mxu0 %v2580
        %2931 = vmatpush2.bf16.msra.mxu0 %v2579
        %2932 = vmatprep.subr.bf16.mxu0 %v2556
        %2933 = vmatpush2.bf16.msra.mxu0 %v2555
        %2934 = vmatprep.subr.bf16.mxu0 %v2532
        %2935 = vmatpush2.bf16.msra.mxu0 %v2531
        %2936 = vmatprep.subr.bf16.mxu0 %v2508
        %2937 = vmatpush2.bf16.msra.mxu0 %v2507
        %2938 = vmatprep.subr.bf16.mxu0 %v2484
        %2939 = vmatpush2.bf16.msra.mxu0 %v2483
        %2940 = vmatprep.subr.bf16.mxu0 %v2460
        %2941 = vmatpush2.bf16.msra.mxu0 %v2459
        %2942 = vmatprep.subr.bf16.mxu0 %v2436
        %2943 = vmatpush2.bf16.msra.mxu0 %v2435
        %2944 = vmatprep.mubr.bf16.mxu0 %v320
        %2945 = vmatmul.mubr.bf16.gmra.mxu0 %v319
        %v2946 = vpop.f32.mrf.mxu0
        %v2947 = vadd.f32 %v2906, %v2946
        %v2948 = vpop.f32.mrf.mxu0
        %v2949 = vadd.f32 %v2908, %v2948
        %v2950 = vpop.f32.mrf.mxu0
        %v2951 = vpop.f32.mrf.mxu0
        %2952 = vdwg.mxu0
        %2953 = vmatprep.subr.bf16.mxu0 %v1262
        %2954 = vmatpush1.bf16.msra.mxu0 %v1261
        %2955 = vmatprep.subr.bf16.mxu0 %v1238
        %2956 = vmatpush1.bf16.msra.mxu0 %v1237
        %2957 = vmatprep.subr.bf16.mxu0 %v1214
        %2958 = vmatpush1.bf16.msra.mxu0 %v1213
        %2959 = vmatprep.subr.bf16.mxu0 %v1190
        %2960 = vmatpush1.bf16.msra.mxu0 %v1189
        %2961 = vmatprep.subr.bf16.mxu0 %v1166
        %2962 = vmatpush1.bf16.msra.mxu0 %v1165
        %2963 = vmatprep.subr.bf16.mxu0 %v1142
        %2964 = vmatpush1.bf16.msra.mxu0 %v1141
        %2965 = vmatprep.subr.bf16.mxu0 %v1118
        %2966 = vmatpush1.bf16.msra.mxu0 %v1117
        %2967 = vmatprep.subr.bf16.mxu0 %v1094
        %2968 = vmatpush1.bf16.msra.mxu0 %v1093
        %2969 = vmatprep.subr.bf16.mxu0 %v1454
        %2970 = vmatpush2.bf16.msra.mxu0 %v1453
        %2971 = vmatprep.subr.bf16.mxu0 %v1430
        %2972 = vmatpush2.bf16.msra.mxu0 %v1429
        %2973 = vmatprep.subr.bf16.mxu0 %v1406
        %2974 = vmatpush2.bf16.msra.mxu0 %v1405
        %2975 = vmatprep.subr.bf16.mxu0 %v1382
        %2976 = vmatpush2.bf16.msra.mxu0 %v1381
        %2977 = vmatprep.subr.bf16.mxu0 %v1358
        %2978 = vmatpush2.bf16.msra.mxu0 %v1357
        %2979 = vmatprep.subr.bf16.mxu0 %v1334
        %2980 = vmatpush2.bf16.msra.mxu0 %v1333
        %2981 = vmatprep.subr.bf16.mxu0 %v1310
        %2982 = vmatpush2.bf16.msra.mxu0 %v1309
        %2983 = vmatprep.subr.bf16.mxu0 %v1286
        %2984 = vmatpush2.bf16.msra.mxu0 %v1285
        %2985 = vmatprep.mubr.bf16.mxu0 %v314
        %2986 = vmatmul.mubr.bf16.gmra.mxu0 %v313
        %v2987 = vpop.f32.mrf.mxu0
        %v2988 = vadd.f32 0.0, %v2987
        %v2989 = vpop.f32.mrf.mxu0
        %v2990 = vadd.f32 0.0, %v2989
        %v2991 = vpop.f32.mrf.mxu0
        %v2992 = vpop.f32.mrf.mxu0
        %2993 = vdwg.mxu0
        %2994 = vmatprep.subr.bf16.mxu0 %v1646
        %2995 = vmatpush1.bf16.msra.mxu0 %v1645
        %2996 = vmatprep.subr.bf16.mxu0 %v1622
        %2997 = vmatpush1.bf16.msra.mxu0 %v1621
        %2998 = vmatprep.subr.bf16.mxu0 %v1598
        %2999 = vmatpush1.bf16.msra.mxu0 %v1597
        %3000 = vmatprep.subr.bf16.mxu0 %v1574
        %3001 = vmatpush1.bf16.msra.mxu0 %v1573
        %3002 = vmatprep.subr.bf16.mxu0 %v1550
        %3003 = vmatpush1.bf16.msra.mxu0 %v1549
        %3004 = vmatprep.subr.bf16.mxu0 %v1526
        %3005 = vmatpush1.bf16.msra.mxu0 %v1525
        %3006 = vmatprep.subr.bf16.mxu0 %v1502
        %3007 = vmatpush1.bf16.msra.mxu0 %v1501
        %3008 = vmatprep.subr.bf16.mxu0 %v1478
        %3009 = vmatpush1.bf16.msra.mxu0 %v1477
        %3010 = vmatprep.subr.bf16.mxu0 %v1838
        %3011 = vmatpush2.bf16.msra.mxu0 %v1837
        %3012 = vmatprep.subr.bf16.mxu0 %v1814
        %3013 = vmatpush2.bf16.msra.mxu0 %v1813
        %3014 = vmatprep.subr.bf16.mxu0 %v1790
        %3015 = vmatpush2.bf16.msra.mxu0 %v1789
        %3016 = vmatprep.subr.bf16.mxu0 %v1766
        %3017 = vmatpush2.bf16.msra.mxu0 %v1765
        %3018 = vmatprep.subr.bf16.mxu0 %v1742
        %3019 = vmatpush2.bf16.msra.mxu0 %v1741
        %3020 = vmatprep.subr.bf16.mxu0 %v1718
        %3021 = vmatpush2.bf16.msra.mxu0 %v1717
        %3022 = vmatprep.subr.bf16.mxu0 %v1694
        %3023 = vmatpush2.bf16.msra.mxu0 %v1693
        %3024 = vmatprep.subr.bf16.mxu0 %v1670
        %3025 = vmatpush2.bf16.msra.mxu0 %v1669
        %3026 = vmatprep.mubr.bf16.mxu0 %v316
        %3027 = vmatmul.mubr.bf16.gmra.mxu0 %v315
        %v3028 = vpop.f32.mrf.mxu0
        %v3029 = vadd.f32 %v2988, %v3028
        %v3030 = vpop.f32.mrf.mxu0
        %v3031 = vadd.f32 %v2990, %v3030
        %v3032 = vpop.f32.mrf.mxu0
        %v3033 = vpop.f32.mrf.mxu0
        %3034 = vdwg.mxu0
        %3035 = vmatprep.subr.bf16.mxu0 %v2030
        %3036 = vmatpush1.bf16.msra.mxu0 %v2029
        %3037 = vmatprep.subr.bf16.mxu0 %v2006
        %3038 = vmatpush1.bf16.msra.mxu0 %v2005
        %3039 = vmatprep.subr.bf16.mxu0 %v1982
        %3040 = vmatpush1.bf16.msra.mxu0 %v1981
        %3041 = vmatprep.subr.bf16.mxu0 %v1958
        %3042 = vmatpush1.bf16.msra.mxu0 %v1957
        %3043 = vmatprep.subr.bf16.mxu0 %v1934
        %3044 = vmatpush1.bf16.msra.mxu0 %v1933
        %3045 = vmatprep.subr.bf16.mxu0 %v1910
        %3046 = vmatpush1.bf16.msra.mxu0 %v1909
        %3047 = vmatprep.subr.bf16.mxu0 %v1886
        %3048 = vmatpush1.bf16.msra.mxu0 %v1885
        %3049 = vmatprep.subr.bf16.mxu0 %v1862
        %3050 = vmatpush1.bf16.msra.mxu0 %v1861
        %3051 = vmatprep.subr.bf16.mxu0 %v2222
        %3052 = vmatpush2.bf16.msra.mxu0 %v2221
        %3053 = vmatprep.subr.bf16.mxu0 %v2198
        %3054 = vmatpush2.bf16.msra.mxu0 %v2197
        %3055 = vmatprep.subr.bf16.mxu0 %v2174
        %3056 = vmatpush2.bf16.msra.mxu0 %v2173
        %3057 = vmatprep.subr.bf16.mxu0 %v2150
        %3058 = vmatpush2.bf16.msra.mxu0 %v2149
        %3059 = vmatprep.subr.bf16.mxu0 %v2126
        %3060 = vmatpush2.bf16.msra.mxu0 %v2125
        %3061 = vmatprep.subr.bf16.mxu0 %v2102
        %3062 = vmatpush2.bf16.msra.mxu0 %v2101
        %3063 = vmatprep.subr.bf16.mxu0 %v2078
        %3064 = vmatpush2.bf16.msra.mxu0 %v2077
        %3065 = vmatprep.subr.bf16.mxu0 %v2054
        %3066 = vmatpush2.bf16.msra.mxu0 %v2053
        %3067 = vmatprep.mubr.bf16.mxu0 %v318
        %3068 = vmatmul.mubr.bf16.gmra.mxu0 %v317
        %v3069 = vpop.f32.mrf.mxu0
        %v3070 = vadd.f32 %v3029, %v3069
        %v3071 = vpop.f32.mrf.mxu0
        %v3072 = vadd.f32 %v3031, %v3071
        %v3073 = vpop.f32.mrf.mxu0
        %v3074 = vpop.f32.mrf.mxu0
        %3075 = vdwg.mxu0
        %3076 = vmatprep.subr.bf16.mxu0 %v2414
        %3077 = vmatpush1.bf16.msra.mxu0 %v2413
        %3078 = vmatprep.subr.bf16.mxu0 %v2390
        %3079 = vmatpush1.bf16.msra.mxu0 %v2389
        %3080 = vmatprep.subr.bf16.mxu0 %v2366
        %3081 = vmatpush1.bf16.msra.mxu0 %v2365
        %3082 = vmatprep.subr.bf16.mxu0 %v2342
        %3083 = vmatpush1.bf16.msra.mxu0 %v2341
        %3084 = vmatprep.subr.bf16.mxu0 %v2318
        %3085 = vmatpush1.bf16.msra.mxu0 %v2317
        %3086 = vmatprep.subr.bf16.mxu0 %v2294
        %3087 = vmatpush1.bf16.msra.mxu0 %v2293
        %3088 = vmatprep.subr.bf16.mxu0 %v2270
        %3089 = vmatpush1.bf16.msra.mxu0 %v2269
        %3090 = vmatprep.subr.bf16.mxu0 %v2246
        %3091 = vmatpush1.bf16.msra.mxu0 %v2245
        %3092 = vmatprep.subr.bf16.mxu0 %v2606
        %3093 = vmatpush2.bf16.msra.mxu0 %v2605
        %3094 = vmatprep.subr.bf16.mxu0 %v2582
        %3095 = vmatpush2.bf16.msra.mxu0 %v2581
        %3096 = vmatprep.subr.bf16.mxu0 %v2558
        %3097 = vmatpush2.bf16.msra.mxu0 %v2557
        %3098 = vmatprep.subr.bf16.mxu0 %v2534
        %3099 = vmatpush2.bf16.msra.mxu0 %v2533
        %3100 = vmatprep.subr.bf16.mxu0 %v2510
        %3101 = vmatpush2.bf16.msra.mxu0 %v2509
        %3102 = vmatprep.subr.bf16.mxu0 %v2486
        %3103 = vmatpush2.bf16.msra.mxu0 %v2485
        %3104 = vmatprep.subr.bf16.mxu0 %v2462
        %3105 = vmatpush2.bf16.msra.mxu0 %v2461
        %3106 = vmatprep.subr.bf16.mxu0 %v2438
        %3107 = vmatpush2.bf16.msra.mxu0 %v2437
        %3108 = vmatprep.mubr.bf16.mxu0 %v320
        %3109 = vmatmul.mubr.bf16.gmra.mxu0 %v319
        %v3110 = vpop.f32.mrf.mxu0
        %v3111 = vadd.f32 %v3070, %v3110
        %v3112 = vpop.f32.mrf.mxu0
        %v3113 = vadd.f32 %v3072, %v3112
        %v3114 = vpop.f32.mrf.mxu0
        %v3115 = vpop.f32.mrf.mxu0
        %3116 = vdwg.mxu0
        %3117 = vmatprep.subr.bf16.mxu0 %v1264
        %3118 = vmatpush1.bf16.msra.mxu0 %v1263
        %3119 = vmatprep.subr.bf16.mxu0 %v1240
        %3120 = vmatpush1.bf16.msra.mxu0 %v1239
        %3121 = vmatprep.subr.bf16.mxu0 %v1216
        %3122 = vmatpush1.bf16.msra.mxu0 %v1215
        %3123 = vmatprep.subr.bf16.mxu0 %v1192
        %3124 = vmatpush1.bf16.msra.mxu0 %v1191
        %3125 = vmatprep.subr.bf16.mxu0 %v1168
        %3126 = vmatpush1.bf16.msra.mxu0 %v1167
        %3127 = vmatprep.subr.bf16.mxu0 %v1144
        %3128 = vmatpush1.bf16.msra.mxu0 %v1143
        %3129 = vmatprep.subr.bf16.mxu0 %v1120
        %3130 = vmatpush1.bf16.msra.mxu0 %v1119
        %3131 = vmatprep.subr.bf16.mxu0 %v1096
        %3132 = vmatpush1.bf16.msra.mxu0 %v1095
        %3133 = vmatprep.subr.bf16.mxu0 %v1456
        %3134 = vmatpush2.bf16.msra.mxu0 %v1455
        %3135 = vmatprep.subr.bf16.mxu0 %v1432
        %3136 = vmatpush2.bf16.msra.mxu0 %v1431
        %3137 = vmatprep.subr.bf16.mxu0 %v1408
        %3138 = vmatpush2.bf16.msra.mxu0 %v1407
        %3139 = vmatprep.subr.bf16.mxu0 %v1384
        %3140 = vmatpush2.bf16.msra.mxu0 %v1383
        %3141 = vmatprep.subr.bf16.mxu0 %v1360
        %3142 = vmatpush2.bf16.msra.mxu0 %v1359
        %3143 = vmatprep.subr.bf16.mxu0 %v1336
        %3144 = vmatpush2.bf16.msra.mxu0 %v1335
        %3145 = vmatprep.subr.bf16.mxu0 %v1312
        %3146 = vmatpush2.bf16.msra.mxu0 %v1311
        %3147 = vmatprep.subr.bf16.mxu0 %v1288
        %3148 = vmatpush2.bf16.msra.mxu0 %v1287
        %3149 = vmatprep.mubr.bf16.mxu0 %v314
        %3150 = vmatmul.mubr.bf16.gmra.mxu0 %v313
        %v3151 = vpop.f32.mrf.mxu0
        %v3152 = vadd.f32 0.0, %v3151
        %v3153 = vpop.f32.mrf.mxu0
        %v3154 = vadd.f32 0.0, %v3153
        %v3155 = vpop.f32.mrf.mxu0
        %v3156 = vpop.f32.mrf.mxu0
        %3157 = vdwg.mxu0
        %3158 = vmatprep.subr.bf16.mxu0 %v1648
        %3159 = vmatpush1.bf16.msra.mxu0 %v1647
        %3160 = vmatprep.subr.bf16.mxu0 %v1624
        %3161 = vmatpush1.bf16.msra.mxu0 %v1623
        %3162 = vmatprep.subr.bf16.mxu0 %v1600
        %3163 = vmatpush1.bf16.msra.mxu0 %v1599
        %3164 = vmatprep.subr.bf16.mxu0 %v1576
        %3165 = vmatpush1.bf16.msra.mxu0 %v1575
        %3166 = vmatprep.subr.bf16.mxu0 %v1552
        %3167 = vmatpush1.bf16.msra.mxu0 %v1551
        %3168 = vmatprep.subr.bf16.mxu0 %v1528
        %3169 = vmatpush1.bf16.msra.mxu0 %v1527
        %3170 = vmatprep.subr.bf16.mxu0 %v1504
        %3171 = vmatpush1.bf16.msra.mxu0 %v1503
        %3172 = vmatprep.subr.bf16.mxu0 %v1480
        %3173 = vmatpush1.bf16.msra.mxu0 %v1479
        %3174 = vmatprep.subr.bf16.mxu0 %v1840
        %3175 = vmatpush2.bf16.msra.mxu0 %v1839
        %3176 = vmatprep.subr.bf16.mxu0 %v1816
        %3177 = vmatpush2.bf16.msra.mxu0 %v1815
        %3178 = vmatprep.subr.bf16.mxu0 %v1792
        %3179 = vmatpush2.bf16.msra.mxu0 %v1791
        %3180 = vmatprep.subr.bf16.mxu0 %v1768
        %3181 = vmatpush2.bf16.msra.mxu0 %v1767
        %3182 = vmatprep.subr.bf16.mxu0 %v1744
        %3183 = vmatpush2.bf16.msra.mxu0 %v1743
        %3184 = vmatprep.subr.bf16.mxu0 %v1720
        %3185 = vmatpush2.bf16.msra.mxu0 %v1719
        %3186 = vmatprep.subr.bf16.mxu0 %v1696
        %3187 = vmatpush2.bf16.msra.mxu0 %v1695
        %3188 = vmatprep.subr.bf16.mxu0 %v1672
        %3189 = vmatpush2.bf16.msra.mxu0 %v1671
        %3190 = vmatprep.mubr.bf16.mxu0 %v316
        %3191 = vmatmul.mubr.bf16.gmra.mxu0 %v315
        %v3192 = vpop.f32.mrf.mxu0
        %v3193 = vadd.f32 %v3152, %v3192
        %v3194 = vpop.f32.mrf.mxu0
        %v3195 = vadd.f32 %v3154, %v3194
        %v3196 = vpop.f32.mrf.mxu0
        %v3197 = vpop.f32.mrf.mxu0
        %3198 = vdwg.mxu0
        %3199 = vmatprep.subr.bf16.mxu0 %v2032
        %3200 = vmatpush1.bf16.msra.mxu0 %v2031
        %3201 = vmatprep.subr.bf16.mxu0 %v2008
        %3202 = vmatpush1.bf16.msra.mxu0 %v2007
        %3203 = vmatprep.subr.bf16.mxu0 %v1984
        %3204 = vmatpush1.bf16.msra.mxu0 %v1983
        %3205 = vmatprep.subr.bf16.mxu0 %v1960
        %3206 = vmatpush1.bf16.msra.mxu0 %v1959
        %3207 = vmatprep.subr.bf16.mxu0 %v1936
        %3208 = vmatpush1.bf16.msra.mxu0 %v1935
        %3209 = vmatprep.subr.bf16.mxu0 %v1912
        %3210 = vmatpush1.bf16.msra.mxu0 %v1911
        %3211 = vmatprep.subr.bf16.mxu0 %v1888
        %3212 = vmatpush1.bf16.msra.mxu0 %v1887
        %3213 = vmatprep.subr.bf16.mxu0 %v1864
        %3214 = vmatpush1.bf16.msra.mxu0 %v1863
        %3215 = vmatprep.subr.bf16.mxu0 %v2224
        %3216 = vmatpush2.bf16.msra.mxu0 %v2223
        %3217 = vmatprep.subr.bf16.mxu0 %v2200
        %3218 = vmatpush2.bf16.msra.mxu0 %v2199
        %3219 = vmatprep.subr.bf16.mxu0 %v2176
        %3220 = vmatpush2.bf16.msra.mxu0 %v2175
        %3221 = vmatprep.subr.bf16.mxu0 %v2152
        %3222 = vmatpush2.bf16.msra.mxu0 %v2151
        %3223 = vmatprep.subr.bf16.mxu0 %v2128
        %3224 = vmatpush2.bf16.msra.mxu0 %v2127
        %3225 = vmatprep.subr.bf16.mxu0 %v2104
        %3226 = vmatpush2.bf16.msra.mxu0 %v2103
        %3227 = vmatprep.subr.bf16.mxu0 %v2080
        %3228 = vmatpush2.bf16.msra.mxu0 %v2079
        %3229 = vmatprep.subr.bf16.mxu0 %v2056
        %3230 = vmatpush2.bf16.msra.mxu0 %v2055
        %3231 = vmatprep.mubr.bf16.mxu0 %v318
        %3232 = vmatmul.mubr.bf16.gmra.mxu0 %v317
        %v3233 = vpop.f32.mrf.mxu0
        %v3234 = vadd.f32 %v3193, %v3233
        %v3235 = vpop.f32.mrf.mxu0
        %v3236 = vadd.f32 %v3195, %v3235
        %v3237 = vpop.f32.mrf.mxu0
        %v3238 = vpop.f32.mrf.mxu0
        %3239 = vdwg.mxu0
        %3240 = vmatprep.subr.bf16.mxu0 %v2416
        %3241 = vmatpush1.bf16.msra.mxu0 %v2415
        %3242 = vmatprep.subr.bf16.mxu0 %v2392
        %3243 = vmatpush1.bf16.msra.mxu0 %v2391
        %3244 = vmatprep.subr.bf16.mxu0 %v2368
        %3245 = vmatpush1.bf16.msra.mxu0 %v2367
        %3246 = vmatprep.subr.bf16.mxu0 %v2344
        %3247 = vmatpush1.bf16.msra.mxu0 %v2343
        %3248 = vmatprep.subr.bf16.mxu0 %v2320
        %3249 = vmatpush1.bf16.msra.mxu0 %v2319
        %3250 = vmatprep.subr.bf16.mxu0 %v2296
        %3251 = vmatpush1.bf16.msra.mxu0 %v2295
        %3252 = vmatprep.subr.bf16.mxu0 %v2272
        %3253 = vmatpush1.bf16.msra.mxu0 %v2271
        %3254 = vmatprep.subr.bf16.mxu0 %v2248
        %3255 = vmatpush1.bf16.msra.mxu0 %v2247
        %3256 = vmatprep.subr.bf16.mxu0 %v2608
        %3257 = vmatpush2.bf16.msra.mxu0 %v2607
        %3258 = vmatprep.subr.bf16.mxu0 %v2584
        %3259 = vmatpush2.bf16.msra.mxu0 %v2583
        %3260 = vmatprep.subr.bf16.mxu0 %v2560
        %3261 = vmatpush2.bf16.msra.mxu0 %v2559
        %3262 = vmatprep.subr.bf16.mxu0 %v2536
        %3263 = vmatpush2.bf16.msra.mxu0 %v2535
        %3264 = vmatprep.subr.bf16.mxu0 %v2512
        %3265 = vmatpush2.bf16.msra.mxu0 %v2511
        %3266 = vmatprep.subr.bf16.mxu0 %v2488
        %3267 = vmatpush2.bf16.msra.mxu0 %v2487
        %3268 = vmatprep.subr.bf16.mxu0 %v2464
        %3269 = vmatpush2.bf16.msra.mxu0 %v2463
        %3270 = vmatprep.subr.bf16.mxu0 %v2440
        %3271 = vmatpush2.bf16.msra.mxu0 %v2439
        %3272 = vmatprep.mubr.bf16.mxu0 %v320
        %3273 = vmatmul.mubr.bf16.gmra.mxu0 %v319
        %v3274 = vpop.f32.mrf.mxu0
        %v3275 = vadd.f32 %v3234, %v3274
        %v3276 = vpop.f32.mrf.mxu0
        %v3277 = vadd.f32 %v3236, %v3276
        %v3278 = vpop.f32.mrf.mxu0
        %v3279 = vpop.f32.mrf.mxu0
        %3280 = vdwg.mxu0
        %3281 = vmatprep.subr.bf16.mxu0 %v1266
        %3282 = vmatpush1.bf16.msra.mxu0 %v1265
        %3283 = vmatprep.subr.bf16.mxu0 %v1242
        %3284 = vmatpush1.bf16.msra.mxu0 %v1241
        %3285 = vmatprep.subr.bf16.mxu0 %v1218
        %3286 = vmatpush1.bf16.msra.mxu0 %v1217
        %3287 = vmatprep.subr.bf16.mxu0 %v1194
        %3288 = vmatpush1.bf16.msra.mxu0 %v1193
        %3289 = vmatprep.subr.bf16.mxu0 %v1170
        %3290 = vmatpush1.bf16.msra.mxu0 %v1169
        %3291 = vmatprep.subr.bf16.mxu0 %v1146
        %3292 = vmatpush1.bf16.msra.mxu0 %v1145
        %3293 = vmatprep.subr.bf16.mxu0 %v1122
        %3294 = vmatpush1.bf16.msra.mxu0 %v1121
        %3295 = vmatprep.subr.bf16.mxu0 %v1098
        %3296 = vmatpush1.bf16.msra.mxu0 %v1097
        %3297 = vmatprep.subr.bf16.mxu0 %v1458
        %3298 = vmatpush2.bf16.msra.mxu0 %v1457
        %3299 = vmatprep.subr.bf16.mxu0 %v1434
        %3300 = vmatpush2.bf16.msra.mxu0 %v1433
        %3301 = vmatprep.subr.bf16.mxu0 %v1410
        %3302 = vmatpush2.bf16.msra.mxu0 %v1409
        %3303 = vmatprep.subr.bf16.mxu0 %v1386
        %3304 = vmatpush2.bf16.msra.mxu0 %v1385
        %3305 = vmatprep.subr.bf16.mxu0 %v1362
        %3306 = vmatpush2.bf16.msra.mxu0 %v1361
        %3307 = vmatprep.subr.bf16.mxu0 %v1338
        %3308 = vmatpush2.bf16.msra.mxu0 %v1337
        %3309 = vmatprep.subr.bf16.mxu0 %v1314
        %3310 = vmatpush2.bf16.msra.mxu0 %v1313
        %3311 = vmatprep.subr.bf16.mxu0 %v1290
        %3312 = vmatpush2.bf16.msra.mxu0 %v1289
        %3313 = vmatprep.mubr.bf16.mxu0 %v314
        %3314 = vmatmul.mubr.bf16.gmra.mxu0 %v313
        %v3315 = vpop.f32.mrf.mxu0
        %v3316 = vadd.f32 0.0, %v3315
        %v3317 = vpop.f32.mrf.mxu0
        %v3318 = vadd.f32 0.0, %v3317
        %v3319 = vpop.f32.mrf.mxu0
        %v3320 = vpop.f32.mrf.mxu0
        %3321 = vdwg.mxu0
        %3322 = vmatprep.subr.bf16.mxu0 %v1650
        %3323 = vmatpush1.bf16.msra.mxu0 %v1649
        %3324 = vmatprep.subr.bf16.mxu0 %v1626
        %3325 = vmatpush1.bf16.msra.mxu0 %v1625
        %3326 = vmatprep.subr.bf16.mxu0 %v1602
        %3327 = vmatpush1.bf16.msra.mxu0 %v1601
        %3328 = vmatprep.subr.bf16.mxu0 %v1578
        %3329 = vmatpush1.bf16.msra.mxu0 %v1577
        %3330 = vmatprep.subr.bf16.mxu0 %v1554
        %3331 = vmatpush1.bf16.msra.mxu0 %v1553
        %3332 = vmatprep.subr.bf16.mxu0 %v1530
        %3333 = vmatpush1.bf16.msra.mxu0 %v1529
        %3334 = vmatprep.subr.bf16.mxu0 %v1506
        %3335 = vmatpush1.bf16.msra.mxu0 %v1505
        %3336 = vmatprep.subr.bf16.mxu0 %v1482
        %3337 = vmatpush1.bf16.msra.mxu0 %v1481
        %3338 = vmatprep.subr.bf16.mxu0 %v1842
        %3339 = vmatpush2.bf16.msra.mxu0 %v1841
        %3340 = vmatprep.subr.bf16.mxu0 %v1818
        %3341 = vmatpush2.bf16.msra.mxu0 %v1817
        %3342 = vmatprep.subr.bf16.mxu0 %v1794
        %3343 = vmatpush2.bf16.msra.mxu0 %v1793
        %3344 = vmatprep.subr.bf16.mxu0 %v1770
        %3345 = vmatpush2.bf16.msra.mxu0 %v1769
        %3346 = vmatprep.subr.bf16.mxu0 %v1746
        %3347 = vmatpush2.bf16.msra.mxu0 %v1745
        %3348 = vmatprep.subr.bf16.mxu0 %v1722
        %3349 = vmatpush2.bf16.msra.mxu0 %v1721
        %3350 = vmatprep.subr.bf16.mxu0 %v1698
        %3351 = vmatpush2.bf16.msra.mxu0 %v1697
        %3352 = vmatprep.subr.bf16.mxu0 %v1674
        %3353 = vmatpush2.bf16.msra.mxu0 %v1673
        %3354 = vmatprep.mubr.bf16.mxu0 %v316
        %3355 = vmatmul.mubr.bf16.gmra.mxu0 %v315
        %v3356 = vpop.f32.mrf.mxu0
        %v3357 = vadd.f32 %v3316, %v3356
        %v3358 = vpop.f32.mrf.mxu0
        %v3359 = vadd.f32 %v3318, %v3358
        %v3360 = vpop.f32.mrf.mxu0
        %v3361 = vpop.f32.mrf.mxu0
        %3362 = vdwg.mxu0
        %3363 = vmatprep.subr.bf16.mxu0 %v2034
        %3364 = vmatpush1.bf16.msra.mxu0 %v2033
        %3365 = vmatprep.subr.bf16.mxu0 %v2010
        %3366 = vmatpush1.bf16.msra.mxu0 %v2009
        %3367 = vmatprep.subr.bf16.mxu0 %v1986
        %3368 = vmatpush1.bf16.msra.mxu0 %v1985
        %3369 = vmatprep.subr.bf16.mxu0 %v1962
        %3370 = vmatpush1.bf16.msra.mxu0 %v1961
        %3371 = vmatprep.subr.bf16.mxu0 %v1938
        %3372 = vmatpush1.bf16.msra.mxu0 %v1937
        %3373 = vmatprep.subr.bf16.mxu0 %v1914
        %3374 = vmatpush1.bf16.msra.mxu0 %v1913
        %3375 = vmatprep.subr.bf16.mxu0 %v1890
        %3376 = vmatpush1.bf16.msra.mxu0 %v1889
        %3377 = vmatprep.subr.bf16.mxu0 %v1866
        %3378 = vmatpush1.bf16.msra.mxu0 %v1865
        %3379 = vmatprep.subr.bf16.mxu0 %v2226
        %3380 = vmatpush2.bf16.msra.mxu0 %v2225
        %3381 = vmatprep.subr.bf16.mxu0 %v2202
        %3382 = vmatpush2.bf16.msra.mxu0 %v2201
        %3383 = vmatprep.subr.bf16.mxu0 %v2178
        %3384 = vmatpush2.bf16.msra.mxu0 %v2177
        %3385 = vmatprep.subr.bf16.mxu0 %v2154
        %3386 = vmatpush2.bf16.msra.mxu0 %v2153
        %3387 = vmatprep.subr.bf16.mxu0 %v2130
        %3388 = vmatpush2.bf16.msra.mxu0 %v2129
        %3389 = vmatprep.subr.bf16.mxu0 %v2106
        %3390 = vmatpush2.bf16.msra.mxu0 %v2105
        %3391 = vmatprep.subr.bf16.mxu0 %v2082
        %3392 = vmatpush2.bf16.msra.mxu0 %v2081
        %3393 = vmatprep.subr.bf16.mxu0 %v2058
        %3394 = vmatpush2.bf16.msra.mxu0 %v2057
        %3395 = vmatprep.mubr.bf16.mxu0 %v318
        %3396 = vmatmul.mubr.bf16.gmra.mxu0 %v317
        %v3397 = vpop.f32.mrf.mxu0
        %v3398 = vadd.f32 %v3357, %v3397
        %v3399 = vpop.f32.mrf.mxu0
        %v3400 = vadd.f32 %v3359, %v3399
        %v3401 = vpop.f32.mrf.mxu0
        %v3402 = vpop.f32.mrf.mxu0
        %3403 = vdwg.mxu0
        %3404 = vmatprep.subr.bf16.mxu0 %v2418
        %3405 = vmatpush1.bf16.msra.mxu0 %v2417
        %3406 = vmatprep.subr.bf16.mxu0 %v2394
        %3407 = vmatpush1.bf16.msra.mxu0 %v2393
        %3408 = vmatprep.subr.bf16.mxu0 %v2370
        %3409 = vmatpush1.bf16.msra.mxu0 %v2369
        %3410 = vmatprep.subr.bf16.mxu0 %v2346
        %3411 = vmatpush1.bf16.msra.mxu0 %v2345
        %3412 = vmatprep.subr.bf16.mxu0 %v2322
        %3413 = vmatpush1.bf16.msra.mxu0 %v2321
        %3414 = vmatprep.subr.bf16.mxu0 %v2298
        %3415 = vmatpush1.bf16.msra.mxu0 %v2297
        %3416 = vmatprep.subr.bf16.mxu0 %v2274
        %3417 = vmatpush1.bf16.msra.mxu0 %v2273
        %3418 = vmatprep.subr.bf16.mxu0 %v2250
        %3419 = vmatpush1.bf16.msra.mxu0 %v2249
        %3420 = vmatprep.subr.bf16.mxu0 %v2610
        %3421 = vmatpush2.bf16.msra.mxu0 %v2609
        %3422 = vmatprep.subr.bf16.mxu0 %v2586
        %3423 = vmatpush2.bf16.msra.mxu0 %v2585
        %3424 = vmatprep.subr.bf16.mxu0 %v2562
        %3425 = vmatpush2.bf16.msra.mxu0 %v2561
        %3426 = vmatprep.subr.bf16.mxu0 %v2538
        %3427 = vmatpush2.bf16.msra.mxu0 %v2537
        %3428 = vmatprep.subr.bf16.mxu0 %v2514
        %3429 = vmatpush2.bf16.msra.mxu0 %v2513
        %3430 = vmatprep.subr.bf16.mxu0 %v2490
        %3431 = vmatpush2.bf16.msra.mxu0 %v2489
        %3432 = vmatprep.subr.bf16.mxu0 %v2466
        %3433 = vmatpush2.bf16.msra.mxu0 %v2465
        %3434 = vmatprep.subr.bf16.mxu0 %v2442
        %3435 = vmatpush2.bf16.msra.mxu0 %v2441
        %3436 = vmatprep.mubr.bf16.mxu0 %v320
        %3437 = vmatmul.mubr.bf16.gmra.mxu0 %v319
        %v3438 = vpop.f32.mrf.mxu0
        %v3439 = vadd.f32 %v3398, %v3438
        %v3440 = vpop.f32.mrf.mxu0
        %v3441 = vadd.f32 %v3400, %v3440
        %v3442 = vpop.f32.mrf.mxu0
        %v3443 = vpop.f32.mrf.mxu0
        %3444 = vdwg.mxu0
        %3445 = vmatprep.subr.bf16.mxu0 %v1268
        %3446 = vmatpush1.bf16.msra.mxu0 %v1267
        %3447 = vmatprep.subr.bf16.mxu0 %v1244
        %3448 = vmatpush1.bf16.msra.mxu0 %v1243
        %3449 = vmatprep.subr.bf16.mxu0 %v1220
        %3450 = vmatpush1.bf16.msra.mxu0 %v1219
        %3451 = vmatprep.subr.bf16.mxu0 %v1196
        %3452 = vmatpush1.bf16.msra.mxu0 %v1195
        %3453 = vmatprep.subr.bf16.mxu0 %v1172
        %3454 = vmatpush1.bf16.msra.mxu0 %v1171
        %3455 = vmatprep.subr.bf16.mxu0 %v1148
        %3456 = vmatpush1.bf16.msra.mxu0 %v1147
        %3457 = vmatprep.subr.bf16.mxu0 %v1124
        %3458 = vmatpush1.bf16.msra.mxu0 %v1123
        %3459 = vmatprep.subr.bf16.mxu0 %v1100
        %3460 = vmatpush1.bf16.msra.mxu0 %v1099
        %3461 = vmatprep.subr.bf16.mxu0 %v1460
        %3462 = vmatpush2.bf16.msra.mxu0 %v1459
        %3463 = vmatprep.subr.bf16.mxu0 %v1436
        %3464 = vmatpush2.bf16.msra.mxu0 %v1435
        %3465 = vmatprep.subr.bf16.mxu0 %v1412
        %3466 = vmatpush2.bf16.msra.mxu0 %v1411
        %3467 = vmatprep.subr.bf16.mxu0 %v1388
        %3468 = vmatpush2.bf16.msra.mxu0 %v1387
        %3469 = vmatprep.subr.bf16.mxu0 %v1364
        %3470 = vmatpush2.bf16.msra.mxu0 %v1363
        %3471 = vmatprep.subr.bf16.mxu0 %v1340
        %3472 = vmatpush2.bf16.msra.mxu0 %v1339
        %3473 = vmatprep.subr.bf16.mxu0 %v1316
        %3474 = vmatpush2.bf16.msra.mxu0 %v1315
        %3475 = vmatprep.subr.bf16.mxu0 %v1292
        %3476 = vmatpush2.bf16.msra.mxu0 %v1291
        %3477 = vmatprep.mubr.bf16.mxu0 %v314
        %3478 = vmatmul.mubr.bf16.gmra.mxu0 %v313
        %v3479 = vpop.f32.mrf.mxu0
        %v3480 = vadd.f32 0.0, %v3479
        %v3481 = vpop.f32.mrf.mxu0
        %v3482 = vadd.f32 0.0, %v3481
        %v3483 = vpop.f32.mrf.mxu0
        %v3484 = vpop.f32.mrf.mxu0
        %3485 = vdwg.mxu0
        %3486 = vmatprep.subr.bf16.mxu0 %v1652
        %3487 = vmatpush1.bf16.msra.mxu0 %v1651
        %3488 = vmatprep.subr.bf16.mxu0 %v1628
        %3489 = vmatpush1.bf16.msra.mxu0 %v1627
        %3490 = vmatprep.subr.bf16.mxu0 %v1604
        %3491 = vmatpush1.bf16.msra.mxu0 %v1603
        %3492 = vmatprep.subr.bf16.mxu0 %v1580
        %3493 = vmatpush1.bf16.msra.mxu0 %v1579
        %3494 = vmatprep.subr.bf16.mxu0 %v1556
        %3495 = vmatpush1.bf16.msra.mxu0 %v1555
        %3496 = vmatprep.subr.bf16.mxu0 %v1532
        %3497 = vmatpush1.bf16.msra.mxu0 %v1531
        %3498 = vmatprep.subr.bf16.mxu0 %v1508
        %3499 = vmatpush1.bf16.msra.mxu0 %v1507
        %3500 = vmatprep.subr.bf16.mxu0 %v1484
        %3501 = vmatpush1.bf16.msra.mxu0 %v1483
        %3502 = vmatprep.subr.bf16.mxu0 %v1844
        %3503 = vmatpush2.bf16.msra.mxu0 %v1843
        %3504 = vmatprep.subr.bf16.mxu0 %v1820
        %3505 = vmatpush2.bf16.msra.mxu0 %v1819
        %3506 = vmatprep.subr.bf16.mxu0 %v1796
        %3507 = vmatpush2.bf16.msra.mxu0 %v1795
        %3508 = vmatprep.subr.bf16.mxu0 %v1772
        %3509 = vmatpush2.bf16.msra.mxu0 %v1771
        %3510 = vmatprep.subr.bf16.mxu0 %v1748
        %3511 = vmatpush2.bf16.msra.mxu0 %v1747
        %3512 = vmatprep.subr.bf16.mxu0 %v1724
        %3513 = vmatpush2.bf16.msra.mxu0 %v1723
        %3514 = vmatprep.subr.bf16.mxu0 %v1700
        %3515 = vmatpush2.bf16.msra.mxu0 %v1699
        %3516 = vmatprep.subr.bf16.mxu0 %v1676
        %3517 = vmatpush2.bf16.msra.mxu0 %v1675
        %3518 = vmatprep.mubr.bf16.mxu0 %v316
        %3519 = vmatmul.mubr.bf16.gmra.mxu0 %v315
        %v3520 = vpop.f32.mrf.mxu0
        %v3521 = vadd.f32 %v3480, %v3520
        %v3522 = vpop.f32.mrf.mxu0
        %v3523 = vadd.f32 %v3482, %v3522
        %v3524 = vpop.f32.mrf.mxu0
        %v3525 = vpop.f32.mrf.mxu0
        %3526 = vdwg.mxu0
        %3527 = vmatprep.subr.bf16.mxu0 %v2036
        %3528 = vmatpush1.bf16.msra.mxu0 %v2035
        %3529 = vmatprep.subr.bf16.mxu0 %v2012
        %3530 = vmatpush1.bf16.msra.mxu0 %v2011
        %3531 = vmatprep.subr.bf16.mxu0 %v1988
        %3532 = vmatpush1.bf16.msra.mxu0 %v1987
        %3533 = vmatprep.subr.bf16.mxu0 %v1964
        %3534 = vmatpush1.bf16.msra.mxu0 %v1963
        %3535 = vmatprep.subr.bf16.mxu0 %v1940
        %3536 = vmatpush1.bf16.msra.mxu0 %v1939
        %3537 = vmatprep.subr.bf16.mxu0 %v1916
        %3538 = vmatpush1.bf16.msra.mxu0 %v1915
        %3539 = vmatprep.subr.bf16.mxu0 %v1892
        %3540 = vmatpush1.bf16.msra.mxu0 %v1891
        %3541 = vmatprep.subr.bf16.mxu0 %v1868
        %3542 = vmatpush1.bf16.msra.mxu0 %v1867
        %3543 = vmatprep.subr.bf16.mxu0 %v2228
        %3544 = vmatpush2.bf16.msra.mxu0 %v2227
        %3545 = vmatprep.subr.bf16.mxu0 %v2204
        %3546 = vmatpush2.bf16.msra.mxu0 %v2203
        %3547 = vmatprep.subr.bf16.mxu0 %v2180
        %3548 = vmatpush2.bf16.msra.mxu0 %v2179
        %3549 = vmatprep.subr.bf16.mxu0 %v2156
        %3550 = vmatpush2.bf16.msra.mxu0 %v2155
        %3551 = vmatprep.subr.bf16.mxu0 %v2132
        %3552 = vmatpush2.bf16.msra.mxu0 %v2131
        %3553 = vmatprep.subr.bf16.mxu0 %v2108
        %3554 = vmatpush2.bf16.msra.mxu0 %v2107
        %3555 = vmatprep.subr.bf16.mxu0 %v2084
        %3556 = vmatpush2.bf16.msra.mxu0 %v2083
        %3557 = vmatprep.subr.bf16.mxu0 %v2060
        %3558 = vmatpush2.bf16.msra.mxu0 %v2059
        %3559 = vmatprep.mubr.bf16.mxu0 %v318
        %3560 = vmatmul.mubr.bf16.gmra.mxu0 %v317
        %v3561 = vpop.f32.mrf.mxu0
        %v3562 = vadd.f32 %v3521, %v3561
        %v3563 = vpop.f32.mrf.mxu0
        %v3564 = vadd.f32 %v3523, %v3563
        %v3565 = vpop.f32.mrf.mxu0
        %v3566 = vpop.f32.mrf.mxu0
        %3567 = vdwg.mxu0
        %3568 = vmatprep.subr.bf16.mxu0 %v2420
        %3569 = vmatpush1.bf16.msra.mxu0 %v2419
        %3570 = vmatprep.subr.bf16.mxu0 %v2396
        %3571 = vmatpush1.bf16.msra.mxu0 %v2395
        %3572 = vmatprep.subr.bf16.mxu0 %v2372
        %3573 = vmatpush1.bf16.msra.mxu0 %v2371
        %3574 = vmatprep.subr.bf16.mxu0 %v2348
        %3575 = vmatpush1.bf16.msra.mxu0 %v2347
        %3576 = vmatprep.subr.bf16.mxu0 %v2324
        %3577 = vmatpush1.bf16.msra.mxu0 %v2323
        %3578 = vmatprep.subr.bf16.mxu0 %v2300
        %3579 = vmatpush1.bf16.msra.mxu0 %v2299
        %3580 = vmatprep.subr.bf16.mxu0 %v2276
        %3581 = vmatpush1.bf16.msra.mxu0 %v2275
        %3582 = vmatprep.subr.bf16.mxu0 %v2252
        %3583 = vmatpush1.bf16.msra.mxu0 %v2251
        %3584 = vmatprep.subr.bf16.mxu0 %v2612
        %3585 = vmatpush2.bf16.msra.mxu0 %v2611
        %3586 = vmatprep.subr.bf16.mxu0 %v2588
        %3587 = vmatpush2.bf16.msra.mxu0 %v2587
        %3588 = vmatprep.subr.bf16.mxu0 %v2564
        %3589 = vmatpush2.bf16.msra.mxu0 %v2563
        %3590 = vmatprep.subr.bf16.mxu0 %v2540
        %3591 = vmatpush2.bf16.msra.mxu0 %v2539
        %3592 = vmatprep.subr.bf16.mxu0 %v2516
        %3593 = vmatpush2.bf16.msra.mxu0 %v2515
        %3594 = vmatprep.subr.bf16.mxu0 %v2492
        %3595 = vmatpush2.bf16.msra.mxu0 %v2491
        %3596 = vmatprep.subr.bf16.mxu0 %v2468
        %3597 = vmatpush2.bf16.msra.mxu0 %v2467
        %3598 = vmatprep.subr.bf16.mxu0 %v2444
        %3599 = vmatpush2.bf16.msra.mxu0 %v2443
        %3600 = vmatprep.mubr.bf16.mxu0 %v320
        %3601 = vmatmul.mubr.bf16.gmra.mxu0 %v319
        %v3602 = vpop.f32.mrf.mxu0
        %v3603 = vadd.f32 %v3562, %v3602
        %v3604 = vpop.f32.mrf.mxu0
        %v3605 = vadd.f32 %v3564, %v3604
        %v3606 = vpop.f32.mrf.mxu0
        %v3607 = vpop.f32.mrf.mxu0
        %3608 = vdwg.mxu0
        %3609 = vmatprep.subr.bf16.mxu0 %v1270
        %3610 = vmatpush1.bf16.msra.mxu0 %v1269
        %3611 = vmatprep.subr.bf16.mxu0 %v1246
        %3612 = vmatpush1.bf16.msra.mxu0 %v1245
        %3613 = vmatprep.subr.bf16.mxu0 %v1222
        %3614 = vmatpush1.bf16.msra.mxu0 %v1221
        %3615 = vmatprep.subr.bf16.mxu0 %v1198
        %3616 = vmatpush1.bf16.msra.mxu0 %v1197
        %3617 = vmatprep.subr.bf16.mxu0 %v1174
        %3618 = vmatpush1.bf16.msra.mxu0 %v1173
        %3619 = vmatprep.subr.bf16.mxu0 %v1150
        %3620 = vmatpush1.bf16.msra.mxu0 %v1149
        %3621 = vmatprep.subr.bf16.mxu0 %v1126
        %3622 = vmatpush1.bf16.msra.mxu0 %v1125
        %3623 = vmatprep.subr.bf16.mxu0 %v1102
        %3624 = vmatpush1.bf16.msra.mxu0 %v1101
        %3625 = vmatprep.subr.bf16.mxu0 %v1462
        %3626 = vmatpush2.bf16.msra.mxu0 %v1461
        %3627 = vmatprep.subr.bf16.mxu0 %v1438
        %3628 = vmatpush2.bf16.msra.mxu0 %v1437
        %3629 = vmatprep.subr.bf16.mxu0 %v1414
        %3630 = vmatpush2.bf16.msra.mxu0 %v1413
        %3631 = vmatprep.subr.bf16.mxu0 %v1390
        %3632 = vmatpush2.bf16.msra.mxu0 %v1389
        %3633 = vmatprep.subr.bf16.mxu0 %v1366
        %3634 = vmatpush2.bf16.msra.mxu0 %v1365
        %3635 = vmatprep.subr.bf16.mxu0 %v1342
        %3636 = vmatpush2.bf16.msra.mxu0 %v1341
        %3637 = vmatprep.subr.bf16.mxu0 %v1318
        %3638 = vmatpush2.bf16.msra.mxu0 %v1317
        %3639 = vmatprep.subr.bf16.mxu0 %v1294
        %3640 = vmatpush2.bf16.msra.mxu0 %v1293
        %3641 = vmatprep.mubr.bf16.mxu0 %v314
        %3642 = vmatmul.mubr.bf16.gmra.mxu0 %v313
        %v3643 = vpop.f32.mrf.mxu0
        %v3644 = vadd.f32 0.0, %v3643
        %v3645 = vpop.f32.mrf.mxu0
        %v3646 = vadd.f32 0.0, %v3645
        %v3647 = vpop.f32.mrf.mxu0
        %v3648 = vpop.f32.mrf.mxu0
        %3649 = vdwg.mxu0
        %3650 = vmatprep.subr.bf16.mxu0 %v1654
        %3651 = vmatpush1.bf16.msra.mxu0 %v1653
        %3652 = vmatprep.subr.bf16.mxu0 %v1630
        %3653 = vmatpush1.bf16.msra.mxu0 %v1629
        %3654 = vmatprep.subr.bf16.mxu0 %v1606
        %3655 = vmatpush1.bf16.msra.mxu0 %v1605
        %3656 = vmatprep.subr.bf16.mxu0 %v1582
        %3657 = vmatpush1.bf16.msra.mxu0 %v1581
        %3658 = vmatprep.subr.bf16.mxu0 %v1558
        %3659 = vmatpush1.bf16.msra.mxu0 %v1557
        %3660 = vmatprep.subr.bf16.mxu0 %v1534
        %3661 = vmatpush1.bf16.msra.mxu0 %v1533
        %3662 = vmatprep.subr.bf16.mxu0 %v1510
        %3663 = vmatpush1.bf16.msra.mxu0 %v1509
        %3664 = vmatprep.subr.bf16.mxu0 %v1486
        %3665 = vmatpush1.bf16.msra.mxu0 %v1485
        %3666 = vmatprep.subr.bf16.mxu0 %v1846
        %3667 = vmatpush2.bf16.msra.mxu0 %v1845
        %3668 = vmatprep.subr.bf16.mxu0 %v1822
        %3669 = vmatpush2.bf16.msra.mxu0 %v1821
        %3670 = vmatprep.subr.bf16.mxu0 %v1798
        %3671 = vmatpush2.bf16.msra.mxu0 %v1797
        %3672 = vmatprep.subr.bf16.mxu0 %v1774
        %3673 = vmatpush2.bf16.msra.mxu0 %v1773
        %3674 = vmatprep.subr.bf16.mxu0 %v1750
        %3675 = vmatpush2.bf16.msra.mxu0 %v1749
        %3676 = vmatprep.subr.bf16.mxu0 %v1726
        %3677 = vmatpush2.bf16.msra.mxu0 %v1725
        %3678 = vmatprep.subr.bf16.mxu0 %v1702
        %3679 = vmatpush2.bf16.msra.mxu0 %v1701
        %3680 = vmatprep.subr.bf16.mxu0 %v1678
        %3681 = vmatpush2.bf16.msra.mxu0 %v1677
        %3682 = vmatprep.mubr.bf16.mxu0 %v316
        %3683 = vmatmul.mubr.bf16.gmra.mxu0 %v315
        %v3684 = vpop.f32.mrf.mxu0
        %v3685 = vadd.f32 %v3644, %v3684
        %v3686 = vpop.f32.mrf.mxu0
        %v3687 = vadd.f32 %v3646, %v3686
        %v3688 = vpop.f32.mrf.mxu0
        %v3689 = vpop.f32.mrf.mxu0
        %3690 = vdwg.mxu0
        %3691 = vmatprep.subr.bf16.mxu0 %v2038
        %3692 = vmatpush1.bf16.msra.mxu0 %v2037
        %3693 = vmatprep.subr.bf16.mxu0 %v2014
        %3694 = vmatpush1.bf16.msra.mxu0 %v2013
        %3695 = vmatprep.subr.bf16.mxu0 %v1990
        %3696 = vmatpush1.bf16.msra.mxu0 %v1989
        %3697 = vmatprep.subr.bf16.mxu0 %v1966
        %3698 = vmatpush1.bf16.msra.mxu0 %v1965
        %3699 = vmatprep.subr.bf16.mxu0 %v1942
        %3700 = vmatpush1.bf16.msra.mxu0 %v1941
        %3701 = vmatprep.subr.bf16.mxu0 %v1918
        %3702 = vmatpush1.bf16.msra.mxu0 %v1917
        %3703 = vmatprep.subr.bf16.mxu0 %v1894
        %3704 = vmatpush1.bf16.msra.mxu0 %v1893
        %3705 = vmatprep.subr.bf16.mxu0 %v1870
        %3706 = vmatpush1.bf16.msra.mxu0 %v1869
        %3707 = vmatprep.subr.bf16.mxu0 %v2230
        %3708 = vmatpush2.bf16.msra.mxu0 %v2229
        %3709 = vmatprep.subr.bf16.mxu0 %v2206
        %3710 = vmatpush2.bf16.msra.mxu0 %v2205
        %3711 = vmatprep.subr.bf16.mxu0 %v2182
        %3712 = vmatpush2.bf16.msra.mxu0 %v2181
        %3713 = vmatprep.subr.bf16.mxu0 %v2158
        %3714 = vmatpush2.bf16.msra.mxu0 %v2157
        %3715 = vmatprep.subr.bf16.mxu0 %v2134
        %3716 = vmatpush2.bf16.msra.mxu0 %v2133
        %3717 = vmatprep.subr.bf16.mxu0 %v2110
        %3718 = vmatpush2.bf16.msra.mxu0 %v2109
        %3719 = vmatprep.subr.bf16.mxu0 %v2086
        %3720 = vmatpush2.bf16.msra.mxu0 %v2085
        %3721 = vmatprep.subr.bf16.mxu0 %v2062
        %3722 = vmatpush2.bf16.msra.mxu0 %v2061
        %3723 = vmatprep.mubr.bf16.mxu0 %v318
        %3724 = vmatmul.mubr.bf16.gmra.mxu0 %v317
        %v3725 = vpop.f32.mrf.mxu0
        %v3726 = vadd.f32 %v3685, %v3725
        %v3727 = vpop.f32.mrf.mxu0
        %v3728 = vadd.f32 %v3687, %v3727
        %v3729 = vpop.f32.mrf.mxu0
        %v3730 = vpop.f32.mrf.mxu0
        %3731 = vdwg.mxu0
        %3732 = vmatprep.subr.bf16.mxu0 %v2422
        %3733 = vmatpush1.bf16.msra.mxu0 %v2421
        %3734 = vmatprep.subr.bf16.mxu0 %v2398
        %3735 = vmatpush1.bf16.msra.mxu0 %v2397
        %3736 = vmatprep.subr.bf16.mxu0 %v2374
        %3737 = vmatpush1.bf16.msra.mxu0 %v2373
        %3738 = vmatprep.subr.bf16.mxu0 %v2350
        %3739 = vmatpush1.bf16.msra.mxu0 %v2349
        %3740 = vmatprep.subr.bf16.mxu0 %v2326
        %3741 = vmatpush1.bf16.msra.mxu0 %v2325
        %3742 = vmatprep.subr.bf16.mxu0 %v2302
        %3743 = vmatpush1.bf16.msra.mxu0 %v2301
        %3744 = vmatprep.subr.bf16.mxu0 %v2278
        %3745 = vmatpush1.bf16.msra.mxu0 %v2277
        %3746 = vmatprep.subr.bf16.mxu0 %v2254
        %3747 = vmatpush1.bf16.msra.mxu0 %v2253
        %3748 = vmatprep.subr.bf16.mxu0 %v2614
        %3749 = vmatpush2.bf16.msra.mxu0 %v2613
        %3750 = vmatprep.subr.bf16.mxu0 %v2590
        %3751 = vmatpush2.bf16.msra.mxu0 %v2589
        %3752 = vmatprep.subr.bf16.mxu0 %v2566
        %3753 = vmatpush2.bf16.msra.mxu0 %v2565
        %3754 = vmatprep.subr.bf16.mxu0 %v2542
        %3755 = vmatpush2.bf16.msra.mxu0 %v2541
        %3756 = vmatprep.subr.bf16.mxu0 %v2518
        %3757 = vmatpush2.bf16.msra.mxu0 %v2517
        %3758 = vmatprep.subr.bf16.mxu0 %v2494
        %3759 = vmatpush2.bf16.msra.mxu0 %v2493
        %3760 = vmatprep.subr.bf16.mxu0 %v2470
        %3761 = vmatpush2.bf16.msra.mxu0 %v2469
        %3762 = vmatprep.subr.bf16.mxu0 %v2446
        %3763 = vmatpush2.bf16.msra.mxu0 %v2445
        %3764 = vmatprep.mubr.bf16.mxu0 %v320
        %3765 = vmatmul.mubr.bf16.gmra.mxu0 %v319
        %v3766 = vpop.f32.mrf.mxu0
        %v3767 = vadd.f32 %v3726, %v3766
        %v3768 = vpop.f32.mrf.mxu0
        %v3769 = vadd.f32 %v3728, %v3768
        %v3770 = vpop.f32.mrf.mxu0
        %v3771 = vpop.f32.mrf.mxu0
        %3772 = vdwg.mxu0
        %3773 = vmatprep.subr.bf16.mxu0 %v1272
        %3774 = vmatpush1.bf16.msra.mxu0 %v1271
        %3775 = vmatprep.subr.bf16.mxu0 %v1248
        %3776 = vmatpush1.bf16.msra.mxu0 %v1247
        %3777 = vmatprep.subr.bf16.mxu0 %v1224
        %3778 = vmatpush1.bf16.msra.mxu0 %v1223
        %3779 = vmatprep.subr.bf16.mxu0 %v1200
        %3780 = vmatpush1.bf16.msra.mxu0 %v1199
        %3781 = vmatprep.subr.bf16.mxu0 %v1176
        %3782 = vmatpush1.bf16.msra.mxu0 %v1175
        %3783 = vmatprep.subr.bf16.mxu0 %v1152
        %3784 = vmatpush1.bf16.msra.mxu0 %v1151
        %3785 = vmatprep.subr.bf16.mxu0 %v1128
        %3786 = vmatpush1.bf16.msra.mxu0 %v1127
        %3787 = vmatprep.subr.bf16.mxu0 %v1104
        %3788 = vmatpush1.bf16.msra.mxu0 %v1103
        %3789 = vmatprep.subr.bf16.mxu0 %v1464
        %3790 = vmatpush2.bf16.msra.mxu0 %v1463
        %3791 = vmatprep.subr.bf16.mxu0 %v1440
        %3792 = vmatpush2.bf16.msra.mxu0 %v1439
        %3793 = vmatprep.subr.bf16.mxu0 %v1416
        %3794 = vmatpush2.bf16.msra.mxu0 %v1415
        %3795 = vmatprep.subr.bf16.mxu0 %v1392
        %3796 = vmatpush2.bf16.msra.mxu0 %v1391
        %3797 = vmatprep.subr.bf16.mxu0 %v1368
        %3798 = vmatpush2.bf16.msra.mxu0 %v1367
        %3799 = vmatprep.subr.bf16.mxu0 %v1344
        %3800 = vmatpush2.bf16.msra.mxu0 %v1343
        %3801 = vmatprep.subr.bf16.mxu0 %v1320
        %3802 = vmatpush2.bf16.msra.mxu0 %v1319
        %3803 = vmatprep.subr.bf16.mxu0 %v1296
        %3804 = vmatpush2.bf16.msra.mxu0 %v1295
        %3805 = vmatprep.mubr.bf16.mxu0 %v314
        %3806 = vmatmul.mubr.bf16.gmra.mxu0 %v313
        %v3807 = vpop.f32.mrf.mxu0
        %v3808 = vadd.f32 0.0, %v3807
        %v3809 = vpop.f32.mrf.mxu0
        %v3810 = vadd.f32 0.0, %v3809
        %v3811 = vpop.f32.mrf.mxu0
        %v3812 = vpop.f32.mrf.mxu0
        %3813 = vdwg.mxu0
        %3814 = vmatprep.subr.bf16.mxu0 %v1656
        %3815 = vmatpush1.bf16.msra.mxu0 %v1655
        %3816 = vmatprep.subr.bf16.mxu0 %v1632
        %3817 = vmatpush1.bf16.msra.mxu0 %v1631
        %3818 = vmatprep.subr.bf16.mxu0 %v1608
        %3819 = vmatpush1.bf16.msra.mxu0 %v1607
        %3820 = vmatprep.subr.bf16.mxu0 %v1584
        %3821 = vmatpush1.bf16.msra.mxu0 %v1583
        %3822 = vmatprep.subr.bf16.mxu0 %v1560
        %3823 = vmatpush1.bf16.msra.mxu0 %v1559
        %3824 = vmatprep.subr.bf16.mxu0 %v1536
        %3825 = vmatpush1.bf16.msra.mxu0 %v1535
        %3826 = vmatprep.subr.bf16.mxu0 %v1512
        %3827 = vmatpush1.bf16.msra.mxu0 %v1511
        %3828 = vmatprep.subr.bf16.mxu0 %v1488
        %3829 = vmatpush1.bf16.msra.mxu0 %v1487
        %3830 = vmatprep.subr.bf16.mxu0 %v1848
        %3831 = vmatpush2.bf16.msra.mxu0 %v1847
        %3832 = vmatprep.subr.bf16.mxu0 %v1824
        %3833 = vmatpush2.bf16.msra.mxu0 %v1823
        %3834 = vmatprep.subr.bf16.mxu0 %v1800
        %3835 = vmatpush2.bf16.msra.mxu0 %v1799
        %3836 = vmatprep.subr.bf16.mxu0 %v1776
        %3837 = vmatpush2.bf16.msra.mxu0 %v1775
        %3838 = vmatprep.subr.bf16.mxu0 %v1752
        %3839 = vmatpush2.bf16.msra.mxu0 %v1751
        %3840 = vmatprep.subr.bf16.mxu0 %v1728
        %3841 = vmatpush2.bf16.msra.mxu0 %v1727
        %3842 = vmatprep.subr.bf16.mxu0 %v1704
        %3843 = vmatpush2.bf16.msra.mxu0 %v1703
        %3844 = vmatprep.subr.bf16.mxu0 %v1680
        %3845 = vmatpush2.bf16.msra.mxu0 %v1679
        %3846 = vmatprep.mubr.bf16.mxu0 %v316
        %3847 = vmatmul.mubr.bf16.gmra.mxu0 %v315
        %v3848 = vpop.f32.mrf.mxu0
        %v3849 = vadd.f32 %v3808, %v3848
        %v3850 = vpop.f32.mrf.mxu0
        %v3851 = vadd.f32 %v3810, %v3850
        %v3852 = vpop.f32.mrf.mxu0
        %v3853 = vpop.f32.mrf.mxu0
        %3854 = vdwg.mxu0
        %3855 = vmatprep.subr.bf16.mxu0 %v2040
        %3856 = vmatpush1.bf16.msra.mxu0 %v2039
        %3857 = vmatprep.subr.bf16.mxu0 %v2016
        %3858 = vmatpush1.bf16.msra.mxu0 %v2015
        %3859 = vmatprep.subr.bf16.mxu0 %v1992
        %3860 = vmatpush1.bf16.msra.mxu0 %v1991
        %3861 = vmatprep.subr.bf16.mxu0 %v1968
        %3862 = vmatpush1.bf16.msra.mxu0 %v1967
        %3863 = vmatprep.subr.bf16.mxu0 %v1944
        %3864 = vmatpush1.bf16.msra.mxu0 %v1943
        %3865 = vmatprep.subr.bf16.mxu0 %v1920
        %3866 = vmatpush1.bf16.msra.mxu0 %v1919
        %3867 = vmatprep.subr.bf16.mxu0 %v1896
        %3868 = vmatpush1.bf16.msra.mxu0 %v1895
        %3869 = vmatprep.subr.bf16.mxu0 %v1872
        %3870 = vmatpush1.bf16.msra.mxu0 %v1871
        %3871 = vmatprep.subr.bf16.mxu0 %v2232
        %3872 = vmatpush2.bf16.msra.mxu0 %v2231
        %3873 = vmatprep.subr.bf16.mxu0 %v2208
        %3874 = vmatpush2.bf16.msra.mxu0 %v2207
        %3875 = vmatprep.subr.bf16.mxu0 %v2184
        %3876 = vmatpush2.bf16.msra.mxu0 %v2183
        %3877 = vmatprep.subr.bf16.mxu0 %v2160
        %3878 = vmatpush2.bf16.msra.mxu0 %v2159
        %3879 = vmatprep.subr.bf16.mxu0 %v2136
        %3880 = vmatpush2.bf16.msra.mxu0 %v2135
        %3881 = vmatprep.subr.bf16.mxu0 %v2112
        %3882 = vmatpush2.bf16.msra.mxu0 %v2111
        %3883 = vmatprep.subr.bf16.mxu0 %v2088
        %3884 = vmatpush2.bf16.msra.mxu0 %v2087
        %3885 = vmatprep.subr.bf16.mxu0 %v2064
        %3886 = vmatpush2.bf16.msra.mxu0 %v2063
        %3887 = vmatprep.mubr.bf16.mxu0 %v318
        %3888 = vmatmul.mubr.bf16.gmra.mxu0 %v317
        %v3889 = vpop.f32.mrf.mxu0
        %v3890 = vadd.f32 %v3849, %v3889
        %v3891 = vpop.f32.mrf.mxu0
        %v3892 = vadd.f32 %v3851, %v3891
        %v3893 = vpop.f32.mrf.mxu0
        %v3894 = vpop.f32.mrf.mxu0
        %3895 = vdwg.mxu0
        %3896 = vmatprep.subr.bf16.mxu0 %v2424
        %3897 = vmatpush1.bf16.msra.mxu0 %v2423
        %3898 = vmatprep.subr.bf16.mxu0 %v2400
        %3899 = vmatpush1.bf16.msra.mxu0 %v2399
        %3900 = vmatprep.subr.bf16.mxu0 %v2376
        %3901 = vmatpush1.bf16.msra.mxu0 %v2375
        %3902 = vmatprep.subr.bf16.mxu0 %v2352
        %3903 = vmatpush1.bf16.msra.mxu0 %v2351
        %3904 = vmatprep.subr.bf16.mxu0 %v2328
        %3905 = vmatpush1.bf16.msra.mxu0 %v2327
        %3906 = vmatprep.subr.bf16.mxu0 %v2304
        %3907 = vmatpush1.bf16.msra.mxu0 %v2303
        %3908 = vmatprep.subr.bf16.mxu0 %v2280
        %3909 = vmatpush1.bf16.msra.mxu0 %v2279
        %3910 = vmatprep.subr.bf16.mxu0 %v2256
        %3911 = vmatpush1.bf16.msra.mxu0 %v2255
        %3912 = vmatprep.subr.bf16.mxu0 %v2616
        %3913 = vmatpush2.bf16.msra.mxu0 %v2615
        %3914 = vmatprep.subr.bf16.mxu0 %v2592
        %3915 = vmatpush2.bf16.msra.mxu0 %v2591
        %3916 = vmatprep.subr.bf16.mxu0 %v2568
        %3917 = vmatpush2.bf16.msra.mxu0 %v2567
        %3918 = vmatprep.subr.bf16.mxu0 %v2544
        %3919 = vmatpush2.bf16.msra.mxu0 %v2543
        %3920 = vmatprep.subr.bf16.mxu0 %v2520
        %3921 = vmatpush2.bf16.msra.mxu0 %v2519
        %3922 = vmatprep.subr.bf16.mxu0 %v2496
        %3923 = vmatpush2.bf16.msra.mxu0 %v2495
        %3924 = vmatprep.subr.bf16.mxu0 %v2472
        %3925 = vmatpush2.bf16.msra.mxu0 %v2471
        %3926 = vmatprep.subr.bf16.mxu0 %v2448
        %3927 = vmatpush2.bf16.msra.mxu0 %v2447
        %3928 = vmatprep.mubr.bf16.mxu0 %v320
        %3929 = vmatmul.mubr.bf16.gmra.mxu0 %v319
        %v3930 = vpop.f32.mrf.mxu0
        %v3931 = vadd.f32 %v3890, %v3930
        %v3932 = vpop.f32.mrf.mxu0
        %v3933 = vadd.f32 %v3892, %v3932
        %v3934 = vpop.f32.mrf.mxu0
        %v3935 = vpop.f32.mrf.mxu0
        %3936 = vdwg.mxu0
        %3937 = vmatprep.subr.bf16.mxu0 %v1274
        %3938 = vmatpush1.bf16.msra.mxu0 %v1273
        %3939 = vmatprep.subr.bf16.mxu0 %v1250
        %3940 = vmatpush1.bf16.msra.mxu0 %v1249
        %3941 = vmatprep.subr.bf16.mxu0 %v1226
        %3942 = vmatpush1.bf16.msra.mxu0 %v1225
        %3943 = vmatprep.subr.bf16.mxu0 %v1202
        %3944 = vmatpush1.bf16.msra.mxu0 %v1201
        %3945 = vmatprep.subr.bf16.mxu0 %v1178
        %3946 = vmatpush1.bf16.msra.mxu0 %v1177
        %3947 = vmatprep.subr.bf16.mxu0 %v1154
        %3948 = vmatpush1.bf16.msra.mxu0 %v1153
        %3949 = vmatprep.subr.bf16.mxu0 %v1130
        %3950 = vmatpush1.bf16.msra.mxu0 %v1129
        %3951 = vmatprep.subr.bf16.mxu0 %v1106
        %3952 = vmatpush1.bf16.msra.mxu0 %v1105
        %3953 = vmatprep.subr.bf16.mxu0 %v1466
        %3954 = vmatpush2.bf16.msra.mxu0 %v1465
        %3955 = vmatprep.subr.bf16.mxu0 %v1442
        %3956 = vmatpush2.bf16.msra.mxu0 %v1441
        %3957 = vmatprep.subr.bf16.mxu0 %v1418
        %3958 = vmatpush2.bf16.msra.mxu0 %v1417
        %3959 = vmatprep.subr.bf16.mxu0 %v1394
        %3960 = vmatpush2.bf16.msra.mxu0 %v1393
        %3961 = vmatprep.subr.bf16.mxu0 %v1370
        %3962 = vmatpush2.bf16.msra.mxu0 %v1369
        %3963 = vmatprep.subr.bf16.mxu0 %v1346
        %3964 = vmatpush2.bf16.msra.mxu0 %v1345
        %3965 = vmatprep.subr.bf16.mxu0 %v1322
        %3966 = vmatpush2.bf16.msra.mxu0 %v1321
        %3967 = vmatprep.subr.bf16.mxu0 %v1298
        %3968 = vmatpush2.bf16.msra.mxu0 %v1297
        %3969 = vmatprep.mubr.bf16.mxu0 %v314
        %3970 = vmatmul.mubr.bf16.gmra.mxu0 %v313
        %v3971 = vpop.f32.mrf.mxu0
        %v3972 = vadd.f32 0.0, %v3971
        %v3973 = vpop.f32.mrf.mxu0
        %v3974 = vadd.f32 0.0, %v3973
        %v3975 = vpop.f32.mrf.mxu0
        %v3976 = vpop.f32.mrf.mxu0
        %3977 = vdwg.mxu0
        %3978 = vmatprep.subr.bf16.mxu0 %v1658
        %3979 = vmatpush1.bf16.msra.mxu0 %v1657
        %3980 = vmatprep.subr.bf16.mxu0 %v1634
        %3981 = vmatpush1.bf16.msra.mxu0 %v1633
        %3982 = vmatprep.subr.bf16.mxu0 %v1610
        %3983 = vmatpush1.bf16.msra.mxu0 %v1609
        %3984 = vmatprep.subr.bf16.mxu0 %v1586
        %3985 = vmatpush1.bf16.msra.mxu0 %v1585
        %3986 = vmatprep.subr.bf16.mxu0 %v1562
        %3987 = vmatpush1.bf16.msra.mxu0 %v1561
        %3988 = vmatprep.subr.bf16.mxu0 %v1538
        %3989 = vmatpush1.bf16.msra.mxu0 %v1537
        %3990 = vmatprep.subr.bf16.mxu0 %v1514
        %3991 = vmatpush1.bf16.msra.mxu0 %v1513
        %3992 = vmatprep.subr.bf16.mxu0 %v1490
        %3993 = vmatpush1.bf16.msra.mxu0 %v1489
        %3994 = vmatprep.subr.bf16.mxu0 %v1850
        %3995 = vmatpush2.bf16.msra.mxu0 %v1849
        %3996 = vmatprep.subr.bf16.mxu0 %v1826
        %3997 = vmatpush2.bf16.msra.mxu0 %v1825
        %3998 = vmatprep.subr.bf16.mxu0 %v1802
        %3999 = vmatpush2.bf16.msra.mxu0 %v1801
        %4000 = vmatprep.subr.bf16.mxu0 %v1778
        %4001 = vmatpush2.bf16.msra.mxu0 %v1777
        %4002 = vmatprep.subr.bf16.mxu0 %v1754
        %4003 = vmatpush2.bf16.msra.mxu0 %v1753
        %4004 = vmatprep.subr.bf16.mxu0 %v1730
        %4005 = vmatpush2.bf16.msra.mxu0 %v1729
        %4006 = vmatprep.subr.bf16.mxu0 %v1706
        %4007 = vmatpush2.bf16.msra.mxu0 %v1705
        %4008 = vmatprep.subr.bf16.mxu0 %v1682
        %4009 = vmatpush2.bf16.msra.mxu0 %v1681
        %4010 = vmatprep.mubr.bf16.mxu0 %v316
        %4011 = vmatmul.mubr.bf16.gmra.mxu0 %v315
        %v4012 = vpop.f32.mrf.mxu0
        %v4013 = vadd.f32 %v3972, %v4012
        %v4014 = vpop.f32.mrf.mxu0
        %v4015 = vadd.f32 %v3974, %v4014
        %v4016 = vpop.f32.mrf.mxu0
        %v4017 = vpop.f32.mrf.mxu0
        %4018 = vdwg.mxu0
        %4019 = vmatprep.subr.bf16.mxu0 %v2042
        %4020 = vmatpush1.bf16.msra.mxu0 %v2041
        %4021 = vmatprep.subr.bf16.mxu0 %v2018
        %4022 = vmatpush1.bf16.msra.mxu0 %v2017
        %4023 = vmatprep.subr.bf16.mxu0 %v1994
        %4024 = vmatpush1.bf16.msra.mxu0 %v1993
        %4025 = vmatprep.subr.bf16.mxu0 %v1970
        %4026 = vmatpush1.bf16.msra.mxu0 %v1969
        %4027 = vmatprep.subr.bf16.mxu0 %v1946
        %4028 = vmatpush1.bf16.msra.mxu0 %v1945
        %4029 = vmatprep.subr.bf16.mxu0 %v1922
        %4030 = vmatpush1.bf16.msra.mxu0 %v1921
        %4031 = vmatprep.subr.bf16.mxu0 %v1898
        %4032 = vmatpush1.bf16.msra.mxu0 %v1897
        %4033 = vmatprep.subr.bf16.mxu0 %v1874
        %4034 = vmatpush1.bf16.msra.mxu0 %v1873
        %4035 = vmatprep.subr.bf16.mxu0 %v2234
        %4036 = vmatpush2.bf16.msra.mxu0 %v2233
        %4037 = vmatprep.subr.bf16.mxu0 %v2210
        %4038 = vmatpush2.bf16.msra.mxu0 %v2209
        %4039 = vmatprep.subr.bf16.mxu0 %v2186
        %4040 = vmatpush2.bf16.msra.mxu0 %v2185
        %4041 = vmatprep.subr.bf16.mxu0 %v2162
        %4042 = vmatpush2.bf16.msra.mxu0 %v2161
        %4043 = vmatprep.subr.bf16.mxu0 %v2138
        %4044 = vmatpush2.bf16.msra.mxu0 %v2137
        %4045 = vmatprep.subr.bf16.mxu0 %v2114
        %4046 = vmatpush2.bf16.msra.mxu0 %v2113
        %4047 = vmatprep.subr.bf16.mxu0 %v2090
        %4048 = vmatpush2.bf16.msra.mxu0 %v2089
        %4049 = vmatprep.subr.bf16.mxu0 %v2066
        %4050 = vmatpush2.bf16.msra.mxu0 %v2065
        %4051 = vmatprep.mubr.bf16.mxu0 %v318
        %4052 = vmatmul.mubr.bf16.gmra.mxu0 %v317
        %v4053 = vpop.f32.mrf.mxu0
        %v4054 = vadd.f32 %v4013, %v4053
        %v4055 = vpop.f32.mrf.mxu0
        %v4056 = vadd.f32 %v4015, %v4055
        %v4057 = vpop.f32.mrf.mxu0
        %v4058 = vpop.f32.mrf.mxu0
        %4059 = vdwg.mxu0
        %4060 = vmatprep.subr.bf16.mxu0 %v2426
        %4061 = vmatpush1.bf16.msra.mxu0 %v2425
        %4062 = vmatprep.subr.bf16.mxu0 %v2402
        %4063 = vmatpush1.bf16.msra.mxu0 %v2401
        %4064 = vmatprep.subr.bf16.mxu0 %v2378
        %4065 = vmatpush1.bf16.msra.mxu0 %v2377
        %4066 = vmatprep.subr.bf16.mxu0 %v2354
        %4067 = vmatpush1.bf16.msra.mxu0 %v2353
        %4068 = vmatprep.subr.bf16.mxu0 %v2330
        %4069 = vmatpush1.bf16.msra.mxu0 %v2329
        %4070 = vmatprep.subr.bf16.mxu0 %v2306
        %4071 = vmatpush1.bf16.msra.mxu0 %v2305
        %4072 = vmatprep.subr.bf16.mxu0 %v2282
        %4073 = vmatpush1.bf16.msra.mxu0 %v2281
        %4074 = vmatprep.subr.bf16.mxu0 %v2258
        %4075 = vmatpush1.bf16.msra.mxu0 %v2257
        %4076 = vmatprep.subr.bf16.mxu0 %v2618
        %4077 = vmatpush2.bf16.msra.mxu0 %v2617
        %4078 = vmatprep.subr.bf16.mxu0 %v2594
        %4079 = vmatpush2.bf16.msra.mxu0 %v2593
        %4080 = vmatprep.subr.bf16.mxu0 %v2570
        %4081 = vmatpush2.bf16.msra.mxu0 %v2569
        %4082 = vmatprep.subr.bf16.mxu0 %v2546
        %4083 = vmatpush2.bf16.msra.mxu0 %v2545
        %4084 = vmatprep.subr.bf16.mxu0 %v2522
        %4085 = vmatpush2.bf16.msra.mxu0 %v2521
        %4086 = vmatprep.subr.bf16.mxu0 %v2498
        %4087 = vmatpush2.bf16.msra.mxu0 %v2497
        %4088 = vmatprep.subr.bf16.mxu0 %v2474
        %4089 = vmatpush2.bf16.msra.mxu0 %v2473
        %4090 = vmatprep.subr.bf16.mxu0 %v2450
        %4091 = vmatpush2.bf16.msra.mxu0 %v2449
        %4092 = vmatprep.mubr.bf16.mxu0 %v320
        %4093 = vmatmul.mubr.bf16.gmra.mxu0 %v319
        %v4094 = vpop.f32.mrf.mxu0
        %v4095 = vadd.f32 %v4054, %v4094
        %v4096 = vpop.f32.mrf.mxu0
        %v4097 = vadd.f32 %v4056, %v4096
        %v4098 = vpop.f32.mrf.mxu0
        %v4099 = vpop.f32.mrf.mxu0
        %4100 = vdwg.mxu0
        %4101 = vmatprep.subr.bf16.mxu0 %v1276
        %4102 = vmatpush1.bf16.msra.mxu0 %v1275
        %4103 = vmatprep.subr.bf16.mxu0 %v1252
        %4104 = vmatpush1.bf16.msra.mxu0 %v1251
        %4105 = vmatprep.subr.bf16.mxu0 %v1228
        %4106 = vmatpush1.bf16.msra.mxu0 %v1227
        %4107 = vmatprep.subr.bf16.mxu0 %v1204
        %4108 = vmatpush1.bf16.msra.mxu0 %v1203
        %4109 = vmatprep.subr.bf16.mxu0 %v1180
        %4110 = vmatpush1.bf16.msra.mxu0 %v1179
        %4111 = vmatprep.subr.bf16.mxu0 %v1156
        %4112 = vmatpush1.bf16.msra.mxu0 %v1155
        %4113 = vmatprep.subr.bf16.mxu0 %v1132
        %4114 = vmatpush1.bf16.msra.mxu0 %v1131
        %4115 = vmatprep.subr.bf16.mxu0 %v1108
        %4116 = vmatpush1.bf16.msra.mxu0 %v1107
        %4117 = vmatprep.subr.bf16.mxu0 %v1468
        %4118 = vmatpush2.bf16.msra.mxu0 %v1467
        %4119 = vmatprep.subr.bf16.mxu0 %v1444
        %4120 = vmatpush2.bf16.msra.mxu0 %v1443
        %4121 = vmatprep.subr.bf16.mxu0 %v1420
        %4122 = vmatpush2.bf16.msra.mxu0 %v1419
        %4123 = vmatprep.subr.bf16.mxu0 %v1396
        %4124 = vmatpush2.bf16.msra.mxu0 %v1395
        %4125 = vmatprep.subr.bf16.mxu0 %v1372
        %4126 = vmatpush2.bf16.msra.mxu0 %v1371
        %4127 = vmatprep.subr.bf16.mxu0 %v1348
        %4128 = vmatpush2.bf16.msra.mxu0 %v1347
        %4129 = vmatprep.subr.bf16.mxu0 %v1324
        %4130 = vmatpush2.bf16.msra.mxu0 %v1323
        %4131 = vmatprep.subr.bf16.mxu0 %v1300
        %4132 = vmatpush2.bf16.msra.mxu0 %v1299
        %4133 = vmatprep.mubr.bf16.mxu0 %v314
        %4134 = vmatmul.mubr.bf16.gmra.mxu0 %v313
        %v4135 = vpop.f32.mrf.mxu0
        %v4136 = vadd.f32 0.0, %v4135
        %v4137 = vpop.f32.mrf.mxu0
        %v4138 = vadd.f32 0.0, %v4137
        %v4139 = vpop.f32.mrf.mxu0
        %v4140 = vpop.f32.mrf.mxu0
        %4141 = vdwg.mxu0
        %4142 = vmatprep.subr.bf16.mxu0 %v1660
        %4143 = vmatpush1.bf16.msra.mxu0 %v1659
        %4144 = vmatprep.subr.bf16.mxu0 %v1636
        %4145 = vmatpush1.bf16.msra.mxu0 %v1635
        %4146 = vmatprep.subr.bf16.mxu0 %v1612
        %4147 = vmatpush1.bf16.msra.mxu0 %v1611
        %4148 = vmatprep.subr.bf16.mxu0 %v1588
        %4149 = vmatpush1.bf16.msra.mxu0 %v1587
        %4150 = vmatprep.subr.bf16.mxu0 %v1564
        %4151 = vmatpush1.bf16.msra.mxu0 %v1563
        %4152 = vmatprep.subr.bf16.mxu0 %v1540
        %4153 = vmatpush1.bf16.msra.mxu0 %v1539
        %4154 = vmatprep.subr.bf16.mxu0 %v1516
        %4155 = vmatpush1.bf16.msra.mxu0 %v1515
        %4156 = vmatprep.subr.bf16.mxu0 %v1492
        %4157 = vmatpush1.bf16.msra.mxu0 %v1491
        %4158 = vmatprep.subr.bf16.mxu0 %v1852
        %4159 = vmatpush2.bf16.msra.mxu0 %v1851
        %4160 = vmatprep.subr.bf16.mxu0 %v1828
        %4161 = vmatpush2.bf16.msra.mxu0 %v1827
        %4162 = vmatprep.subr.bf16.mxu0 %v1804
        %4163 = vmatpush2.bf16.msra.mxu0 %v1803
        %4164 = vmatprep.subr.bf16.mxu0 %v1780
        %4165 = vmatpush2.bf16.msra.mxu0 %v1779
        %4166 = vmatprep.subr.bf16.mxu0 %v1756
        %4167 = vmatpush2.bf16.msra.mxu0 %v1755
        %4168 = vmatprep.subr.bf16.mxu0 %v1732
        %4169 = vmatpush2.bf16.msra.mxu0 %v1731
        %4170 = vmatprep.subr.bf16.mxu0 %v1708
        %4171 = vmatpush2.bf16.msra.mxu0 %v1707
        %4172 = vmatprep.subr.bf16.mxu0 %v1684
        %4173 = vmatpush2.bf16.msra.mxu0 %v1683
        %4174 = vmatprep.mubr.bf16.mxu0 %v316
        %4175 = vmatmul.mubr.bf16.gmra.mxu0 %v315
        %v4176 = vpop.f32.mrf.mxu0
        %v4177 = vadd.f32 %v4136, %v4176
        %v4178 = vpop.f32.mrf.mxu0
        %v4179 = vadd.f32 %v4138, %v4178
        %v4180 = vpop.f32.mrf.mxu0
        %v4181 = vpop.f32.mrf.mxu0
        %4182 = vdwg.mxu0
        %4183 = vmatprep.subr.bf16.mxu0 %v2044
        %4184 = vmatpush1.bf16.msra.mxu0 %v2043
        %4185 = vmatprep.subr.bf16.mxu0 %v2020
        %4186 = vmatpush1.bf16.msra.mxu0 %v2019
        %4187 = vmatprep.subr.bf16.mxu0 %v1996
        %4188 = vmatpush1.bf16.msra.mxu0 %v1995
        %4189 = vmatprep.subr.bf16.mxu0 %v1972
        %4190 = vmatpush1.bf16.msra.mxu0 %v1971
        %4191 = vmatprep.subr.bf16.mxu0 %v1948
        %4192 = vmatpush1.bf16.msra.mxu0 %v1947
        %4193 = vmatprep.subr.bf16.mxu0 %v1924
        %4194 = vmatpush1.bf16.msra.mxu0 %v1923
        %4195 = vmatprep.subr.bf16.mxu0 %v1900
        %4196 = vmatpush1.bf16.msra.mxu0 %v1899
        %4197 = vmatprep.subr.bf16.mxu0 %v1876
        %4198 = vmatpush1.bf16.msra.mxu0 %v1875
        %4199 = vmatprep.subr.bf16.mxu0 %v2236
        %4200 = vmatpush2.bf16.msra.mxu0 %v2235
        %4201 = vmatprep.subr.bf16.mxu0 %v2212
        %4202 = vmatpush2.bf16.msra.mxu0 %v2211
        %4203 = vmatprep.subr.bf16.mxu0 %v2188
        %4204 = vmatpush2.bf16.msra.mxu0 %v2187
        %4205 = vmatprep.subr.bf16.mxu0 %v2164
        %4206 = vmatpush2.bf16.msra.mxu0 %v2163
        %4207 = vmatprep.subr.bf16.mxu0 %v2140
        %4208 = vmatpush2.bf16.msra.mxu0 %v2139
        %4209 = vmatprep.subr.bf16.mxu0 %v2116
        %4210 = vmatpush2.bf16.msra.mxu0 %v2115
        %4211 = vmatprep.subr.bf16.mxu0 %v2092
        %4212 = vmatpush2.bf16.msra.mxu0 %v2091
        %4213 = vmatprep.subr.bf16.mxu0 %v2068
        %4214 = vmatpush2.bf16.msra.mxu0 %v2067
        %4215 = vmatprep.mubr.bf16.mxu0 %v318
        %4216 = vmatmul.mubr.bf16.gmra.mxu0 %v317
        %v4217 = vpop.f32.mrf.mxu0
        %v4218 = vadd.f32 %v4177, %v4217
        %v4219 = vpop.f32.mrf.mxu0
        %v4220 = vadd.f32 %v4179, %v4219
        %v4221 = vpop.f32.mrf.mxu0
        %v4222 = vpop.f32.mrf.mxu0
        %4223 = vdwg.mxu0
        %4224 = vmatprep.subr.bf16.mxu0 %v2428
        %4225 = vmatpush1.bf16.msra.mxu0 %v2427
        %4226 = vmatprep.subr.bf16.mxu0 %v2404
        %4227 = vmatpush1.bf16.msra.mxu0 %v2403
        %4228 = vmatprep.subr.bf16.mxu0 %v2380
        %4229 = vmatpush1.bf16.msra.mxu0 %v2379
        %4230 = vmatprep.subr.bf16.mxu0 %v2356
        %4231 = vmatpush1.bf16.msra.mxu0 %v2355
        %4232 = vmatprep.subr.bf16.mxu0 %v2332
        %4233 = vmatpush1.bf16.msra.mxu0 %v2331
        %4234 = vmatprep.subr.bf16.mxu0 %v2308
        %4235 = vmatpush1.bf16.msra.mxu0 %v2307
        %4236 = vmatprep.subr.bf16.mxu0 %v2284
        %4237 = vmatpush1.bf16.msra.mxu0 %v2283
        %4238 = vmatprep.subr.bf16.mxu0 %v2260
        %4239 = vmatpush1.bf16.msra.mxu0 %v2259
        %4240 = vmatprep.subr.bf16.mxu0 %v2620
        %4241 = vmatpush2.bf16.msra.mxu0 %v2619
        %4242 = vmatprep.subr.bf16.mxu0 %v2596
        %4243 = vmatpush2.bf16.msra.mxu0 %v2595
        %4244 = vmatprep.subr.bf16.mxu0 %v2572
        %4245 = vmatpush2.bf16.msra.mxu0 %v2571
        %4246 = vmatprep.subr.bf16.mxu0 %v2548
        %4247 = vmatpush2.bf16.msra.mxu0 %v2547
        %4248 = vmatprep.subr.bf16.mxu0 %v2524
        %4249 = vmatpush2.bf16.msra.mxu0 %v2523
        %4250 = vmatprep.subr.bf16.mxu0 %v2500
        %4251 = vmatpush2.bf16.msra.mxu0 %v2499
        %4252 = vmatprep.subr.bf16.mxu0 %v2476
        %4253 = vmatpush2.bf16.msra.mxu0 %v2475
        %4254 = vmatprep.subr.bf16.mxu0 %v2452
        %4255 = vmatpush2.bf16.msra.mxu0 %v2451
        %4256 = vmatprep.mubr.bf16.mxu0 %v320
        %4257 = vmatmul.mubr.bf16.gmra.mxu0 %v319
        %v4258 = vpop.f32.mrf.mxu0
        %v4259 = vadd.f32 %v4218, %v4258
        %v4260 = vpop.f32.mrf.mxu0
        %v4261 = vadd.f32 %v4220, %v4260
        %v4262 = vpop.f32.mrf.mxu0
        %v4263 = vpop.f32.mrf.mxu0
        %4264 = vdwg.mxu0
        %4265 = vmatprep.subr.bf16.mxu0 %v1278
        %4266 = vmatpush1.bf16.msra.mxu0 %v1277
        %4267 = vmatprep.subr.bf16.mxu0 %v1254
        %4268 = vmatpush1.bf16.msra.mxu0 %v1253
        %4269 = vmatprep.subr.bf16.mxu0 %v1230
        %4270 = vmatpush1.bf16.msra.mxu0 %v1229
        %4271 = vmatprep.subr.bf16.mxu0 %v1206
        %4272 = vmatpush1.bf16.msra.mxu0 %v1205
        %4273 = vmatprep.subr.bf16.mxu0 %v1182
        %4274 = vmatpush1.bf16.msra.mxu0 %v1181
        %4275 = vmatprep.subr.bf16.mxu0 %v1158
        %4276 = vmatpush1.bf16.msra.mxu0 %v1157
        %4277 = vmatprep.subr.bf16.mxu0 %v1134
        %4278 = vmatpush1.bf16.msra.mxu0 %v1133
        %4279 = vmatprep.subr.bf16.mxu0 %v1110
        %4280 = vmatpush1.bf16.msra.mxu0 %v1109
        %4281 = vmatprep.subr.bf16.mxu0 %v1470
        %4282 = vmatpush2.bf16.msra.mxu0 %v1469
        %4283 = vmatprep.subr.bf16.mxu0 %v1446
        %4284 = vmatpush2.bf16.msra.mxu0 %v1445
        %4285 = vmatprep.subr.bf16.mxu0 %v1422
        %4286 = vmatpush2.bf16.msra.mxu0 %v1421
        %4287 = vmatprep.subr.bf16.mxu0 %v1398
        %4288 = vmatpush2.bf16.msra.mxu0 %v1397
        %4289 = vmatprep.subr.bf16.mxu0 %v1374
        %4290 = vmatpush2.bf16.msra.mxu0 %v1373
        %4291 = vmatprep.subr.bf16.mxu0 %v1350
        %4292 = vmatpush2.bf16.msra.mxu0 %v1349
        %4293 = vmatprep.subr.bf16.mxu0 %v1326
        %4294 = vmatpush2.bf16.msra.mxu0 %v1325
        %4295 = vmatprep.subr.bf16.mxu0 %v1302
        %4296 = vmatpush2.bf16.msra.mxu0 %v1301
        %4297 = vmatprep.mubr.bf16.mxu0 %v314
        %4298 = vmatmul.mubr.bf16.gmra.mxu0 %v313
        %v4299 = vpop.f32.mrf.mxu0
        %v4300 = vadd.f32 0.0, %v4299
        %v4301 = vpop.f32.mrf.mxu0
        %v4302 = vadd.f32 0.0, %v4301
        %v4303 = vpop.f32.mrf.mxu0
        %v4304 = vpop.f32.mrf.mxu0
        %4305 = vdwg.mxu0
        %4306 = vmatprep.subr.bf16.mxu0 %v1662
        %4307 = vmatpush1.bf16.msra.mxu0 %v1661
        %4308 = vmatprep.subr.bf16.mxu0 %v1638
        %4309 = vmatpush1.bf16.msra.mxu0 %v1637
        %4310 = vmatprep.subr.bf16.mxu0 %v1614
        %4311 = vmatpush1.bf16.msra.mxu0 %v1613
        %4312 = vmatprep.subr.bf16.mxu0 %v1590
        %4313 = vmatpush1.bf16.msra.mxu0 %v1589
        %4314 = vmatprep.subr.bf16.mxu0 %v1566
        %4315 = vmatpush1.bf16.msra.mxu0 %v1565
        %4316 = vmatprep.subr.bf16.mxu0 %v1542
        %4317 = vmatpush1.bf16.msra.mxu0 %v1541
        %4318 = vmatprep.subr.bf16.mxu0 %v1518
        %4319 = vmatpush1.bf16.msra.mxu0 %v1517
        %4320 = vmatprep.subr.bf16.mxu0 %v1494
        %4321 = vmatpush1.bf16.msra.mxu0 %v1493
        %4322 = vmatprep.subr.bf16.mxu0 %v1854
        %4323 = vmatpush2.bf16.msra.mxu0 %v1853
        %4324 = vmatprep.subr.bf16.mxu0 %v1830
        %4325 = vmatpush2.bf16.msra.mxu0 %v1829
        %4326 = vmatprep.subr.bf16.mxu0 %v1806
        %4327 = vmatpush2.bf16.msra.mxu0 %v1805
        %4328 = vmatprep.subr.bf16.mxu0 %v1782
        %4329 = vmatpush2.bf16.msra.mxu0 %v1781
        %4330 = vmatprep.subr.bf16.mxu0 %v1758
        %4331 = vmatpush2.bf16.msra.mxu0 %v1757
        %4332 = vmatprep.subr.bf16.mxu0 %v1734
        %4333 = vmatpush2.bf16.msra.mxu0 %v1733
        %4334 = vmatprep.subr.bf16.mxu0 %v1710
        %4335 = vmatpush2.bf16.msra.mxu0 %v1709
        %4336 = vmatprep.subr.bf16.mxu0 %v1686
        %4337 = vmatpush2.bf16.msra.mxu0 %v1685
        %4338 = vmatprep.mubr.bf16.mxu0 %v316
        %4339 = vmatmul.mubr.bf16.gmra.mxu0 %v315
        %v4340 = vpop.f32.mrf.mxu0
        %v4341 = vadd.f32 %v4300, %v4340
        %v4342 = vpop.f32.mrf.mxu0
        %v4343 = vadd.f32 %v4302, %v4342
        %v4344 = vpop.f32.mrf.mxu0
        %v4345 = vpop.f32.mrf.mxu0
        %4346 = vdwg.mxu0
        %4347 = vmatprep.subr.bf16.mxu0 %v2046
        %4348 = vmatpush1.bf16.msra.mxu0 %v2045
        %4349 = vmatprep.subr.bf16.mxu0 %v2022
        %4350 = vmatpush1.bf16.msra.mxu0 %v2021
        %4351 = vmatprep.subr.bf16.mxu0 %v1998
        %4352 = vmatpush1.bf16.msra.mxu0 %v1997
        %4353 = vmatprep.subr.bf16.mxu0 %v1974
        %4354 = vmatpush1.bf16.msra.mxu0 %v1973
        %4355 = vmatprep.subr.bf16.mxu0 %v1950
        %4356 = vmatpush1.bf16.msra.mxu0 %v1949
        %4357 = vmatprep.subr.bf16.mxu0 %v1926
        %4358 = vmatpush1.bf16.msra.mxu0 %v1925
        %4359 = vmatprep.subr.bf16.mxu0 %v1902
        %4360 = vmatpush1.bf16.msra.mxu0 %v1901
        %4361 = vmatprep.subr.bf16.mxu0 %v1878
        %4362 = vmatpush1.bf16.msra.mxu0 %v1877
        %4363 = vmatprep.subr.bf16.mxu0 %v2238
        %4364 = vmatpush2.bf16.msra.mxu0 %v2237
        %4365 = vmatprep.subr.bf16.mxu0 %v2214
        %4366 = vmatpush2.bf16.msra.mxu0 %v2213
        %4367 = vmatprep.subr.bf16.mxu0 %v2190
        %4368 = vmatpush2.bf16.msra.mxu0 %v2189
        %4369 = vmatprep.subr.bf16.mxu0 %v2166
        %4370 = vmatpush2.bf16.msra.mxu0 %v2165
        %4371 = vmatprep.subr.bf16.mxu0 %v2142
        %4372 = vmatpush2.bf16.msra.mxu0 %v2141
        %4373 = vmatprep.subr.bf16.mxu0 %v2118
        %4374 = vmatpush2.bf16.msra.mxu0 %v2117
        %4375 = vmatprep.subr.bf16.mxu0 %v2094
        %4376 = vmatpush2.bf16.msra.mxu0 %v2093
        %4377 = vmatprep.subr.bf16.mxu0 %v2070
        %4378 = vmatpush2.bf16.msra.mxu0 %v2069
        %4379 = vmatprep.mubr.bf16.mxu0 %v318
        %4380 = vmatmul.mubr.bf16.gmra.mxu0 %v317
        %v4381 = vpop.f32.mrf.mxu0
        %v4382 = vadd.f32 %v4341, %v4381
        %v4383 = vpop.f32.mrf.mxu0
        %v4384 = vadd.f32 %v4343, %v4383
        %v4385 = vpop.f32.mrf.mxu0
        %v4386 = vpop.f32.mrf.mxu0
        %4387 = vdwg.mxu0
        %4388 = vmatprep.subr.bf16.mxu0 %v2430
        %4389 = vmatpush1.bf16.msra.mxu0 %v2429
        %4390 = vmatprep.subr.bf16.mxu0 %v2406
        %4391 = vmatpush1.bf16.msra.mxu0 %v2405
        %4392 = vmatprep.subr.bf16.mxu0 %v2382
        %4393 = vmatpush1.bf16.msra.mxu0 %v2381
        %4394 = vmatprep.subr.bf16.mxu0 %v2358
        %4395 = vmatpush1.bf16.msra.mxu0 %v2357
        %4396 = vmatprep.subr.bf16.mxu0 %v2334
        %4397 = vmatpush1.bf16.msra.mxu0 %v2333
        %4398 = vmatprep.subr.bf16.mxu0 %v2310
        %4399 = vmatpush1.bf16.msra.mxu0 %v2309
        %4400 = vmatprep.subr.bf16.mxu0 %v2286
        %4401 = vmatpush1.bf16.msra.mxu0 %v2285
        %4402 = vmatprep.subr.bf16.mxu0 %v2262
        %4403 = vmatpush1.bf16.msra.mxu0 %v2261
        %4404 = vmatprep.subr.bf16.mxu0 %v2622
        %4405 = vmatpush2.bf16.msra.mxu0 %v2621
        %4406 = vmatprep.subr.bf16.mxu0 %v2598
        %4407 = vmatpush2.bf16.msra.mxu0 %v2597
        %4408 = vmatprep.subr.bf16.mxu0 %v2574
        %4409 = vmatpush2.bf16.msra.mxu0 %v2573
        %4410 = vmatprep.subr.bf16.mxu0 %v2550
        %4411 = vmatpush2.bf16.msra.mxu0 %v2549
        %4412 = vmatprep.subr.bf16.mxu0 %v2526
        %4413 = vmatpush2.bf16.msra.mxu0 %v2525
        %4414 = vmatprep.subr.bf16.mxu0 %v2502
        %4415 = vmatpush2.bf16.msra.mxu0 %v2501
        %4416 = vmatprep.subr.bf16.mxu0 %v2478
        %4417 = vmatpush2.bf16.msra.mxu0 %v2477
        %4418 = vmatprep.subr.bf16.mxu0 %v2454
        %4419 = vmatpush2.bf16.msra.mxu0 %v2453
        %4420 = vmatprep.mubr.bf16.mxu0 %v320
        %4421 = vmatmul.mubr.bf16.gmra.mxu0 %v319
        %v4422 = vpop.f32.mrf.mxu0
        %v4423 = vadd.f32 %v4382, %v4422
        %v4424 = vpop.f32.mrf.mxu0
        %v4425 = vadd.f32 %v4384, %v4424
        %v4426 = vpop.f32.mrf.mxu0
        %v4427 = vpop.f32.mrf.mxu0
        %4428 = vdwg.mxu0
        %4429 = vmatprep.subr.bf16.mxu0 %v1280
        %4430 = vmatpush1.bf16.msra.mxu0 %v1279
        %4431 = vmatprep.subr.bf16.mxu0 %v1256
        %4432 = vmatpush1.bf16.msra.mxu0 %v1255
        %4433 = vmatprep.subr.bf16.mxu0 %v1232
        %4434 = vmatpush1.bf16.msra.mxu0 %v1231
        %4435 = vmatprep.subr.bf16.mxu0 %v1208
        %4436 = vmatpush1.bf16.msra.mxu0 %v1207
        %4437 = vmatprep.subr.bf16.mxu0 %v1184
        %4438 = vmatpush1.bf16.msra.mxu0 %v1183
        %4439 = vmatprep.subr.bf16.mxu0 %v1160
        %4440 = vmatpush1.bf16.msra.mxu0 %v1159
        %4441 = vmatprep.subr.bf16.mxu0 %v1136
        %4442 = vmatpush1.bf16.msra.mxu0 %v1135
        %4443 = vmatprep.subr.bf16.mxu0 %v1112
        %4444 = vmatpush1.bf16.msra.mxu0 %v1111
        %4445 = vmatprep.subr.bf16.mxu0 %v1472
        %4446 = vmatpush2.bf16.msra.mxu0 %v1471
        %4447 = vmatprep.subr.bf16.mxu0 %v1448
        %4448 = vmatpush2.bf16.msra.mxu0 %v1447
        %4449 = vmatprep.subr.bf16.mxu0 %v1424
        %4450 = vmatpush2.bf16.msra.mxu0 %v1423
        %4451 = vmatprep.subr.bf16.mxu0 %v1400
        %4452 = vmatpush2.bf16.msra.mxu0 %v1399
        %4453 = vmatprep.subr.bf16.mxu0 %v1376
        %4454 = vmatpush2.bf16.msra.mxu0 %v1375
        %4455 = vmatprep.subr.bf16.mxu0 %v1352
        %4456 = vmatpush2.bf16.msra.mxu0 %v1351
        %4457 = vmatprep.subr.bf16.mxu0 %v1328
        %4458 = vmatpush2.bf16.msra.mxu0 %v1327
        %4459 = vmatprep.subr.bf16.mxu0 %v1304
        %4460 = vmatpush2.bf16.msra.mxu0 %v1303
        %4461 = vmatprep.mubr.bf16.mxu0 %v314
        %4462 = vmatmul.mubr.bf16.gmra.mxu0 %v313
        %v4463 = vpop.f32.mrf.mxu0
        %v4464 = vadd.f32 0.0, %v4463
        %v4465 = vpop.f32.mrf.mxu0
        %v4466 = vadd.f32 0.0, %v4465
        %v4467 = vpop.f32.mrf.mxu0
        %v4468 = vpop.f32.mrf.mxu0
        %4469 = vdwg.mxu0
        %4470 = vmatprep.subr.bf16.mxu0 %v1664
        %4471 = vmatpush1.bf16.msra.mxu0 %v1663
        %4472 = vmatprep.subr.bf16.mxu0 %v1640
        %4473 = vmatpush1.bf16.msra.mxu0 %v1639
        %4474 = vmatprep.subr.bf16.mxu0 %v1616
        %4475 = vmatpush1.bf16.msra.mxu0 %v1615
        %4476 = vmatprep.subr.bf16.mxu0 %v1592
        %4477 = vmatpush1.bf16.msra.mxu0 %v1591
        %4478 = vmatprep.subr.bf16.mxu0 %v1568
        %4479 = vmatpush1.bf16.msra.mxu0 %v1567
        %4480 = vmatprep.subr.bf16.mxu0 %v1544
        %4481 = vmatpush1.bf16.msra.mxu0 %v1543
        %4482 = vmatprep.subr.bf16.mxu0 %v1520
        %4483 = vmatpush1.bf16.msra.mxu0 %v1519
        %4484 = vmatprep.subr.bf16.mxu0 %v1496
        %4485 = vmatpush1.bf16.msra.mxu0 %v1495
        %4486 = vmatprep.subr.bf16.mxu0 %v1856
        %4487 = vmatpush2.bf16.msra.mxu0 %v1855
        %4488 = vmatprep.subr.bf16.mxu0 %v1832
        %4489 = vmatpush2.bf16.msra.mxu0 %v1831
        %4490 = vmatprep.subr.bf16.mxu0 %v1808
        %4491 = vmatpush2.bf16.msra.mxu0 %v1807
        %4492 = vmatprep.subr.bf16.mxu0 %v1784
        %4493 = vmatpush2.bf16.msra.mxu0 %v1783
        %4494 = vmatprep.subr.bf16.mxu0 %v1760
        %4495 = vmatpush2.bf16.msra.mxu0 %v1759
        %4496 = vmatprep.subr.bf16.mxu0 %v1736
        %4497 = vmatpush2.bf16.msra.mxu0 %v1735
        %4498 = vmatprep.subr.bf16.mxu0 %v1712
        %4499 = vmatpush2.bf16.msra.mxu0 %v1711
        %4500 = vmatprep.subr.bf16.mxu0 %v1688
        %4501 = vmatpush2.bf16.msra.mxu0 %v1687
        %4502 = vmatprep.mubr.bf16.mxu0 %v316
        %4503 = vmatmul.mubr.bf16.gmra.mxu0 %v315
        %v4504 = vpop.f32.mrf.mxu0
        %v4505 = vadd.f32 %v4464, %v4504
        %v4506 = vpop.f32.mrf.mxu0
        %v4507 = vadd.f32 %v4466, %v4506
        %v4508 = vpop.f32.mrf.mxu0
        %v4509 = vpop.f32.mrf.mxu0
        %4510 = vdwg.mxu0
        %4511 = vmatprep.subr.bf16.mxu0 %v2048
        %4512 = vmatpush1.bf16.msra.mxu0 %v2047
        %4513 = vmatprep.subr.bf16.mxu0 %v2024
        %4514 = vmatpush1.bf16.msra.mxu0 %v2023
        %4515 = vmatprep.subr.bf16.mxu0 %v2000
        %4516 = vmatpush1.bf16.msra.mxu0 %v1999
        %4517 = vmatprep.subr.bf16.mxu0 %v1976
        %4518 = vmatpush1.bf16.msra.mxu0 %v1975
        %4519 = vmatprep.subr.bf16.mxu0 %v1952
        %4520 = vmatpush1.bf16.msra.mxu0 %v1951
        %4521 = vmatprep.subr.bf16.mxu0 %v1928
        %4522 = vmatpush1.bf16.msra.mxu0 %v1927
        %4523 = vmatprep.subr.bf16.mxu0 %v1904
        %4524 = vmatpush1.bf16.msra.mxu0 %v1903
        %4525 = vmatprep.subr.bf16.mxu0 %v1880
        %4526 = vmatpush1.bf16.msra.mxu0 %v1879
        %4527 = vmatprep.subr.bf16.mxu0 %v2240
        %4528 = vmatpush2.bf16.msra.mxu0 %v2239
        %4529 = vmatprep.subr.bf16.mxu0 %v2216
        %4530 = vmatpush2.bf16.msra.mxu0 %v2215
        %4531 = vmatprep.subr.bf16.mxu0 %v2192
        %4532 = vmatpush2.bf16.msra.mxu0 %v2191
        %4533 = vmatprep.subr.bf16.mxu0 %v2168
        %4534 = vmatpush2.bf16.msra.mxu0 %v2167
        %4535 = vmatprep.subr.bf16.mxu0 %v2144
        %4536 = vmatpush2.bf16.msra.mxu0 %v2143
        %4537 = vmatprep.subr.bf16.mxu0 %v2120
        %4538 = vmatpush2.bf16.msra.mxu0 %v2119
        %4539 = vmatprep.subr.bf16.mxu0 %v2096
        %4540 = vmatpush2.bf16.msra.mxu0 %v2095
        %4541 = vmatprep.subr.bf16.mxu0 %v2072
        %4542 = vmatpush2.bf16.msra.mxu0 %v2071
        %4543 = vmatprep.mubr.bf16.mxu0 %v318
        %4544 = vmatmul.mubr.bf16.gmra.mxu0 %v317
        %v4545 = vpop.f32.mrf.mxu0
        %v4546 = vadd.f32 %v4505, %v4545
        %v4547 = vpop.f32.mrf.mxu0
        %v4548 = vadd.f32 %v4507, %v4547
        %v4549 = vpop.f32.mrf.mxu0
        %v4550 = vpop.f32.mrf.mxu0
        %4551 = vdwg.mxu0
        %4552 = vmatprep.subr.bf16.mxu0 %v2432
        %4553 = vmatpush1.bf16.msra.mxu0 %v2431
        %4554 = vmatprep.subr.bf16.mxu0 %v2408
        %4555 = vmatpush1.bf16.msra.mxu0 %v2407
        %4556 = vmatprep.subr.bf16.mxu0 %v2384
        %4557 = vmatpush1.bf16.msra.mxu0 %v2383
        %4558 = vmatprep.subr.bf16.mxu0 %v2360
        %4559 = vmatpush1.bf16.msra.mxu0 %v2359
        %4560 = vmatprep.subr.bf16.mxu0 %v2336
        %4561 = vmatpush1.bf16.msra.mxu0 %v2335
        %4562 = vmatprep.subr.bf16.mxu0 %v2312
        %4563 = vmatpush1.bf16.msra.mxu0 %v2311
        %4564 = vmatprep.subr.bf16.mxu0 %v2288
        %4565 = vmatpush1.bf16.msra.mxu0 %v2287
        %4566 = vmatprep.subr.bf16.mxu0 %v2264
        %4567 = vmatpush1.bf16.msra.mxu0 %v2263
        %4568 = vmatprep.subr.bf16.mxu0 %v2624
        %4569 = vmatpush2.bf16.msra.mxu0 %v2623
        %4570 = vmatprep.subr.bf16.mxu0 %v2600
        %4571 = vmatpush2.bf16.msra.mxu0 %v2599
        %4572 = vmatprep.subr.bf16.mxu0 %v2576
        %4573 = vmatpush2.bf16.msra.mxu0 %v2575
        %4574 = vmatprep.subr.bf16.mxu0 %v2552
        %4575 = vmatpush2.bf16.msra.mxu0 %v2551
        %4576 = vmatprep.subr.bf16.mxu0 %v2528
        %4577 = vmatpush2.bf16.msra.mxu0 %v2527
        %4578 = vmatprep.subr.bf16.mxu0 %v2504
        %4579 = vmatpush2.bf16.msra.mxu0 %v2503
        %4580 = vmatprep.subr.bf16.mxu0 %v2480
        %4581 = vmatpush2.bf16.msra.mxu0 %v2479
        %4582 = vmatprep.subr.bf16.mxu0 %v2456
        %4583 = vmatpush2.bf16.msra.mxu0 %v2455
        %4584 = vmatprep.mubr.bf16.mxu0 %v320
        %4585 = vmatmul.mubr.bf16.gmra.mxu0 %v319
        %v4586 = vpop.f32.mrf.mxu0
        %v4587 = vadd.f32 %v4546, %v4586
        %v4588 = vpop.f32.mrf.mxu0
        %v4589 = vadd.f32 %v4548, %v4588
        %v4590 = vpop.f32.mrf.mxu0
        %v4591 = vpop.f32.mrf.mxu0
        %4592 = vdwg.mxu0
        %v4593 = vld [vmem:[%s258] sm:$0xff]
        %v4594 = vld [vmem:[%s258 + $0x8] sm:$0xff]
        %v4595 = vld [vmem:[%s258 + $0x10] sm:$0xff]
        %v4599 = vlaneseq
        %v4600 = vshrl.u32 %v4599, 7
        %v4601 = vsub.s32 0, %v4600
        %v4602 = vrot.slane %v4593, %v4601
        %v4603 = vlaneseq
        %v4604 = vshrl.u32 %v4603, 7
        %v4605 = vsub.s32 1, %v4604
        %v4606 = vrot.slane %v4593, %v4605
        %v4607 = vlaneseq
        %v4608 = vshrl.u32 %v4607, 7
        %v4609 = vsub.s32 2, %v4608
        %v4610 = vrot.slane %v4593, %v4609
        %v4611 = vlaneseq
        %v4612 = vshrl.u32 %v4611, 7
        %v4613 = vsub.s32 3, %v4612
        %v4614 = vrot.slane %v4593, %v4613
        %v4615 = vlaneseq
        %v4616 = vshrl.u32 %v4615, 7
        %v4617 = vsub.s32 4, %v4616
        %v4618 = vrot.slane %v4593, %v4617
        %v4619 = vlaneseq
        %v4620 = vshrl.u32 %v4619, 7
        %v4621 = vsub.s32 5, %v4620
        %v4622 = vrot.slane %v4593, %v4621
        %v4623 = vlaneseq
        %v4624 = vshrl.u32 %v4623, 7
        %v4625 = vsub.s32 6, %v4624
        %v4626 = vrot.slane %v4593, %v4625
        %v4627 = vlaneseq
        %v4628 = vshrl.u32 %v4627, 7
        %v4629 = vsub.s32 7, %v4628
        %v4630 = vrot.slane %v4593, %v4629
        %v4631 = vlaneseq
        %v4632 = vshrl.u32 %v4631, 7
        %v4633 = vsub.s32 0, %v4632
        %v4634 = vrot.slane %v4594, %v4633
        %v4635 = vlaneseq
        %v4636 = vshrl.u32 %v4635, 7
        %v4637 = vsub.s32 1, %v4636
        %v4638 = vrot.slane %v4594, %v4637
        %v4639 = vlaneseq
        %v4640 = vshrl.u32 %v4639, 7
        %v4641 = vsub.s32 2, %v4640
        %v4642 = vrot.slane %v4594, %v4641
        %v4643 = vlaneseq
        %v4644 = vshrl.u32 %v4643, 7
        %v4645 = vsub.s32 3, %v4644
        %v4646 = vrot.slane %v4594, %v4645
        %v4647 = vlaneseq
        %v4648 = vshrl.u32 %v4647, 7
        %v4649 = vsub.s32 4, %v4648
        %v4650 = vrot.slane %v4594, %v4649
        %v4651 = vlaneseq
        %v4652 = vshrl.u32 %v4651, 7
        %v4653 = vsub.s32 5, %v4652
        %v4654 = vrot.slane %v4594, %v4653
        %v4655 = vlaneseq
        %v4656 = vshrl.u32 %v4655, 7
        %v4657 = vsub.s32 6, %v4656
        %v4658 = vrot.slane %v4594, %v4657
        %v4659 = vlaneseq
        %v4660 = vshrl.u32 %v4659, 7
        %v4661 = vsub.s32 7, %v4660
        %v4662 = vrot.slane %v4594, %v4661
        %v4663 = vlaneseq
        %v4664 = vshrl.u32 %v4663, 7
        %v4665 = vsub.s32 0, %v4664
        %v4666 = vrot.slane %v4595, %v4665
        %v4667 = vlaneseq
        %v4668 = vshrl.u32 %v4667, 7
        %v4669 = vsub.s32 1, %v4668
        %v4670 = vrot.slane %v4595, %v4669
        %v4671 = vlaneseq
        %v4672 = vshrl.u32 %v4671, 7
        %v4673 = vsub.s32 2, %v4672
        %v4674 = vrot.slane %v4595, %v4673
        %v4675 = vlaneseq
        %v4676 = vshrl.u32 %v4675, 7
        %v4677 = vsub.s32 3, %v4676
        %v4678 = vrot.slane %v4595, %v4677
        %v4679 = vlaneseq
        %v4680 = vshrl.u32 %v4679, 7
        %v4681 = vsub.s32 4, %v4680
        %v4682 = vrot.slane %v4595, %v4681
        %v4683 = vlaneseq
        %v4684 = vshrl.u32 %v4683, 7
        %v4685 = vsub.s32 5, %v4684
        %v4686 = vrot.slane %v4595, %v4685
        %v4687 = vlaneseq
        %v4688 = vshrl.u32 %v4687, 7
        %v4689 = vsub.s32 6, %v4688
        %v4690 = vrot.slane %v4595, %v4689
        %v4691 = vlaneseq
        %v4692 = vshrl.u32 %v4691, 7
        %v4693 = vsub.s32 7, %v4692
        %v4694 = vrot.slane %v4595, %v4693
        %v4719 = vmul.f32 %v2783, %v4602
        %v4720 = vmul.f32 %v2785, %v4606
        %v4721 = vmul.f32 %v2947, %v4610
        %v4722 = vmul.f32 %v2949, %v4614
        %v4723 = vmul.f32 %v3111, %v4618
        %v4724 = vmul.f32 %v3113, %v4622
        %v4725 = vmul.f32 %v3275, %v4626
        %v4726 = vmul.f32 %v3277, %v4630
        %v4727 = vmul.f32 %v3439, %v4634
        %v4728 = vmul.f32 %v3441, %v4638
        %v4729 = vmul.f32 %v3603, %v4642
        %v4730 = vmul.f32 %v3605, %v4646
        %v4731 = vmul.f32 %v3767, %v4650
        %v4732 = vmul.f32 %v3769, %v4654
        %v4733 = vmul.f32 %v3931, %v4658
        %v4734 = vmul.f32 %v3933, %v4662
        %v4735 = vmul.f32 %v4095, %v4666
        %v4736 = vmul.f32 %v4097, %v4670
        %v4737 = vmul.f32 %v4259, %v4674
        %v4738 = vmul.f32 %v4261, %v4678
        %v4739 = vmul.f32 %v4423, %v4682
        %v4740 = vmul.f32 %v4425, %v4686
        %v4741 = vmul.f32 %v4587, %v4690
        %v4742 = vmul.f32 %v4589, %v4694
        %v4743 = vld [vmem:[%s267] sm:$0xff]
        %v4744 = vld [vmem:[%s267 + $0x8] sm:$0xff]
        %v4745 = vld [vmem:[%s267 + $0x10] sm:$0xff]
        %v4749 = vlaneseq
        %v4750 = vshrl.u32 %v4749, 7
        %v4751 = vsub.s32 0, %v4750
        %v4752 = vrot.slane %v4743, %v4751
        %v4753 = vlaneseq
        %v4754 = vshrl.u32 %v4753, 7
        %v4755 = vsub.s32 1, %v4754
        %v4756 = vrot.slane %v4743, %v4755
        %v4757 = vlaneseq
        %v4758 = vshrl.u32 %v4757, 7
        %v4759 = vsub.s32 2, %v4758
        %v4760 = vrot.slane %v4743, %v4759
        %v4761 = vlaneseq
        %v4762 = vshrl.u32 %v4761, 7
        %v4763 = vsub.s32 3, %v4762
        %v4764 = vrot.slane %v4743, %v4763
        %v4765 = vlaneseq
        %v4766 = vshrl.u32 %v4765, 7
        %v4767 = vsub.s32 4, %v4766
        %v4768 = vrot.slane %v4743, %v4767
        %v4769 = vlaneseq
        %v4770 = vshrl.u32 %v4769, 7
        %v4771 = vsub.s32 5, %v4770
        %v4772 = vrot.slane %v4743, %v4771
        %v4773 = vlaneseq
        %v4774 = vshrl.u32 %v4773, 7
        %v4775 = vsub.s32 6, %v4774
        %v4776 = vrot.slane %v4743, %v4775
        %v4777 = vlaneseq
        %v4778 = vshrl.u32 %v4777, 7
        %v4779 = vsub.s32 7, %v4778
        %v4780 = vrot.slane %v4743, %v4779
        %v4781 = vlaneseq
        %v4782 = vshrl.u32 %v4781, 7
        %v4783 = vsub.s32 0, %v4782
        %v4784 = vrot.slane %v4744, %v4783
        %v4785 = vlaneseq
        %v4786 = vshrl.u32 %v4785, 7
        %v4787 = vsub.s32 1, %v4786
        %v4788 = vrot.slane %v4744, %v4787
        %v4789 = vlaneseq
        %v4790 = vshrl.u32 %v4789, 7
        %v4791 = vsub.s32 2, %v4790
        %v4792 = vrot.slane %v4744, %v4791
        %v4793 = vlaneseq
        %v4794 = vshrl.u32 %v4793, 7
        %v4795 = vsub.s32 3, %v4794
        %v4796 = vrot.slane %v4744, %v4795
        %v4797 = vlaneseq
        %v4798 = vshrl.u32 %v4797, 7
        %v4799 = vsub.s32 4, %v4798
        %v4800 = vrot.slane %v4744, %v4799
        %v4801 = vlaneseq
        %v4802 = vshrl.u32 %v4801, 7
        %v4803 = vsub.s32 5, %v4802
        %v4804 = vrot.slane %v4744, %v4803
        %v4805 = vlaneseq
        %v4806 = vshrl.u32 %v4805, 7
        %v4807 = vsub.s32 6, %v4806
        %v4808 = vrot.slane %v4744, %v4807
        %v4809 = vlaneseq
        %v4810 = vshrl.u32 %v4809, 7
        %v4811 = vsub.s32 7, %v4810
        %v4812 = vrot.slane %v4744, %v4811
        %v4813 = vlaneseq
        %v4814 = vshrl.u32 %v4813, 7
        %v4815 = vsub.s32 0, %v4814
        %v4816 = vrot.slane %v4745, %v4815
        %v4817 = vlaneseq
        %v4818 = vshrl.u32 %v4817, 7
        %v4819 = vsub.s32 1, %v4818
        %v4820 = vrot.slane %v4745, %v4819
        %v4821 = vlaneseq
        %v4822 = vshrl.u32 %v4821, 7
        %v4823 = vsub.s32 2, %v4822
        %v4824 = vrot.slane %v4745, %v4823
        %v4825 = vlaneseq
        %v4826 = vshrl.u32 %v4825, 7
        %v4827 = vsub.s32 3, %v4826
        %v4828 = vrot.slane %v4745, %v4827
        %v4829 = vlaneseq
        %v4830 = vshrl.u32 %v4829, 7
        %v4831 = vsub.s32 4, %v4830
        %v4832 = vrot.slane %v4745, %v4831
        %v4833 = vlaneseq
        %v4834 = vshrl.u32 %v4833, 7
        %v4835 = vsub.s32 5, %v4834
        %v4836 = vrot.slane %v4745, %v4835
        %v4837 = vlaneseq
        %v4838 = vshrl.u32 %v4837, 7
        %v4839 = vsub.s32 6, %v4838
        %v4840 = vrot.slane %v4745, %v4839
        %v4841 = vlaneseq
        %v4842 = vshrl.u32 %v4841, 7
        %v4843 = vsub.s32 7, %v4842
        %v4844 = vrot.slane %v4745, %v4843
        %v4869 = vadd.f32 %v4719, %v4752
        %v4870 = vadd.f32 %v4720, %v4756
        %v4871 = vadd.f32 %v4721, %v4760
        %v4872 = vadd.f32 %v4722, %v4764
        %v4873 = vadd.f32 %v4723, %v4768
        %v4874 = vadd.f32 %v4724, %v4772
        %v4875 = vadd.f32 %v4725, %v4776
        %v4876 = vadd.f32 %v4726, %v4780
        %v4877 = vadd.f32 %v4727, %v4784
        %v4878 = vadd.f32 %v4728, %v4788
        %v4879 = vadd.f32 %v4729, %v4792
        %v4880 = vadd.f32 %v4730, %v4796
        %v4881 = vadd.f32 %v4731, %v4800
        %v4882 = vadd.f32 %v4732, %v4804
        %v4883 = vadd.f32 %v4733, %v4808
        %v4884 = vadd.f32 %v4734, %v4812
        %v4885 = vadd.f32 %v4735, %v4816
        %v4886 = vadd.f32 %v4736, %v4820
        %v4887 = vadd.f32 %v4737, %v4824
        %v4888 = vadd.f32 %v4738, %v4828
        %v4889 = vadd.f32 %v4739, %v4832
        %v4890 = vadd.f32 %v4740, %v4836
        %v4891 = vadd.f32 %v4741, %v4840
        %v4892 = vadd.f32 %v4742, %v4844
        %4893 = vst [vmem:[%s301] sm:$0xff] %v4869
        %4894 = vst [vmem:[%s301 + $0x8] sm:$0xff] %v4870
        %4895 = vst [vmem:[%s301 + $0x10] sm:$0xff] %v4871
        %4896 = vst [vmem:[%s301 + $0x18] sm:$0xff] %v4872
        %4897 = vst [vmem:[%s301 + $0x20] sm:$0xff] %v4873
        %4898 = vst [vmem:[%s301 + $0x28] sm:$0xff] %v4874
        %4899 = vst [vmem:[%s301 + $0x30] sm:$0xff] %v4875
        %4900 = vst [vmem:[%s301 + $0x38] sm:$0xff] %v4876
        %4901 = vst [vmem:[%s301 + $0x40] sm:$0xff] %v4877
        %4902 = vst [vmem:[%s301 + $0x48] sm:$0xff] %v4878
        %4903 = vst [vmem:[%s301 + $0x50] sm:$0xff] %v4879
        %4904 = vst [vmem:[%s301 + $0x58] sm:$0xff] %v4880
        %4905 = vst [vmem:[%s301 + $0x60] sm:$0xff] %v4881
        %4906 = vst [vmem:[%s301 + $0x68] sm:$0xff] %v4882
        %4907 = vst [vmem:[%s301 + $0x70] sm:$0xff] %v4883
        %4908 = vst [vmem:[%s301 + $0x78] sm:$0xff] %v4884
        %4909 = vst [vmem:[%s301 + $0x80] sm:$0xff] %v4885
        %4910 = vst [vmem:[%s301 + $0x88] sm:$0xff] %v4886
        %4911 = vst [vmem:[%s301 + $0x90] sm:$0xff] %v4887
        %4912 = vst [vmem:[%s301 + $0x98] sm:$0xff] %v4888
        %4913 = vst [vmem:[%s301 + $0xa0] sm:$0xff] %v4889
        %4914 = vst [vmem:[%s301 + $0xa8] sm:$0xff] %v4890
        %4915 = vst [vmem:[%s301 + $0xb0] sm:$0xff] %v4891
        %4916 = vst [vmem:[%s301 + $0xb8] sm:$0xff] %v4892
        %s4917 = sand.u32 %s132, 1
        %s4918 = scalar_lea.sflag [#allocation4], %s4917
        %s4919 = sand.u32 %s132, 1
        %s4920 = smul.addr %s4919, 192
        %s4921 = scalar_lea.vmem [#allocation10], %s4920
        // Predicated region
        $region53: #{tpu_custom_call.1} parent=35 // pred_check
          %p4922 = pneg %p142
        $region54: #{tpu_custom_call.1} parent=35 // pred_check_branch
          %4924 = sbr.rel (%p4922) target = $region56
        $region55: #{tpu_custom_call.1} parent=35 // pred_region
          %s4926 = ssub.s32 3072, 3072
          %4927 = vsyncadd %s4918, %s4926
          %s4928 = smul.addr %s25, 24
          %s4929 = smul.addr %s4928, 128
          %s4930 = scalar_lea.hbm %s4, %s4929
          %s4932 = sshll.u32 %s4921, 4
          %s4933 = int_to_ptr.vmem [resolvable:$true] %s4932
          %4935 = dma.vmem_to_hbm [thread:$0]  %s4933, 3072, %s4930, %s4918
        $region56: #{tpu_custom_call.1} parent=35 // pred_fallthru
          _
      $region36: #{tpu_custom_call.1} parent=5 // pred_fallthru
        _
      %p4936 = scmp.le.s32.totalorder 2, %s20
      // Predicated region
      $region57: #{tpu_custom_call.1} parent=5 // pred_check
        %p4937 = pneg %p4936
      $region58: #{tpu_custom_call.1} parent=5 // pred_check_branch
        %4939 = sbr.rel (%p4937) target = $region60
      $region59: #{tpu_custom_call.1} parent=5 // pred_region
        %s4940 = ssub.s32 %s20, 2
        // Predicated region
        $region61: #{tpu_custom_call.1} parent=59 // pred_check
          %p4941 = pneg %p148
        $region62: #{tpu_custom_call.1} parent=59 // pred_check_branch
          %4943 = sbr.rel (%p4941) target = $region64
        $region63: #{tpu_custom_call.1} parent=59 // pred_region
          %s4944 = sand.u32 %s133, 1
          %s4945 = scalar_lea.sflag [#allocation4], %s4944
          %s4946 = sand.u32 %s133, 1
          %s4947 = smul.addr %s4946, 192
          %s4948 = scalar_lea.vmem [#allocation10], %s4947
          %4949 = dma.done %s4945, 3072
        $region64: #{tpu_custom_call.1} parent=59 // pred_fallthru
          _
      $region60: #{tpu_custom_call.1} parent=5 // pred_fallthru
        _
    $region6: #{tpu_custom_call.1} parent=1 // loop_footer
      %s24 = sadd.s32 1, %s20
    $region7: #{tpu_custom_call.1} parent=1 // loop_footer_branch
      %19 = sbr.rel target = $region3
    $region8: #{tpu_custom_call.1} parent=1 // loop_exit
      _
    %4950 = vsyncpa [#allocation3], 1
    %s4951 = scalar_lea.sflag [#allocation3], 1
    %4952 = vsyncpa %s4951, 1
    %4953 = vsyncpa [#allocation6], 1
    %s4954 = scalar_lea.sflag [#allocation6], 1
    %4955 = vsyncpa %s4954, 1
    %4956 = vsyncpa [#allocation9], 1
    %s4957 = scalar_lea.sflag [#allocation9], 1
    %4958 = vsyncpa %s4957, 1
    %4959 = vsyncpa [#allocation4], 1
    %s4960 = scalar_lea.sflag [#allocation4], 1
    %4961 = vsyncpa %s4960, 1

</llo_original>
